<compile_context>
chip_gen: v7x
topology: tpu7x:2x2x1
jax: 0.10.0
libtpu: 0.0.40
codegen_flags: <defaults>
</compile_context>

<pallas_src>
import math
from functools import partial

import jax
import jax.numpy as jnp
from jax import lax
from jax.experimental import pallas as pl
from jax.experimental.pallas import tpu as pltpu


def _layer_norm(x, gamma, beta, eps=1e-5):
    mu = jnp.mean(x, axis=-1, keepdims=True)
    xc = x - mu
    var = jnp.mean(xc * xc, axis=-1, keepdims=True)
    return xc * lax.rsqrt(var + eps) * gamma + beta


def _softmax_lastdim(s):
    m = jnp.max(s, axis=-1, keepdims=True)
    p = jnp.exp(s - m)
    denom = jnp.sum(p, axis=-1, keepdims=True)
    return p * pl.reciprocal(denom, approx=True)


def _encoder_stack_kernel(x_ref,
                          wqkv_ref, bqkv_ref, wo_ref, bo_ref, g1_ref, be1_ref,
                          w1_ref, b1_ref, w2_ref, b2_ref, g2_ref, be2_ref,
                          o_ref, *, nhead, batch, seq):
    layer = pl.program_id(0)

    # Layer 0: seed the resident activation buffer.  o_ref keeps the same block
    # index across the whole grid, so it lives in VMEM until the last layer.
    @pl.when(layer == 0)
    def _():
        o_ref[...] = x_ref[...]

    x = o_ref[...].astype(jnp.float32)                      # (B*S, D)
    BS, D = x.shape
    hd = D // nhead
    scale = 1.0 / math.sqrt(hd)

    # ---- Self-attention ----------------------------------------------------
    # Fused QKV projection: one MXU matmul with N = 3*D (bf16 in, f32 acc).
    qkv = jnp.dot(x.astype(jnp.bfloat16), wqkv_ref[0],
                  preferred_element_type=jnp.float32) + bqkv_ref[0]   # (B*S, 3D)
    q = qkv[:, :D] * scale
    k = qkv[:, D:2 * D]
    v = qkv[:, 2 * D:]

    # Attention matmuls batched over the batch dimension (one dot_general per
    # head; static unrolled loop over the small head count).
    q3 = q.reshape(batch, seq, D).astype(jnp.bfloat16)
    k3 = k.reshape(batch, seq, D).astype(jnp.bfloat16)
    v3 = v.reshape(batch, seq, D).astype(jnp.bfloat16)
    head_ctx = []
    for h in range(nhead):
        sl = slice(h * hd, (h + 1) * hd)
        s = jnp.einsum('bqe,bke->bqk', q3[:, :, sl], k3[:, :, sl],
                       preferred_element_type=jnp.float32)            # (B, S, S)
        p = _softmax_lastdim(s)
        head_ctx.append(
            jnp.einsum('bqk,bke->bqe', p.astype(jnp.bfloat16), v3[:, :, sl],
                       preferred_element_type=jnp.float32))           # (B, S, hd)
    ctx = jnp.concatenate(head_ctx, axis=-1).reshape(BS, D)           # (B*S, D)

    attn = jnp.dot(ctx.astype(jnp.bfloat16), wo_ref[0],
                   preferred_element_type=jnp.float32) + bo_ref[0]
    # TODO(synk): dropout (p=0.1 in the reference layer) omitted; identity here.
    x1 = _layer_norm(x + attn, g1_ref[0], be1_ref[0])

    # ---- Feed-forward: ReLU(x1 @ W1 + b1) @ W2 + b2 -------------------------
    hid = jnp.maximum(
        jnp.dot(x1.astype(jnp.bfloat16), w1_ref[0],
                preferred_element_type=jnp.float32) + b1_ref[0], 0.0)
    ff = jnp.dot(hid.astype(jnp.bfloat16), w2_ref[0],
                 preferred_element_type=jnp.float32) + b2_ref[0]
    x2 = _layer_norm(x1 + ff, g2_ref[0], be2_ref[0])

    o_ref[...] = x2.astype(o_ref.dtype)


def _stack_params(params):
    return {k: jnp.stack([p[k] for p in params], axis=0) for k in params[0]}


def _cost_estimate(L, BS, D, F, B, S, nhead):
    """Advisory cost hint for XLA scheduling around the custom call."""
    per_layer_flops = (
        2 * BS * D * 3 * D          # fused QKV projection
        + 4 * B * S * S * D         # scores + context (all heads)
        + 2 * BS * D * D            # output projection
        + 4 * BS * D * F            # FFN (two matmuls)
    )
    per_layer_transc = nhead * B * S * S + nhead * B * S + 4 * BS  # exp, recip, rsqrt
    weight_bytes = L * (3 * D * D + D * D + 2 * D * F) * 2         # bf16 weights
    act_bytes = 2 * BS * D * 4                                     # in + out f32
    return pl.CostEstimate(flops=int(L * per_layer_flops),
                           transcendentals=int(L * per_layer_transc),
                           bytes_accessed=int(weight_bytes + act_bytes))


def encoder_stack(x2d, sp, nhead, batch, seq):
    """All encoder layers in one pallas_call.  x2d: (B*S, D) -> (B*S, D)."""
    L = sp["wqkv"].shape[0]
    BS, D = x2d.shape
    F = sp["w1"].shape[2]

    def wspec(*dims):
        n = len(dims)
        return pl.BlockSpec((1,) + dims, lambda l, _n=n: (l,) + (0,) * _n)

    def act_spec():
        return pl.BlockSpec((BS, D), lambda l: (0, 0))

    return pl.pallas_call(
        partial(_encoder_stack_kernel, nhead=nhead, batch=batch, seq=seq),
        out_shape=jax.ShapeDtypeStruct((BS, D), jnp.float32),
        grid=(L,),
        in_specs=[
            act_spec(),
            wspec(D, 3 * D), wspec(1, 3 * D),      # fused qkv weight / bias
            wspec(D, D), wspec(1, D),              # out-proj weight / bias
            wspec(1, D), wspec(1, D),              # ln1 gamma / beta
            wspec(D, F), wspec(1, F),              # ffn w1 / b1
            wspec(F, D), wspec(1, D),              # ffn w2 / b2
            wspec(1, D), wspec(1, D),              # ln2 gamma / beta
        ],
        out_specs=act_spec(),
        compiler_params=pltpu.CompilerParams(
            dimension_semantics=("arbitrary",)),
        cost_estimate=_cost_estimate(L, BS, D, F, batch, seq, nhead),
    )(x2d,
      sp["wqkv"], sp["bqkv"], sp["wo"], sp["bo"], sp["g1"], sp["be1"],
      sp["w1"], sp["b1"], sp["w2"], sp["b2"], sp["g2"], sp["be2"])


def transformer_block_forward(x, params, nhead):
    """Reproduces TransformerBlock.forward.

    x: (seq, d_model, batch) -> permute(0,2,1) -> (seq, batch, d_model),
    then the encoder stack; returns (seq, batch, d_model) like the PyTorch module.
    """
    S, D, B = x.shape
    # Single fused layout change: (S, D, B) -> (B, S, D) -> rows ordered (b, s).
    h2d = jnp.transpose(x, (2, 0, 1)).reshape(B * S, D)
    sp = _stack_params(params)
    out2d = encoder_stack(h2d, sp, nhead, B, S)
    return jnp.transpose(out2d.reshape(B, S, D), (1, 0, 2))  # (S, B, D)


def init_params(key, d_model, num_layers, dim_ff=2048):
    """Deterministic synthetic weights (shapes match nn.TransformerEncoderLayer defaults).

    Weight matrices are bf16 (MXU inputs); biases / LayerNorm params stay f32.
    NOTE: real PyTorch checkpoints use y = x @ W^T; transpose (and split
    in_proj_weight) when porting trained weights.
    """
    def nrm(k, shape, scale=0.02):
        return scale * jax.random.normal(k, shape, dtype=jnp.float32)

    layers = []
    for _ in range(num_layers):
        key, kq, kk, kv, ko, k1, k2 = jax.random.split(key, 7)
        wqkv = jnp.concatenate([nrm(kq, (d_model, d_model)),
                                nrm(kk, (d_model, d_model)),
                                nrm(kv, (d_model, d_model))], axis=1)
        layers.append(dict(
            wqkv=wqkv.astype(jnp.bfloat16),
            bqkv=jnp.zeros((1, 3 * d_model), jnp.float32),
            wo=nrm(ko, (d_model, d_model)).astype(jnp.bfloat16),
            bo=jnp.zeros((1, d_model), jnp.float32),
            g1=jnp.ones((1, d_model), jnp.float32),
            be1=jnp.zeros((1, d_model), jnp.float32),
            w1=nrm(k1, (d_model, dim_ff)).astype(jnp.bfloat16),
            b1=jnp.zeros((1, dim_ff), jnp.float32),
            w2=nrm(k2, (dim_ff, d_model)).astype(jnp.bfloat16),
            b2=jnp.zeros((1, d_model), jnp.float32),
            g2=jnp.ones((1, d_model), jnp.float32),
            be2=jnp.zeros((1, d_model), jnp.float32),
        ))
    return layers


if __name__ == "__main__":
    d_model, nhead, num_layers = 32, 4, 2
    seq, batch = 8, 2

    key = jax.random.PRNGKey(0)
    kx, kp = jax.random.split(key)
    # Input as the PyTorch forward expects: (seq, d_model, batch)
    x = jax.random.normal(kx, (seq, d_model, batch), dtype=jnp.float32)
    params = init_params(kp, d_model, num_layers)

    y = transformer_block_forward(x, params, nhead)
    jax.block_until_ready(y)
    assert y.shape == (seq, batch, d_model)
    assert bool(jnp.all(jnp.isfinite(y)))
    print("KERNEL_OK")
</pallas_src>

<mosaic_0001>
module attributes {stable_mosaic.version = 11 : i64} {
  func.func @_encoder_stack_kernel(%arg0: i32, %arg1: memref<16x32xf32, #tpu.memory_space<vmem>>, %arg2: memref<1x32x96xbf16, #tpu.memory_space<vmem>>, %arg3: memref<1x1x96xf32, #tpu.memory_space<vmem>>, %arg4: memref<1x32x32xbf16, #tpu.memory_space<vmem>>, %arg5: memref<1x1x32xf32, #tpu.memory_space<vmem>>, %arg6: memref<1x1x32xf32, #tpu.memory_space<vmem>>, %arg7: memref<1x1x32xf32, #tpu.memory_space<vmem>>, %arg8: memref<1x32x2048xbf16, #tpu.memory_space<vmem>>, %arg9: memref<1x1x2048xf32, #tpu.memory_space<vmem>>, %arg10: memref<1x2048x32xbf16, #tpu.memory_space<vmem>>, %arg11: memref<1x1x32xf32, #tpu.memory_space<vmem>>, %arg12: memref<1x1x32xf32, #tpu.memory_space<vmem>>, %arg13: memref<1x1x32xf32, #tpu.memory_space<vmem>>, %arg14: memref<16x32xf32, #tpu.memory_space<vmem>>) attributes {dimension_semantics = [#tpu.dimension_semantics<arbitrary>], iteration_bounds = array<i64: 2>, scalar_prefetch = 0 : i64, scratch_operands = 0 : i64, tpu.core_type = #tpu.core_type<tc>, window_params = [{pipeline_mode = #tpu.pipeline_mode<synchronous>, transform_indices = @transform_0, window_bounds = array<i64: 16, 32>}, {transform_indices = @transform_1, window_bounds = array<i64: 1, 32, 96>}, {transform_indices = @transform_2, window_bounds = array<i64: 1, 1, 96>}, {transform_indices = @transform_3, window_bounds = array<i64: 1, 32, 32>}, {transform_indices = @transform_4, window_bounds = array<i64: 1, 1, 32>}, {transform_indices = @transform_5, window_bounds = array<i64: 1, 1, 32>}, {transform_indices = @transform_6, window_bounds = array<i64: 1, 1, 32>}, {transform_indices = @transform_7, window_bounds = array<i64: 1, 32, 2048>}, {transform_indices = @transform_8, window_bounds = array<i64: 1, 1, 2048>}, {transform_indices = @transform_9, window_bounds = array<i64: 1, 2048, 32>}, {transform_indices = @transform_10, window_bounds = array<i64: 1, 1, 32>}, {transform_indices = @transform_11, window_bounds = array<i64: 1, 1, 32>}, {transform_indices = @transform_12, window_bounds = array<i64: 1, 1, 32>}, {pipeline_mode = #tpu.pipeline_mode<synchronous>, transform_indices = @transform_13, window_bounds = array<i64: 16, 32>}]} {
    %c0_i32 = arith.constant 0 : i32
    %0 = arith.cmpi eq, %arg0, %c0_i32 : i32
    %1 = arith.extui %0 : i1 to i32
    %c0_i32_0 = arith.constant 0 : i32
    %2 = arith.cmpi ne, %1, %c0_i32_0 : i32
    scf.if %2 {
      %c0_71 = arith.constant 0 : index
      %c0_72 = arith.constant 0 : index
      %166 = vector.load %arg1[%c0_71, %c0_72] : memref<16x32xf32, #tpu.memory_space<vmem>>, vector<16x32xf32>
      %c0_73 = arith.constant 0 : index
      %c0_74 = arith.constant 0 : index
      %167 = vector.load %arg14[%c0_73, %c0_74] : memref<16x32xf32, #tpu.memory_space<vmem>>, vector<16x32xf32>
      tpu.vector_store %arg14[%c0_73, %c0_74], %166 {strides = array<i32>} : memref<16x32xf32, #tpu.memory_space<vmem>>, vector<16x32xf32>,
    } else {
    }
    %c0 = arith.constant 0 : index
    %c0_1 = arith.constant 0 : index
    %3 = vector.load %arg14[%c0, %c0_1] : memref<16x32xf32, #tpu.memory_space<vmem>>, vector<16x32xf32>
    %4 = arith.truncf %3 : vector<16x32xf32> to vector<16x32xbf16>
    %c0_2 = arith.constant 0 : index
    %c0_3 = arith.constant 0 : index
    %c0_4 = arith.constant 0 : index
    %5 = vector.load %arg2[%c0_2, %c0_3, %c0_4] : memref<1x32x96xbf16, #tpu.memory_space<vmem>>, vector<1x32x96xbf16>
    %6 = vector.shape_cast %5 : vector<1x32x96xbf16> to vector<32x96xbf16>
    %cst = arith.constant dense<0.000000e+00> : vector<16x96xf32>
    %7 = tpu.matmul %4, %6, %cst {dimension_numbers = #tpu.dot_dimension_numbers<[1], [0], [0], [1], [0, 0, 1, 1], [], []>} : vector<16x32xbf16>, vector<32x96xbf16>, vector<16x96xf32> -> vector<16x96xf32>
    %c0_5 = arith.constant 0 : index
    %c0_6 = arith.constant 0 : index
    %c0_7 = arith.constant 0 : index
    %8 = vector.load %arg3[%c0_5, %c0_6, %c0_7] : memref<1x1x96xf32, #tpu.memory_space<vmem>>, vector<1x1x96xf32>
    %9 = vector.shape_cast %8 : vector<1x1x96xf32> to vector<1x96xf32>
    %10 = vector.broadcast %9 : vector<1x96xf32> to vector<16x96xf32>
    %11 = arith.addf %7, %10 : vector<16x96xf32>
    %12 = vector.extract_strided_slice %11 {offsets = [0, 0], sizes = [16, 32], strides = [1, 1]} : vector<16x96xf32> to vector<16x32xf32>
    %cst_8 = arith.constant 0.353553385 : f32
    %13 = vector.broadcast %cst_8 : f32 to vector<16x32xf32>
    %14 = arith.mulf %12, %13 : vector<16x32xf32>
    %15 = vector.extract_strided_slice %11 {offsets = [0, 32], sizes = [16, 32], strides = [1, 1]} : vector<16x96xf32> to vector<16x32xf32>
    %16 = vector.extract_strided_slice %11 {offsets = [0, 64], sizes = [16, 32], strides = [1, 1]} : vector<16x96xf32> to vector<16x32xf32>
    %17 = vector.shape_cast %14 : vector<16x32xf32> to vector<2x8x32xf32>
    %18 = arith.truncf %17 : vector<2x8x32xf32> to vector<2x8x32xbf16>
    %19 = vector.shape_cast %15 : vector<16x32xf32> to vector<2x8x32xf32>
    %20 = arith.truncf %19 : vector<2x8x32xf32> to vector<2x8x32xbf16>
    %21 = vector.shape_cast %16 : vector<16x32xf32> to vector<2x8x32xf32>
    %22 = arith.truncf %21 : vector<2x8x32xf32> to vector<2x8x32xbf16>
    %23 = vector.extract_strided_slice %18 {offsets = [0, 0, 0], sizes = [2, 8, 8], strides = [1, 1, 1]} : vector<2x8x32xbf16> to vector<2x8x8xbf16>
    %24 = vector.extract_strided_slice %20 {offsets = [0, 0, 0], sizes = [2, 8, 8], strides = [1, 1, 1]} : vector<2x8x32xbf16> to vector<2x8x8xbf16>
    "tpu.trace_start"() <{level = 10 : i32, message = "bqe,bke->bqk"}> : () -> ()
    %cst_9 = arith.constant dense<0.000000e+00> : vector<2x8x8xf32>
    %25 = tpu.matmul %23, %24, %cst_9 {dimension_numbers = #tpu.dot_dimension_numbers<[2], [2], [1], [1], [0, 0, 0, 1, 1, 1], [0], [0]>} : vector<2x8x8xbf16>, vector<2x8x8xbf16>, vector<2x8x8xf32> -> vector<2x8x8xf32>
    "tpu.trace_stop"() : () -> ()
    %cst_10 = arith.constant dense<0xFF800000> : vector<2x8xf32>
    %26 = vector.multi_reduction <maximumf>, %25, %cst_10 [2] : vector<2x8x8xf32> to vector<2x8xf32>
    %27 = vector.shape_cast %26 : vector<2x8xf32> to vector<2x8x1xf32>
    %28 = vector.broadcast %27 : vector<2x8x1xf32> to vector<2x8x8xf32>
    %29 = arith.subf %25, %28 : vector<2x8x8xf32>
    %30 = math.exp %29 : vector<2x8x8xf32>
    %cst_11 = arith.constant dense<0.000000e+00> : vector<2x8xf32>
    %31 = vector.multi_reduction <add>, %30, %cst_11 [2] : vector<2x8x8xf32> to vector<2x8xf32>
    %32 = vector.shape_cast %31 : vector<2x8xf32> to vector<2x8x1xf32>
    %33 = tpu.reciprocal %32 {approx = true} : vector<2x8x1xf32> -> vector<2x8x1xf32>
    %34 = vector.broadcast %33 : vector<2x8x1xf32> to vector<2x8x8xf32>
    %35 = arith.mulf %30, %34 : vector<2x8x8xf32>
    %36 = arith.truncf %35 : vector<2x8x8xf32> to vector<2x8x8xbf16>
    %37 = vector.extract_strided_slice %22 {offsets = [0, 0, 0], sizes = [2, 8, 8], strides = [1, 1, 1]} : vector<2x8x32xbf16> to vector<2x8x8xbf16>
    "tpu.trace_start"() <{level = 10 : i32, message = "bqk,bke->bqe"}> : () -> ()
    %cst_12 = arith.constant dense<0.000000e+00> : vector<2x8x8xf32>
    %38 = tpu.matmul %36, %37, %cst_12 {dimension_numbers = #tpu.dot_dimension_numbers<[2], [1], [1], [2], [0, 0, 0, 1, 1, 2], [0], [0]>} : vector<2x8x8xbf16>, vector<2x8x8xbf16>, vector<2x8x8xf32> -> vector<2x8x8xf32>
    "tpu.trace_stop"() : () -> ()
    %39 = vector.extract_strided_slice %18 {offsets = [0, 0, 8], sizes = [2, 8, 8], strides = [1, 1, 1]} : vector<2x8x32xbf16> to vector<2x8x8xbf16>
    %40 = vector.extract_strided_slice %20 {offsets = [0, 0, 8], sizes = [2, 8, 8], strides = [1, 1, 1]} : vector<2x8x32xbf16> to vector<2x8x8xbf16>
    "tpu.trace_start"() <{level = 10 : i32, message = "bqe,bke->bqk"}> : () -> ()
    %cst_13 = arith.constant dense<0.000000e+00> : vector<2x8x8xf32>
    %41 = tpu.matmul %39, %40, %cst_13 {dimension_numbers = #tpu.dot_dimension_numbers<[2], [2], [1], [1], [0, 0, 0, 1, 1, 1], [0], [0]>} : vector<2x8x8xbf16>, vector<2x8x8xbf16>, vector<2x8x8xf32> -> vector<2x8x8xf32>
    "tpu.trace_stop"() : () -> ()
    %cst_14 = arith.constant dense<0xFF800000> : vector<2x8xf32>
    %42 = vector.multi_reduction <maximumf>, %41, %cst_14 [2] : vector<2x8x8xf32> to vector<2x8xf32>
    %43 = vector.shape_cast %42 : vector<2x8xf32> to vector<2x8x1xf32>
    %44 = vector.broadcast %43 : vector<2x8x1xf32> to vector<2x8x8xf32>
    %45 = arith.subf %41, %44 : vector<2x8x8xf32>
    %46 = math.exp %45 : vector<2x8x8xf32>
    %cst_15 = arith.constant dense<0.000000e+00> : vector<2x8xf32>
    %47 = vector.multi_reduction <add>, %46, %cst_15 [2] : vector<2x8x8xf32> to vector<2x8xf32>
    %48 = vector.shape_cast %47 : vector<2x8xf32> to vector<2x8x1xf32>
    %49 = tpu.reciprocal %48 {approx = true} : vector<2x8x1xf32> -> vector<2x8x1xf32>
    %50 = vector.broadcast %49 : vector<2x8x1xf32> to vector<2x8x8xf32>
    %51 = arith.mulf %46, %50 : vector<2x8x8xf32>
    %52 = arith.truncf %51 : vector<2x8x8xf32> to vector<2x8x8xbf16>
    %53 = vector.extract_strided_slice %22 {offsets = [0, 0, 8], sizes = [2, 8, 8], strides = [1, 1, 1]} : vector<2x8x32xbf16> to vector<2x8x8xbf16>
    "tpu.trace_start"() <{level = 10 : i32, message = "bqk,bke->bqe"}> : () -> ()
    %cst_16 = arith.constant dense<0.000000e+00> : vector<2x8x8xf32>
    %54 = tpu.matmul %52, %53, %cst_16 {dimension_numbers = #tpu.dot_dimension_numbers<[2], [1], [1], [2], [0, 0, 0, 1, 1, 2], [0], [0]>} : vector<2x8x8xbf16>, vector<2x8x8xbf16>, vector<2x8x8xf32> -> vector<2x8x8xf32>
    "tpu.trace_stop"() : () -> ()
    %55 = vector.extract_strided_slice %18 {offsets = [0, 0, 16], sizes = [2, 8, 8], strides = [1, 1, 1]} : vector<2x8x32xbf16> to vector<2x8x8xbf16>
    %56 = vector.extract_strided_slice %20 {offsets = [0, 0, 16], sizes = [2, 8, 8], strides = [1, 1, 1]} : vector<2x8x32xbf16> to vector<2x8x8xbf16>
    "tpu.trace_start"() <{level = 10 : i32, message = "bqe,bke->bqk"}> : () -> ()
    %cst_17 = arith.constant dense<0.000000e+00> : vector<2x8x8xf32>
    %57 = tpu.matmul %55, %56, %cst_17 {dimension_numbers = #tpu.dot_dimension_numbers<[2], [2], [1], [1], [0, 0, 0, 1, 1, 1], [0], [0]>} : vector<2x8x8xbf16>, vector<2x8x8xbf16>, vector<2x8x8xf32> -> vector<2x8x8xf32>
    "tpu.trace_stop"() : () -> ()
    %cst_18 = arith.constant dense<0xFF800000> : vector<2x8xf32>
    %58 = vector.multi_reduction <maximumf>, %57, %cst_18 [2] : vector<2x8x8xf32> to vector<2x8xf32>
    %59 = vector.shape_cast %58 : vector<2x8xf32> to vector<2x8x1xf32>
    %60 = vector.broadcast %59 : vector<2x8x1xf32> to vector<2x8x8xf32>
    %61 = arith.subf %57, %60 : vector<2x8x8xf32>
    %62 = math.exp %61 : vector<2x8x8xf32>
    %cst_19 = arith.constant dense<0.000000e+00> : vector<2x8xf32>
    %63 = vector.multi_reduction <add>, %62, %cst_19 [2] : vector<2x8x8xf32> to vector<2x8xf32>
    %64 = vector.shape_cast %63 : vector<2x8xf32> to vector<2x8x1xf32>
    %65 = tpu.reciprocal %64 {approx = true} : vector<2x8x1xf32> -> vector<2x8x1xf32>
    %66 = vector.broadcast %65 : vector<2x8x1xf32> to vector<2x8x8xf32>
    %67 = arith.mulf %62, %66 : vector<2x8x8xf32>
    %68 = arith.truncf %67 : vector<2x8x8xf32> to vector<2x8x8xbf16>
    %69 = vector.extract_strided_slice %22 {offsets = [0, 0, 16], sizes = [2, 8, 8], strides = [1, 1, 1]} : vector<2x8x32xbf16> to vector<2x8x8xbf16>
    "tpu.trace_start"() <{level = 10 : i32, message = "bqk,bke->bqe"}> : () -> ()
    %cst_20 = arith.constant dense<0.000000e+00> : vector<2x8x8xf32>
    %70 = tpu.matmul %68, %69, %cst_20 {dimension_numbers = #tpu.dot_dimension_numbers<[2], [1], [1], [2], [0, 0, 0, 1, 1, 2], [0], [0]>} : vector<2x8x8xbf16>, vector<2x8x8xbf16>, vector<2x8x8xf32> -> vector<2x8x8xf32>
    "tpu.trace_stop"() : () -> ()
    %71 = vector.extract_strided_slice %18 {offsets = [0, 0, 24], sizes = [2, 8, 8], strides = [1, 1, 1]} : vector<2x8x32xbf16> to vector<2x8x8xbf16>
    %72 = vector.extract_strided_slice %20 {offsets = [0, 0, 24], sizes = [2, 8, 8], strides = [1, 1, 1]} : vector<2x8x32xbf16> to vector<2x8x8xbf16>
    "tpu.trace_start"() <{level = 10 : i32, message = "bqe,bke->bqk"}> : () -> ()
    %cst_21 = arith.constant dense<0.000000e+00> : vector<2x8x8xf32>
    %73 = tpu.matmul %71, %72, %cst_21 {dimension_numbers = #tpu.dot_dimension_numbers<[2], [2], [1], [1], [0, 0, 0, 1, 1, 1], [0], [0]>} : vector<2x8x8xbf16>, vector<2x8x8xbf16>, vector<2x8x8xf32> -> vector<2x8x8xf32>
    "tpu.trace_stop"() : () -> ()
    %cst_22 = arith.constant dense<0xFF800000> : vector<2x8xf32>
    %74 = vector.multi_reduction <maximumf>, %73, %cst_22 [2] : vector<2x8x8xf32> to vector<2x8xf32>
    %75 = vector.shape_cast %74 : vector<2x8xf32> to vector<2x8x1xf32>
    %76 = vector.broadcast %75 : vector<2x8x1xf32> to vector<2x8x8xf32>
    %77 = arith.subf %73, %76 : vector<2x8x8xf32>
    %78 = math.exp %77 : vector<2x8x8xf32>
    %cst_23 = arith.constant dense<0.000000e+00> : vector<2x8xf32>
    %79 = vector.multi_reduction <add>, %78, %cst_23 [2] : vector<2x8x8xf32> to vector<2x8xf32>
    %80 = vector.shape_cast %79 : vector<2x8xf32> to vector<2x8x1xf32>
    %81 = tpu.reciprocal %80 {approx = true} : vector<2x8x1xf32> -> vector<2x8x1xf32>
    %82 = vector.broadcast %81 : vector<2x8x1xf32> to vector<2x8x8xf32>
    %83 = arith.mulf %78, %82 : vector<2x8x8xf32>
    %84 = arith.truncf %83 : vector<2x8x8xf32> to vector<2x8x8xbf16>
    %85 = vector.extract_strided_slice %22 {offsets = [0, 0, 24], sizes = [2, 8, 8], strides = [1, 1, 1]} : vector<2x8x32xbf16> to vector<2x8x8xbf16>
    "tpu.trace_start"() <{level = 10 : i32, message = "bqk,bke->bqe"}> : () -> ()
    %cst_24 = arith.constant dense<0.000000e+00> : vector<2x8x8xf32>
    %86 = tpu.matmul %84, %85, %cst_24 {dimension_numbers = #tpu.dot_dimension_numbers<[2], [1], [1], [2], [0, 0, 0, 1, 1, 2], [0], [0]>} : vector<2x8x8xbf16>, vector<2x8x8xbf16>, vector<2x8x8xf32> -> vector<2x8x8xf32>
    "tpu.trace_stop"() : () -> ()
    %87 = tpu.concatenate %38, %54, %70, %86 in 2 : vector<2x8x8xf32>, vector<2x8x8xf32>, vector<2x8x8xf32>, vector<2x8x8xf32> -> vector<2x8x32xf32>
    %88 = vector.shape_cast %87 : vector<2x8x32xf32> to vector<16x32xf32>
    %89 = arith.truncf %88 : vector<16x32xf32> to vector<16x32xbf16>
    %c0_25 = arith.constant 0 : index
    %c0_26 = arith.constant 0 : index
    %c0_27 = arith.constant 0 : index
    %90 = vector.load %arg4[%c0_25, %c0_26, %c0_27] : memref<1x32x32xbf16, #tpu.memory_space<vmem>>, vector<1x32x32xbf16>
    %91 = vector.shape_cast %90 : vector<1x32x32xbf16> to vector<32x32xbf16>
    %cst_28 = arith.constant dense<0.000000e+00> : vector<16x32xf32>
    %92 = tpu.matmul %89, %91, %cst_28 {dimension_numbers = #tpu.dot_dimension_numbers<[1], [0], [0], [1], [0, 0, 1, 1], [], []>} : vector<16x32xbf16>, vector<32x32xbf16>, vector<16x32xf32> -> vector<16x32xf32>
    %c0_29 = arith.constant 0 : index
    %c0_30 = arith.constant 0 : index
    %c0_31 = arith.constant 0 : index
    %93 = vector.load %arg5[%c0_29, %c0_30, %c0_31] : memref<1x1x32xf32, #tpu.memory_space<vmem>>, vector<1x1x32xf32>
    %94 = vector.shape_cast %93 : vector<1x1x32xf32> to vector<1x32xf32>
    %95 = vector.broadcast %94 : vector<1x32xf32> to vector<16x32xf32>
    %96 = arith.addf %92, %95 : vector<16x32xf32>
    %97 = arith.addf %3, %96 : vector<16x32xf32>
    %c0_32 = arith.constant 0 : index
    %c0_33 = arith.constant 0 : index
    %c0_34 = arith.constant 0 : index
    %98 = vector.load %arg6[%c0_32, %c0_33, %c0_34] : memref<1x1x32xf32, #tpu.memory_space<vmem>>, vector<1x1x32xf32>
    %99 = vector.shape_cast %98 : vector<1x1x32xf32> to vector<1x32xf32>
    %c0_35 = arith.constant 0 : index
    %c0_36 = arith.constant 0 : index
    %c0_37 = arith.constant 0 : index
    %100 = vector.load %arg7[%c0_35, %c0_36, %c0_37] : memref<1x1x32xf32, #tpu.memory_space<vmem>>, vector<1x1x32xf32>
    %101 = vector.shape_cast %100 : vector<1x1x32xf32> to vector<1x32xf32>
    %cst_38 = arith.constant dense<0.000000e+00> : vector<16xf32>
    %102 = vector.multi_reduction <add>, %97, %cst_38 [1] : vector<16x32xf32> to vector<16xf32>
    %103 = vector.shape_cast %102 : vector<16xf32> to vector<16x1xf32>
    %cst_39 = arith.constant 3.200000e+01 : f32
    %104 = vector.broadcast %cst_39 : f32 to vector<16x1xf32>
    %105 = arith.divf %103, %104 : vector<16x1xf32>
    %106 = vector.broadcast %105 : vector<16x1xf32> to vector<16x32xf32>
    %107 = arith.subf %97, %106 : vector<16x32xf32>
    %108 = arith.mulf %107, %107 : vector<16x32xf32>
    %cst_40 = arith.constant dense<0.000000e+00> : vector<16xf32>
    %109 = vector.multi_reduction <add>, %108, %cst_40 [1] : vector<16x32xf32> to vector<16xf32>
    %110 = vector.shape_cast %109 : vector<16xf32> to vector<16x1xf32>
    %cst_41 = arith.constant 3.200000e+01 : f32
    %111 = vector.broadcast %cst_41 : f32 to vector<16x1xf32>
    %112 = arith.divf %110, %111 : vector<16x1xf32>
    %cst_42 = arith.constant 9.99999974E-6 : f32
    %113 = vector.broadcast %cst_42 : f32 to vector<16x1xf32>
    %114 = arith.addf %112, %113 : vector<16x1xf32>
    %115 = math.rsqrt %114 : vector<16x1xf32>
    %116 = vector.broadcast %115 : vector<16x1xf32> to vector<16x32xf32>
    %117 = arith.mulf %107, %116 : vector<16x32xf32>
    %118 = vector.broadcast %99 : vector<1x32xf32> to vector<16x32xf32>
    %119 = arith.mulf %117, %118 : vector<16x32xf32>
    %120 = vector.broadcast %101 : vector<1x32xf32> to vector<16x32xf32>
    %121 = arith.addf %119, %120 : vector<16x32xf32>
    %122 = arith.truncf %121 : vector<16x32xf32> to vector<16x32xbf16>
    %c0_43 = arith.constant 0 : index
    %c0_44 = arith.constant 0 : index
    %c0_45 = arith.constant 0 : index
    %123 = vector.load %arg8[%c0_43, %c0_44, %c0_45] : memref<1x32x2048xbf16, #tpu.memory_space<vmem>>, vector<1x32x2048xbf16>
    %124 = vector.shape_cast %123 : vector<1x32x2048xbf16> to vector<32x2048xbf16>
    %cst_46 = arith.constant dense<0.000000e+00> : vector<16x2048xf32>
    %125 = tpu.matmul %122, %124, %cst_46 {dimension_numbers = #tpu.dot_dimension_numbers<[1], [0], [0], [1], [0, 0, 1, 1], [], []>} : vector<16x32xbf16>, vector<32x2048xbf16>, vector<16x2048xf32> -> vector<16x2048xf32>
    %c0_47 = arith.constant 0 : index
    %c0_48 = arith.constant 0 : index
    %c0_49 = arith.constant 0 : index
    %126 = vector.load %arg9[%c0_47, %c0_48, %c0_49] : memref<1x1x2048xf32, #tpu.memory_space<vmem>>, vector<1x1x2048xf32>
    %127 = vector.shape_cast %126 : vector<1x1x2048xf32> to vector<1x2048xf32>
    %128 = vector.broadcast %127 : vector<1x2048xf32> to vector<16x2048xf32>
    %129 = arith.addf %125, %128 : vector<16x2048xf32>
    %cst_50 = arith.constant 0.000000e+00 : f32
    %130 = vector.broadcast %cst_50 : f32 to vector<16x2048xf32>
    %131 = arith.maximumf %129, %130 : vector<16x2048xf32>
    %132 = arith.truncf %131 : vector<16x2048xf32> to vector<16x2048xbf16>
    %c0_51 = arith.constant 0 : index
    %c0_52 = arith.constant 0 : index
    %c0_53 = arith.constant 0 : index
    %133 = vector.load %arg10[%c0_51, %c0_52, %c0_53] : memref<1x2048x32xbf16, #tpu.memory_space<vmem>>, vector<1x2048x32xbf16>
    %134 = vector.shape_cast %133 : vector<1x2048x32xbf16> to vector<2048x32xbf16>
    %cst_54 = arith.constant dense<0.000000e+00> : vector<16x32xf32>
    %135 = tpu.matmul %132, %134, %cst_54 {dimension_numbers = #tpu.dot_dimension_numbers<[1], [0], [0], [1], [0, 0, 1, 1], [], []>} : vector<16x2048xbf16>, vector<2048x32xbf16>, vector<16x32xf32> -> vector<16x32xf32>
    %c0_55 = arith.constant 0 : index
    %c0_56 = arith.constant 0 : index
    %c0_57 = arith.constant 0 : index
    %136 = vector.load %arg11[%c0_55, %c0_56, %c0_57] : memref<1x1x32xf32, #tpu.memory_space<vmem>>, vector<1x1x32xf32>
    %137 = vector.shape_cast %136 : vector<1x1x32xf32> to vector<1x32xf32>
    %138 = vector.broadcast %137 : vector<1x32xf32> to vector<16x32xf32>
    %139 = arith.addf %135, %138 : vector<16x32xf32>
    %140 = arith.addf %121, %139 : vector<16x32xf32>
    %c0_58 = arith.constant 0 : index
    %c0_59 = arith.constant 0 : index
    %c0_60 = arith.constant 0 : index
    %141 = vector.load %arg12[%c0_58, %c0_59, %c0_60] : memref<1x1x32xf32, #tpu.memory_space<vmem>>, vector<1x1x32xf32>
    %142 = vector.shape_cast %141 : vector<1x1x32xf32> to vector<1x32xf32>
    %c0_61 = arith.constant 0 : index
    %c0_62 = arith.constant 0 : index
    %c0_63 = arith.constant 0 : index
    %143 = vector.load %arg13[%c0_61, %c0_62, %c0_63] : memref<1x1x32xf32, #tpu.memory_space<vmem>>, vector<1x1x32xf32>
    %144 = vector.shape_cast %143 : vector<1x1x32xf32> to vector<1x32xf32>
    %cst_64 = arith.constant dense<0.000000e+00> : vector<16xf32>
    %145 = vector.multi_reduction <add>, %140, %cst_64 [1] : vector<16x32xf32> to vector<16xf32>
    %146 = vector.shape_cast %145 : vector<16xf32> to vector<16x1xf32>
    %cst_65 = arith.constant 3.200000e+01 : f32
    %147 = vector.broadcast %cst_65 : f32 to vector<16x1xf32>
    %148 = arith.divf %146, %147 : vector<16x1xf32>
    %149 = vector.broadcast %148 : vector<16x1xf32> to vector<16x32xf32>
    %150 = arith.subf %140, %149 : vector<16x32xf32>
    %151 = arith.mulf %150, %150 : vector<16x32xf32>
    %cst_66 = arith.constant dense<0.000000e+00> : vector<16xf32>
    %152 = vector.multi_reduction <add>, %151, %cst_66 [1] : vector<16x32xf32> to vector<16xf32>
    %153 = vector.shape_cast %152 : vector<16xf32> to vector<16x1xf32>
    %cst_67 = arith.constant 3.200000e+01 : f32
    %154 = vector.broadcast %cst_67 : f32 to vector<16x1xf32>
    %155 = arith.divf %153, %154 : vector<16x1xf32>
    %cst_68 = arith.constant 9.99999974E-6 : f32
    %156 = vector.broadcast %cst_68 : f32 to vector<16x1xf32>
    %157 = arith.addf %155, %156 : vector<16x1xf32>
    %158 = math.rsqrt %157 : vector<16x1xf32>
    %159 = vector.broadcast %158 : vector<16x1xf32> to vector<16x32xf32>
    %160 = arith.mulf %150, %159 : vector<16x32xf32>
    %161 = vector.broadcast %142 : vector<1x32xf32> to vector<16x32xf32>
    %162 = arith.mulf %160, %161 : vector<16x32xf32>
    %163 = vector.broadcast %144 : vector<1x32xf32> to vector<16x32xf32>
    %164 = arith.addf %162, %163 : vector<16x32xf32>
    %c0_69 = arith.constant 0 : index
    %c0_70 = arith.constant 0 : index
    %165 = vector.load %arg14[%c0_69, %c0_70] : memref<16x32xf32, #tpu.memory_space<vmem>>, vector<16x32xf32>
    tpu.vector_store %arg14[%c0_69, %c0_70], %164 {strides = array<i32>} : memref<16x32xf32, #tpu.memory_space<vmem>>, vector<16x32xf32>,
    return
  }
  func.func @transform_0(%arg0: i32) -> (i32, i32) {
    %c0_i32 = arith.constant 0 : i32
    %c0_i32_0 = arith.constant 0 : i32
    %c0_i32_1 = arith.constant 0 : i32
    return %c0_i32, %c0_i32_0 : i32, i32
  }
  func.func @transform_1(%arg0: i32) -> (i32, i32, i32) {
    %c0_i32 = arith.constant 0 : i32
    %c0_i32_0 = arith.constant 0 : i32
    %c0_i32_1 = arith.constant 0 : i32
    return %arg0, %c0_i32, %c0_i32_0 : i32, i32, i32
  }
  func.func @transform_2(%arg0: i32) -> (i32, i32, i32) {
    %c0_i32 = arith.constant 0 : i32
    %c0_i32_0 = arith.constant 0 : i32
    %c0_i32_1 = arith.constant 0 : i32
    return %arg0, %c0_i32, %c0_i32_0 : i32, i32, i32
  }
  func.func @transform_3(%arg0: i32) -> (i32, i32, i32) {
    %c0_i32 = arith.constant 0 : i32
    %c0_i32_0 = arith.constant 0 : i32
    %c0_i32_1 = arith.constant 0 : i32
    return %arg0, %c0_i32, %c0_i32_0 : i32, i32, i32
  }
  func.func @transform_4(%arg0: i32) -> (i32, i32, i32) {
    %c0_i32 = arith.constant 0 : i32
    %c0_i32_0 = arith.constant 0 : i32
    %c0_i32_1 = arith.constant 0 : i32
    return %arg0, %c0_i32, %c0_i32_0 : i32, i32, i32
  }
  func.func @transform_5(%arg0: i32) -> (i32, i32, i32) {
    %c0_i32 = arith.constant 0 : i32
    %c0_i32_0 = arith.constant 0 : i32
    %c0_i32_1 = arith.constant 0 : i32
    return %arg0, %c0_i32, %c0_i32_0 : i32, i32, i32
  }
  func.func @transform_6(%arg0: i32) -> (i32, i32, i32) {
    %c0_i32 = arith.constant 0 : i32
    %c0_i32_0 = arith.constant 0 : i32
    %c0_i32_1 = arith.constant 0 : i32
    return %arg0, %c0_i32, %c0_i32_0 : i32, i32, i32
  }
  func.func @transform_7(%arg0: i32) -> (i32, i32, i32) {
    %c0_i32 = arith.constant 0 : i32
    %c0_i32_0 = arith.constant 0 : i32
    %c0_i32_1 = arith.constant 0 : i32
    return %arg0, %c0_i32, %c0_i32_0 : i32, i32, i32
  }
  func.func @transform_8(%arg0: i32) -> (i32, i32, i32) {
    %c0_i32 = arith.constant 0 : i32
    %c0_i32_0 = arith.constant 0 : i32
    %c0_i32_1 = arith.constant 0 : i32
    return %arg0, %c0_i32, %c0_i32_0 : i32, i32, i32
  }
  func.func @transform_9(%arg0: i32) -> (i32, i32, i32) {
    %c0_i32 = arith.constant 0 : i32
    %c0_i32_0 = arith.constant 0 : i32
    %c0_i32_1 = arith.constant 0 : i32
    return %arg0, %c0_i32, %c0_i32_0 : i32, i32, i32
  }
  func.func @transform_10(%arg0: i32) -> (i32, i32, i32) {
    %c0_i32 = arith.constant 0 : i32
    %c0_i32_0 = arith.constant 0 : i32
    %c0_i32_1 = arith.constant 0 : i32
    return %arg0, %c0_i32, %c0_i32_0 : i32, i32, i32
  }
  func.func @transform_11(%arg0: i32) -> (i32, i32, i32) {
    %c0_i32 = arith.constant 0 : i32
    %c0_i32_0 = arith.constant 0 : i32
    %c0_i32_1 = arith.constant 0 : i32
    return %arg0, %c0_i32, %c0_i32_0 : i32, i32, i32
  }
  func.func @transform_12(%arg0: i32) -> (i32, i32, i32) {
    %c0_i32 = arith.constant 0 : i32
    %c0_i32_0 = arith.constant 0 : i32
    %c0_i32_1 = arith.constant 0 : i32
    return %arg0, %c0_i32, %c0_i32_0 : i32, i32, i32
  }
  func.func @transform_13(%arg0: i32) -> (i32, i32) {
    %c0_i32 = arith.constant 0 : i32
    %c0_i32_0 = arith.constant 0 : i32
    %c0_i32_1 = arith.constant 0 : i32
    return %c0_i32, %c0_i32_0 : i32, i32
  }
}

</mosaic_0001>

<llo_original>
// kernel: tpu_custom_call.1
$region0: #{tpu_custom_call.1}
  #allocation0 [shape = 'u32[]', space=smem, size = 0x4, offset = 0x4, fixed_abs, tag = 'smem constant byte address 0x4 - core index']
  #allocation1 [shape = 'u32[144,128]{1,0:T(1,128)}', space=vmem, size = 0x12000, scoped, tag = 'internal scratch']
  %s0 = inlined_call_operand.vmem [shape: f32[16,32], index: 0, kind: input, shape index: {}]
  %s1 = inlined_call_operand.vmem [shape: bf16[2,32,96], index: 1, kind: input, shape index: {}]
  %s2 = inlined_call_operand.vmem [shape: f32[2,1,96], index: 2, kind: input, shape index: {}]
  %s3 = inlined_call_operand.vmem [shape: bf16[2,32,32], index: 3, kind: input, shape index: {}]
  %s4 = inlined_call_operand.vmem [shape: f32[2,1,32], index: 4, kind: input, shape index: {}]
  %s5 = inlined_call_operand.vmem [shape: f32[2,1,32], index: 5, kind: input, shape index: {}]
  %s6 = inlined_call_operand.vmem [shape: f32[2,1,32], index: 6, kind: input, shape index: {}]
  %s7 = inlined_call_operand.vmem [shape: bf16[2,32,2048], index: 7, kind: input, shape index: {}]
  %s8 = inlined_call_operand.vmem [shape: f32[2,1,2048], index: 8, kind: input, shape index: {}]
  %s9 = inlined_call_operand.vmem [shape: bf16[2,2048,32], index: 9, kind: input, shape index: {}]
  %s10 = inlined_call_operand.vmem [shape: f32[2,1,32], index: 10, kind: input, shape index: {}]
  %s11 = inlined_call_operand.vmem [shape: f32[2,1,32], index: 11, kind: input, shape index: {}]
  %s12 = inlined_call_operand.vmem [shape: f32[2,1,32], index: 12, kind: input, shape index: {}]
  %s13 = inlined_call_operand.hbm [shape: f32[16,32], index: 13, kind: output, shape index: {}]
  %s14 = sld [smem:[#allocation0]]
  $region89: #{tpu_custom_call.1} parent=0
    _
  %s16 = ssub.s32 1, %s14
  %s17 = scalar_select 0, %s16, %s14
  $region1: #{tpu_custom_call.1} parent=0
    #allocation2 [shape = 'u8[8192]{0}', space=vmem, size = 0x2000, scoped, tag = 'output window, operand 0, single buffered']
    #allocation3 [shape = 's32[2]{0}', space=sflag, size = 0x8, scoped, tag = 'scoped memory for tpu_custom_call.1']
    %18 = vsyncpa [#allocation3], 0
    loop: start=0, step=1, limit=4
    $region2: #{tpu_custom_call.1} parent=1 // loop_pre_header
      _
    $region3: #{tpu_custom_call.1} parent=1 // loop_header
      %s20 = sphi 0, %s24
      %p21 = scmp.ge.s32.totalorder %s20, 4
      %s28 = sphi 0, %s28
      %s30 = sphi 0, %s28
      %s31 = sphi 0, %s30
      %s45 = sphi 0, %s31
      %s51 = sphi 0, %s53
      %s54 = sphi 0, %s51
      %s55 = sphi 0, %s54
      %s71 = sphi 0, %s55
      %s77 = sphi 0, %s79
      %s80 = sphi 0, %s77
      %s81 = sphi 0, %s80
      %s97 = sphi 0, %s81
      %s103 = sphi 0, %s105
      %s106 = sphi 0, %s103
      %s107 = sphi 0, %s106
      %s123 = sphi 0, %s107
      %s129 = sphi 0, %s131
      %s132 = sphi 0, %s129
      %s133 = sphi 0, %s132
      %s149 = sphi 0, %s133
      %s155 = sphi 0, %s157
      %s158 = sphi 0, %s155
      %s159 = sphi 0, %s158
      %s175 = sphi 0, %s159
      %s181 = sphi 0, %s183
      %s184 = sphi 0, %s181
      %s185 = sphi 0, %s184
      %s201 = sphi 0, %s185
      %s207 = sphi 0, %s209
      %s210 = sphi 0, %s207
      %s211 = sphi 0, %s210
      %s227 = sphi 0, %s211
      %s233 = sphi 0, %s235
      %s236 = sphi 0, %s233
      %s237 = sphi 0, %s236
      %s253 = sphi 0, %s237
      %s259 = sphi 0, %s261
      %s262 = sphi 0, %s259
      %s263 = sphi 0, %s262
      %s279 = sphi 0, %s263
      %s285 = sphi 0, %s287
      %s288 = sphi 0, %s285
      %s289 = sphi 0, %s288
      %s305 = sphi 0, %s289
      %s311 = sphi 0, %s313
      %s314 = sphi 0, %s311
      %s315 = sphi 0, %s314
      %s331 = sphi 0, %s315
      %s337 = sphi 0, %s339
      %s340 = sphi 0, %s337
      %s341 = sphi 0, %s340
      %s357 = sphi 0, %s341
      %s361 = sphi 0, %s361
      %s363 = sphi 0, %s361
      %s364 = sphi 0, %s363
      %s378 = sphi 0, %s364
    $region4: #{tpu_custom_call.1} parent=1 // loop_header_branch
      %23 = sbr.rel (%p21) target = $region8
    $region5: #{tpu_custom_call.1} parent=1 // loop_body
      %s25 = ssub.s32 %s20, 1
      %s26 = ssub.s32 %s20, 2
      %s27 = sadd.s32 %s20, 1
      %s29 = sadd.s32 %s28, 1
      %p32 = scmp.eq.s32.totalorder %s20, 1
      %p33 = scmp.ne.s32.totalorder %s28, %s30
      %p34 = scmp.eq.s32.totalorder %s20, 0
      %p35 = por %p33, %p34
      %p36 = scmp.ne.s32.totalorder %s28, %s30
      %p37 = scmp.eq.s32.totalorder %s25, 1
      %p38 = por %p36, %p37
      %p39 = scmp.ne.s32.totalorder %s30, %s31
      %p40 = scmp.eq.s32.totalorder %s25, 0
      %p41 = por %p39, %p40
      %p42 = scmp.ne.s32.totalorder %s30, %s31
      %p43 = scmp.eq.s32.totalorder %s26, 1
      %p44 = por %p42, %p43
      %p46 = scmp.ne.s32.totalorder %s31, %s45
      %p47 = scmp.eq.s32.totalorder %s26, 0
      %p48 = por %p46, %p47
      %s49 = ssub.s32 %s20, %s27
      %p50 = scmp.eq.s32.totalorder %s49, 0
      %s52 = sadd.s32 %s51, 1
      %s53 = scalar_select %p50, %s51, %s52
      %p56 = pneg %p50
      %p57 = scmp.eq.s32.totalorder %s20, 1
      %p58 = por %p56, %p57
      %p59 = scmp.ne.s32.totalorder %s51, %s54
      %p60 = scmp.eq.s32.totalorder %s20, 0
      %p61 = por %p59, %p60
      %p62 = scmp.ne.s32.totalorder %s51, %s54
      %p63 = scmp.eq.s32.totalorder %s25, 1
      %p64 = por %p62, %p63
      %p65 = scmp.ne.s32.totalorder %s54, %s55
      %p66 = scmp.eq.s32.totalorder %s25, 0
      %p67 = por %p65, %p66
      %p68 = scmp.ne.s32.totalorder %s54, %s55
      %p69 = scmp.eq.s32.totalorder %s26, 1
      %p70 = por %p68, %p69
      %p72 = scmp.ne.s32.totalorder %s55, %s71
      %p73 = scmp.eq.s32.totalorder %s26, 0
      %p74 = por %p72, %p73
      %s75 = ssub.s32 %s20, %s27
      %p76 = scmp.eq.s32.totalorder %s75, 0
      %s78 = sadd.s32 %s77, 1
      %s79 = scalar_select %p76, %s77, %s78
      %p82 = pneg %p76
      %p83 = scmp.eq.s32.totalorder %s20, 1
      %p84 = por %p82, %p83
      %p85 = scmp.ne.s32.totalorder %s77, %s80
      %p86 = scmp.eq.s32.totalorder %s20, 0
      %p87 = por %p85, %p86
      %p88 = scmp.ne.s32.totalorder %s77, %s80
      %p89 = scmp.eq.s32.totalorder %s25, 1
      %p90 = por %p88, %p89
      %p91 = scmp.ne.s32.totalorder %s80, %s81
      %p92 = scmp.eq.s32.totalorder %s25, 0
      %p93 = por %p91, %p92
      %p94 = scmp.ne.s32.totalorder %s80, %s81
      %p95 = scmp.eq.s32.totalorder %s26, 1
      %p96 = por %p94, %p95
      %p98 = scmp.ne.s32.totalorder %s81, %s97
      %p99 = scmp.eq.s32.totalorder %s26, 0
      %p100 = por %p98, %p99
      %s101 = ssub.s32 %s20, %s27
      %p102 = scmp.eq.s32.totalorder %s101, 0
      %s104 = sadd.s32 %s103, 1
      %s105 = scalar_select %p102, %s103, %s104
      %p108 = pneg %p102
      %p109 = scmp.eq.s32.totalorder %s20, 1
      %p110 = por %p108, %p109
      %p111 = scmp.ne.s32.totalorder %s103, %s106
      %p112 = scmp.eq.s32.totalorder %s20, 0
      %p113 = por %p111, %p112
      %p114 = scmp.ne.s32.totalorder %s103, %s106
      %p115 = scmp.eq.s32.totalorder %s25, 1
      %p116 = por %p114, %p115
      %p117 = scmp.ne.s32.totalorder %s106, %s107
      %p118 = scmp.eq.s32.totalorder %s25, 0
      %p119 = por %p117, %p118
      %p120 = scmp.ne.s32.totalorder %s106, %s107
      %p121 = scmp.eq.s32.totalorder %s26, 1
      %p122 = por %p120, %p121
      %p124 = scmp.ne.s32.totalorder %s107, %s123
      %p125 = scmp.eq.s32.totalorder %s26, 0
      %p126 = por %p124, %p125
      %s127 = ssub.s32 %s20, %s27
      %p128 = scmp.eq.s32.totalorder %s127, 0
      %s130 = sadd.s32 %s129, 1
      %s131 = scalar_select %p128, %s129, %s130
      %p134 = pneg %p128
      %p135 = scmp.eq.s32.totalorder %s20, 1
      %p136 = por %p134, %p135
      %p137 = scmp.ne.s32.totalorder %s129, %s132
      %p138 = scmp.eq.s32.totalorder %s20, 0
      %p139 = por %p137, %p138
      %p140 = scmp.ne.s32.totalorder %s129, %s132
      %p141 = scmp.eq.s32.totalorder %s25, 1
      %p142 = por %p140, %p141
      %p143 = scmp.ne.s32.totalorder %s132, %s133
      %p144 = scmp.eq.s32.totalorder %s25, 0
      %p145 = por %p143, %p144
      %p146 = scmp.ne.s32.totalorder %s132, %s133
      %p147 = scmp.eq.s32.totalorder %s26, 1
      %p148 = por %p146, %p147
      %p150 = scmp.ne.s32.totalorder %s133, %s149
      %p151 = scmp.eq.s32.totalorder %s26, 0
      %p152 = por %p150, %p151
      %s153 = ssub.s32 %s20, %s27
      %p154 = scmp.eq.s32.totalorder %s153, 0
      %s156 = sadd.s32 %s155, 1
      %s157 = scalar_select %p154, %s155, %s156
      %p160 = pneg %p154
      %p161 = scmp.eq.s32.totalorder %s20, 1
      %p162 = por %p160, %p161
      %p163 = scmp.ne.s32.totalorder %s155, %s158
      %p164 = scmp.eq.s32.totalorder %s20, 0
      %p165 = por %p163, %p164
      %p166 = scmp.ne.s32.totalorder %s155, %s158
      %p167 = scmp.eq.s32.totalorder %s25, 1
      %p168 = por %p166, %p167
      %p169 = scmp.ne.s32.totalorder %s158, %s159
      %p170 = scmp.eq.s32.totalorder %s25, 0
      %p171 = por %p169, %p170
      %p172 = scmp.ne.s32.totalorder %s158, %s159
      %p173 = scmp.eq.s32.totalorder %s26, 1
      %p174 = por %p172, %p173
      %p176 = scmp.ne.s32.totalorder %s159, %s175
      %p177 = scmp.eq.s32.totalorder %s26, 0
      %p178 = por %p176, %p177
      %s179 = ssub.s32 %s20, %s27
      %p180 = scmp.eq.s32.totalorder %s179, 0
      %s182 = sadd.s32 %s181, 1
      %s183 = scalar_select %p180, %s181, %s182
      %p186 = pneg %p180
      %p187 = scmp.eq.s32.totalorder %s20, 1
      %p188 = por %p186, %p187
      %p189 = scmp.ne.s32.totalorder %s181, %s184
      %p190 = scmp.eq.s32.totalorder %s20, 0
      %p191 = por %p189, %p190
      %p192 = scmp.ne.s32.totalorder %s181, %s184
      %p193 = scmp.eq.s32.totalorder %s25, 1
      %p194 = por %p192, %p193
      %p195 = scmp.ne.s32.totalorder %s184, %s185
      %p196 = scmp.eq.s32.totalorder %s25, 0
      %p197 = por %p195, %p196
      %p198 = scmp.ne.s32.totalorder %s184, %s185
      %p199 = scmp.eq.s32.totalorder %s26, 1
      %p200 = por %p198, %p199
      %p202 = scmp.ne.s32.totalorder %s185, %s201
      %p203 = scmp.eq.s32.totalorder %s26, 0
      %p204 = por %p202, %p203
      %s205 = ssub.s32 %s20, %s27
      %p206 = scmp.eq.s32.totalorder %s205, 0
      %s208 = sadd.s32 %s207, 1
      %s209 = scalar_select %p206, %s207, %s208
      %p212 = pneg %p206
      %p213 = scmp.eq.s32.totalorder %s20, 1
      %p214 = por %p212, %p213
      %p215 = scmp.ne.s32.totalorder %s207, %s210
      %p216 = scmp.eq.s32.totalorder %s20, 0
      %p217 = por %p215, %p216
      %p218 = scmp.ne.s32.totalorder %s207, %s210
      %p219 = scmp.eq.s32.totalorder %s25, 1
      %p220 = por %p218, %p219
      %p221 = scmp.ne.s32.totalorder %s210, %s211
      %p222 = scmp.eq.s32.totalorder %s25, 0
      %p223 = por %p221, %p222
      %p224 = scmp.ne.s32.totalorder %s210, %s211
      %p225 = scmp.eq.s32.totalorder %s26, 1
      %p226 = por %p224, %p225
      %p228 = scmp.ne.s32.totalorder %s211, %s227
      %p229 = scmp.eq.s32.totalorder %s26, 0
      %p230 = por %p228, %p229
      %s231 = ssub.s32 %s20, %s27
      %p232 = scmp.eq.s32.totalorder %s231, 0
      %s234 = sadd.s32 %s233, 1
      %s235 = scalar_select %p232, %s233, %s234
      %p238 = pneg %p232
      %p239 = scmp.eq.s32.totalorder %s20, 1
      %p240 = por %p238, %p239
      %p241 = scmp.ne.s32.totalorder %s233, %s236
      %p242 = scmp.eq.s32.totalorder %s20, 0
      %p243 = por %p241, %p242
      %p244 = scmp.ne.s32.totalorder %s233, %s236
      %p245 = scmp.eq.s32.totalorder %s25, 1
      %p246 = por %p244, %p245
      %p247 = scmp.ne.s32.totalorder %s236, %s237
      %p248 = scmp.eq.s32.totalorder %s25, 0
      %p249 = por %p247, %p248
      %p250 = scmp.ne.s32.totalorder %s236, %s237
      %p251 = scmp.eq.s32.totalorder %s26, 1
      %p252 = por %p250, %p251
      %p254 = scmp.ne.s32.totalorder %s237, %s253
      %p255 = scmp.eq.s32.totalorder %s26, 0
      %p256 = por %p254, %p255
      %s257 = ssub.s32 %s20, %s27
      %p258 = scmp.eq.s32.totalorder %s257, 0
      %s260 = sadd.s32 %s259, 1
      %s261 = scalar_select %p258, %s259, %s260
      %p264 = pneg %p258
      %p265 = scmp.eq.s32.totalorder %s20, 1
      %p266 = por %p264, %p265
      %p267 = scmp.ne.s32.totalorder %s259, %s262
      %p268 = scmp.eq.s32.totalorder %s20, 0
      %p269 = por %p267, %p268
      %p270 = scmp.ne.s32.totalorder %s259, %s262
      %p271 = scmp.eq.s32.totalorder %s25, 1
      %p272 = por %p270, %p271
      %p273 = scmp.ne.s32.totalorder %s262, %s263
      %p274 = scmp.eq.s32.totalorder %s25, 0
      %p275 = por %p273, %p274
      %p276 = scmp.ne.s32.totalorder %s262, %s263
      %p277 = scmp.eq.s32.totalorder %s26, 1
      %p278 = por %p276, %p277
      %p280 = scmp.ne.s32.totalorder %s263, %s279
      %p281 = scmp.eq.s32.totalorder %s26, 0
      %p282 = por %p280, %p281
      %s283 = ssub.s32 %s20, %s27
      %p284 = scmp.eq.s32.totalorder %s283, 0
      %s286 = sadd.s32 %s285, 1
      %s287 = scalar_select %p284, %s285, %s286
      %p290 = pneg %p284
      %p291 = scmp.eq.s32.totalorder %s20, 1
      %p292 = por %p290, %p291
      %p293 = scmp.ne.s32.totalorder %s285, %s288
      %p294 = scmp.eq.s32.totalorder %s20, 0
      %p295 = por %p293, %p294
      %p296 = scmp.ne.s32.totalorder %s285, %s288
      %p297 = scmp.eq.s32.totalorder %s25, 1
      %p298 = por %p296, %p297
      %p299 = scmp.ne.s32.totalorder %s288, %s289
      %p300 = scmp.eq.s32.totalorder %s25, 0
      %p301 = por %p299, %p300
      %p302 = scmp.ne.s32.totalorder %s288, %s289
      %p303 = scmp.eq.s32.totalorder %s26, 1
      %p304 = por %p302, %p303
      %p306 = scmp.ne.s32.totalorder %s289, %s305
      %p307 = scmp.eq.s32.totalorder %s26, 0
      %p308 = por %p306, %p307
      %s309 = ssub.s32 %s20, %s27
      %p310 = scmp.eq.s32.totalorder %s309, 0
      %s312 = sadd.s32 %s311, 1
      %s313 = scalar_select %p310, %s311, %s312
      %p316 = pneg %p310
      %p317 = scmp.eq.s32.totalorder %s20, 1
      %p318 = por %p316, %p317
      %p319 = scmp.ne.s32.totalorder %s311, %s314
      %p320 = scmp.eq.s32.totalorder %s20, 0
      %p321 = por %p319, %p320
      %p322 = scmp.ne.s32.totalorder %s311, %s314
      %p323 = scmp.eq.s32.totalorder %s25, 1
      %p324 = por %p322, %p323
      %p325 = scmp.ne.s32.totalorder %s314, %s315
      %p326 = scmp.eq.s32.totalorder %s25, 0
      %p327 = por %p325, %p326
      %p328 = scmp.ne.s32.totalorder %s314, %s315
      %p329 = scmp.eq.s32.totalorder %s26, 1
      %p330 = por %p328, %p329
      %p332 = scmp.ne.s32.totalorder %s315, %s331
      %p333 = scmp.eq.s32.totalorder %s26, 0
      %p334 = por %p332, %p333
      %s335 = ssub.s32 %s20, %s27
      %p336 = scmp.eq.s32.totalorder %s335, 0
      %s338 = sadd.s32 %s337, 1
      %s339 = scalar_select %p336, %s337, %s338
      %p342 = pneg %p336
      %p343 = scmp.eq.s32.totalorder %s20, 1
      %p344 = por %p342, %p343
      %p345 = scmp.ne.s32.totalorder %s337, %s340
      %p346 = scmp.eq.s32.totalorder %s20, 0
      %p347 = por %p345, %p346
      %p348 = scmp.ne.s32.totalorder %s337, %s340
      %p349 = scmp.eq.s32.totalorder %s25, 1
      %p350 = por %p348, %p349
      %p351 = scmp.ne.s32.totalorder %s340, %s341
      %p352 = scmp.eq.s32.totalorder %s25, 0
      %p353 = por %p351, %p352
      %p354 = scmp.ne.s32.totalorder %s340, %s341
      %p355 = scmp.eq.s32.totalorder %s26, 1
      %p356 = por %p354, %p355
      %p358 = scmp.ne.s32.totalorder %s341, %s357
      %p359 = scmp.eq.s32.totalorder %s26, 0
      %p360 = por %p358, %p359
      %s362 = sadd.s32 %s361, 1
      %p365 = scmp.eq.s32.totalorder %s20, 1
      %p366 = scmp.ne.s32.totalorder %s361, %s363
      %p367 = scmp.eq.s32.totalorder %s20, 0
      %p368 = por %p366, %p367
      %p369 = scmp.ne.s32.totalorder %s361, %s363
      %p370 = scmp.eq.s32.totalorder %s25, 1
      %p371 = por %p369, %p370
      %p372 = scmp.ne.s32.totalorder %s363, %s364
      %p373 = scmp.eq.s32.totalorder %s25, 0
      %p374 = por %p372, %p373
      %p375 = scmp.ne.s32.totalorder %s363, %s364
      %p376 = scmp.eq.s32.totalorder %s26, 1
      %p377 = por %p375, %p376
      %p379 = scmp.ne.s32.totalorder %s364, %s378
      %p380 = scmp.eq.s32.totalorder %s26, 0
      %p381 = por %p379, %p380
      %p382 = scmp.le.s32.totalorder 1, %s20
      %p383 = scmp.lt.s32.totalorder %s20, 3
      %p384 = pnand %p382, %p383
      %p385 = pneg %p384
      // Predicated region
      $region9: #{tpu_custom_call.1} parent=5 // pred_check
        _
      $region10: #{tpu_custom_call.1} parent=5 // pred_check_branch
        %387 = sbr.rel (%p384) target = $region12
      $region11: #{tpu_custom_call.1} parent=5 // pred_region
        %s388 = ssub.s32 %s20, 1
        // Predicated region
        $region13: #{tpu_custom_call.1} parent=11 // pred_check
          %p389 = pneg %p41
        $region14: #{tpu_custom_call.1} parent=11 // pred_check_branch
          %391 = sbr.rel (%p389) target = $region16
        $region15: #{tpu_custom_call.1} parent=11 // pred_region
          _
        $region16: #{tpu_custom_call.1} parent=11 // pred_fallthru
          _
      $region12: #{tpu_custom_call.1} parent=5 // pred_fallthru
        _
      %p392 = scmp.lt.s32.totalorder %s20, 2
      // Predicated region
      $region17: #{tpu_custom_call.1} parent=5 // pred_check
        %p393 = pneg %p392
      $region18: #{tpu_custom_call.1} parent=5 // pred_check_branch
        %395 = sbr.rel (%p393) target = $region20
      $region19: #{tpu_custom_call.1} parent=5 // pred_region
        // Predicated region
        $region21: #{tpu_custom_call.1} parent=19 // pred_check
          %p396 = pneg %p61
        $region22: #{tpu_custom_call.1} parent=19 // pred_check_branch
          %398 = sbr.rel (%p396) target = $region24
        $region23: #{tpu_custom_call.1} parent=19 // pred_region
          %p399 = scmp.lt.s32.totalorder %s20, 1
          %s400 = scalar_select %p399, %s20, 1
          %s401 = smul.addr %s400, 4
          %s402 = smul.addr %s401, 4
          %s403 = scalar_lea.vmem %s1, %s402
        $region24: #{tpu_custom_call.1} parent=19 // pred_fallthru
          _
        // Predicated region
        $region25: #{tpu_custom_call.1} parent=19 // pred_check
          %p404 = pneg %p87
        $region26: #{tpu_custom_call.1} parent=19 // pred_check_branch
          %406 = sbr.rel (%p404) target = $region28
        $region27: #{tpu_custom_call.1} parent=19 // pred_region
          %p407 = scmp.lt.s32.totalorder %s20, 1
          %s408 = scalar_select %p407, %s20, 1
          %s409 = scalar_lea.vmem %s2, %s408
        $region28: #{tpu_custom_call.1} parent=19 // pred_fallthru
          _
        // Predicated region
        $region29: #{tpu_custom_call.1} parent=19 // pred_check
          %p410 = pneg %p113
        $region30: #{tpu_custom_call.1} parent=19 // pred_check_branch
          %412 = sbr.rel (%p410) target = $region32
        $region31: #{tpu_custom_call.1} parent=19 // pred_region
          %p413 = scmp.lt.s32.totalorder %s20, 1
          %s414 = scalar_select %p413, %s20, 1
          %s415 = smul.addr %s414, 4
          %s416 = smul.addr %s415, 4
          %s417 = scalar_lea.vmem %s3, %s416
        $region32: #{tpu_custom_call.1} parent=19 // pred_fallthru
          _
        // Predicated region
        $region33: #{tpu_custom_call.1} parent=19 // pred_check
          %p418 = pneg %p139
        $region34: #{tpu_custom_call.1} parent=19 // pred_check_branch
          %420 = sbr.rel (%p418) target = $region36
        $region35: #{tpu_custom_call.1} parent=19 // pred_region
          %p421 = scmp.lt.s32.totalorder %s20, 1
          %s422 = scalar_select %p421, %s20, 1
          %s423 = scalar_lea.vmem %s4, %s422
        $region36: #{tpu_custom_call.1} parent=19 // pred_fallthru
          _
        // Predicated region
        $region37: #{tpu_custom_call.1} parent=19 // pred_check
          %p424 = pneg %p165
        $region38: #{tpu_custom_call.1} parent=19 // pred_check_branch
          %426 = sbr.rel (%p424) target = $region40
        $region39: #{tpu_custom_call.1} parent=19 // pred_region
          %p427 = scmp.lt.s32.totalorder %s20, 1
          %s428 = scalar_select %p427, %s20, 1
          %s429 = scalar_lea.vmem %s5, %s428
        $region40: #{tpu_custom_call.1} parent=19 // pred_fallthru
          _
        // Predicated region
        $region41: #{tpu_custom_call.1} parent=19 // pred_check
          %p430 = pneg %p191
        $region42: #{tpu_custom_call.1} parent=19 // pred_check_branch
          %432 = sbr.rel (%p430) target = $region44
        $region43: #{tpu_custom_call.1} parent=19 // pred_region
          %p433 = scmp.lt.s32.totalorder %s20, 1
          %s434 = scalar_select %p433, %s20, 1
          %s435 = scalar_lea.vmem %s6, %s434
        $region44: #{tpu_custom_call.1} parent=19 // pred_fallthru
          _
        // Predicated region
        $region45: #{tpu_custom_call.1} parent=19 // pred_check
          %p436 = pneg %p217
        $region46: #{tpu_custom_call.1} parent=19 // pred_check_branch
          %438 = sbr.rel (%p436) target = $region48
        $region47: #{tpu_custom_call.1} parent=19 // pred_region
          %p439 = scmp.lt.s32.totalorder %s20, 1
          %s440 = scalar_select %p439, %s20, 1
          %s441 = smul.addr %s440, 64
          %s442 = smul.addr %s441, 4
          %s443 = scalar_lea.vmem %s7, %s442
        $region48: #{tpu_custom_call.1} parent=19 // pred_fallthru
          _
        // Predicated region
        $region49: #{tpu_custom_call.1} parent=19 // pred_check
          %p444 = pneg %p243
        $region50: #{tpu_custom_call.1} parent=19 // pred_check_branch
          %446 = sbr.rel (%p444) target = $region52
        $region51: #{tpu_custom_call.1} parent=19 // pred_region
          %p447 = scmp.lt.s32.totalorder %s20, 1
          %s448 = scalar_select %p447, %s20, 1
          %s449 = smul.addr %s448, 16
          %s450 = scalar_lea.vmem %s8, %s449
        $region52: #{tpu_custom_call.1} parent=19 // pred_fallthru
          _
        // Predicated region
        $region53: #{tpu_custom_call.1} parent=19 // pred_check
          %p451 = pneg %p269
        $region54: #{tpu_custom_call.1} parent=19 // pred_check_branch
          %453 = sbr.rel (%p451) target = $region56
        $region55: #{tpu_custom_call.1} parent=19 // pred_region
          %p454 = scmp.lt.s32.totalorder %s20, 1
          %s455 = scalar_select %p454, %s20, 1
          %s456 = smul.addr %s455, 256
          %s457 = smul.addr %s456, 4
          %s458 = scalar_lea.vmem %s9, %s457
        $region56: #{tpu_custom_call.1} parent=19 // pred_fallthru
          _
        // Predicated region
        $region57: #{tpu_custom_call.1} parent=19 // pred_check
          %p459 = pneg %p295
        $region58: #{tpu_custom_call.1} parent=19 // pred_check_branch
          %461 = sbr.rel (%p459) target = $region60
        $region59: #{tpu_custom_call.1} parent=19 // pred_region
          %p462 = scmp.lt.s32.totalorder %s20, 1
          %s463 = scalar_select %p462, %s20, 1
          %s464 = scalar_lea.vmem %s10, %s463
        $region60: #{tpu_custom_call.1} parent=19 // pred_fallthru
          _
        // Predicated region
        $region61: #{tpu_custom_call.1} parent=19 // pred_check
          %p465 = pneg %p321
        $region62: #{tpu_custom_call.1} parent=19 // pred_check_branch
          %467 = sbr.rel (%p465) target = $region64
        $region63: #{tpu_custom_call.1} parent=19 // pred_region
          %p468 = scmp.lt.s32.totalorder %s20, 1
          %s469 = scalar_select %p468, %s20, 1
          %s470 = scalar_lea.vmem %s11, %s469
        $region64: #{tpu_custom_call.1} parent=19 // pred_fallthru
          _
        // Predicated region
        $region65: #{tpu_custom_call.1} parent=19 // pred_check
          %p471 = pneg %p347
        $region66: #{tpu_custom_call.1} parent=19 // pred_check_branch
          %473 = sbr.rel (%p471) target = $region68
        $region67: #{tpu_custom_call.1} parent=19 // pred_region
          %p474 = scmp.lt.s32.totalorder %s20, 1
          %s475 = scalar_select %p474, %s20, 1
          %s476 = scalar_lea.vmem %s12, %s475
        $region68: #{tpu_custom_call.1} parent=19 // pred_fallthru
          _
      $region20: #{tpu_custom_call.1} parent=5 // pred_fallthru
        _
      %p477 = scmp.le.s32.totalorder 1, %s20
      %p478 = scmp.lt.s32.totalorder %s20, 3
      %p479 = pnand %p477, %p478
      %p480 = pneg %p479
      // Predicated region
      $region69: #{tpu_custom_call.1} parent=5 // pred_check
        _
      $region70: #{tpu_custom_call.1} parent=5 // pred_check_branch
        %482 = sbr.rel (%p479) target = $region72
      $region71: #{tpu_custom_call.1} parent=5 // pred_region
        %s483 = ssub.s32 %s20, 1
        %p484 = pneg %p41
        %p485 = pneg %p38
        %p486 = scmp.lt.s32.totalorder %s25, 1
        %s487 = scalar_select %p486, %s25, 1
        %s488 = smul.addr %s487, 4
        %s489 = smul.addr %s488, 4
        %s490 = scalar_lea.vmem %s1, %s489
        %p491 = pneg %p67
        %p492 = pneg %p64
        %p493 = scmp.lt.s32.totalorder %s25, 1
        %s494 = scalar_select %p493, %s25, 1
        %s495 = scalar_lea.vmem %s2, %s494
        %p496 = pneg %p93
        %p497 = pneg %p90
        %p498 = scmp.lt.s32.totalorder %s25, 1
        %s499 = scalar_select %p498, %s25, 1
        %s500 = smul.addr %s499, 4
        %s501 = smul.addr %s500, 4
        %s502 = scalar_lea.vmem %s3, %s501
        %p503 = pneg %p119
        %p504 = pneg %p116
        %p505 = scmp.lt.s32.totalorder %s25, 1
        %s506 = scalar_select %p505, %s25, 1
        %s507 = scalar_lea.vmem %s4, %s506
        %p508 = pneg %p145
        %p509 = pneg %p142
        %p510 = scmp.lt.s32.totalorder %s25, 1
        %s511 = scalar_select %p510, %s25, 1
        %s512 = scalar_lea.vmem %s5, %s511
        %p513 = pneg %p171
        %p514 = pneg %p168
        %p515 = scmp.lt.s32.totalorder %s25, 1
        %s516 = scalar_select %p515, %s25, 1
        %s517 = scalar_lea.vmem %s6, %s516
        %p518 = pneg %p197
        %p519 = pneg %p194
        %p520 = scmp.lt.s32.totalorder %s25, 1
        %s521 = scalar_select %p520, %s25, 1
        %s522 = smul.addr %s521, 64
        %s523 = smul.addr %s522, 4
        %s524 = scalar_lea.vmem %s7, %s523
        %p525 = pneg %p223
        %p526 = pneg %p220
        %p527 = scmp.lt.s32.totalorder %s25, 1
        %s528 = scalar_select %p527, %s25, 1
        %s529 = smul.addr %s528, 16
        %s530 = scalar_lea.vmem %s8, %s529
        %p531 = pneg %p249
        %p532 = pneg %p246
        %p533 = scmp.lt.s32.totalorder %s25, 1
        %s534 = scalar_select %p533, %s25, 1
        %s535 = smul.addr %s534, 256
        %s536 = smul.addr %s535, 4
        %s537 = scalar_lea.vmem %s9, %s536
        %p538 = pneg %p275
        %p539 = pneg %p272
        %p540 = scmp.lt.s32.totalorder %s25, 1
        %s541 = scalar_select %p540, %s25, 1
        %s542 = scalar_lea.vmem %s10, %s541
        %p543 = pneg %p301
        %p544 = pneg %p298
        %p545 = scmp.lt.s32.totalorder %s25, 1
        %s546 = scalar_select %p545, %s25, 1
        %s547 = scalar_lea.vmem %s11, %s546
        %p548 = pneg %p327
        %p549 = pneg %p324
        %p550 = scmp.lt.s32.totalorder %s25, 1
        %s551 = scalar_select %p550, %s25, 1
        %s552 = scalar_lea.vmem %s12, %s551
        %p553 = pneg %p353
        %p554 = pneg %p350
        %p555 = pneg %p374
        %p556 = pneg %p371
        %p557 = scmp.lt.s32.totalorder %s25, 1
        %s558 = scalar_select %p557, %s25, 1
        %s559 = smul.addr %s558, 4
        %s560 = smul.addr %s559, 4
        %s561 = scalar_lea.vmem %s1, %s560
        %p562 = scmp.lt.s32.totalorder %s25, 1
        %s563 = scalar_select %p562, %s25, 1
        %s564 = scalar_lea.vmem %s2, %s563
        %p565 = scmp.lt.s32.totalorder %s25, 1
        %s566 = scalar_select %p565, %s25, 1
        %s567 = smul.addr %s566, 4
        %s568 = smul.addr %s567, 4
        %s569 = scalar_lea.vmem %s3, %s568
        %p570 = scmp.lt.s32.totalorder %s25, 1
        %s571 = scalar_select %p570, %s25, 1
        %s572 = scalar_lea.vmem %s4, %s571
        %p573 = scmp.lt.s32.totalorder %s25, 1
        %s574 = scalar_select %p573, %s25, 1
        %s575 = scalar_lea.vmem %s5, %s574
        %p576 = scmp.lt.s32.totalorder %s25, 1
        %s577 = scalar_select %p576, %s25, 1
        %s578 = scalar_lea.vmem %s6, %s577
        %p579 = scmp.lt.s32.totalorder %s25, 1
        %s580 = scalar_select %p579, %s25, 1
        %s581 = smul.addr %s580, 64
        %s582 = smul.addr %s581, 4
        %s583 = scalar_lea.vmem %s7, %s582
        %p584 = scmp.lt.s32.totalorder %s25, 1
        %s585 = scalar_select %p584, %s25, 1
        %s586 = smul.addr %s585, 16
        %s587 = scalar_lea.vmem %s8, %s586
        %p588 = scmp.lt.s32.totalorder %s25, 1
        %s589 = scalar_select %p588, %s25, 1
        %s590 = smul.addr %s589, 256
        %s591 = smul.addr %s590, 4
        %s592 = scalar_lea.vmem %s9, %s591
        %p593 = scmp.lt.s32.totalorder %s25, 1
        %s594 = scalar_select %p593, %s25, 1
        %s595 = scalar_lea.vmem %s10, %s594
        %p596 = scmp.lt.s32.totalorder %s25, 1
        %s597 = scalar_select %p596, %s25, 1
        %s598 = scalar_lea.vmem %s11, %s597
        %p599 = scmp.lt.s32.totalorder %s25, 1
        %s600 = scalar_select %p599, %s25, 1
        %s601 = scalar_lea.vmem %s12, %s600
        %p603 = scmp.eq.s32.totalorder %s25, 0
        // Predicated region
        $region73: #{tpu_custom_call.1} parent=71 // pred_check
          %p604 = pneg %p603
        $region74: #{tpu_custom_call.1} parent=71 // pred_check_branch
          %606 = sbr.rel (%p604) target = $region76
        $region75: #{tpu_custom_call.1} parent=71 // pred_region
          %v607 = vld [vmem:[%s0] sm:$0xff]
          %v608 = vld [vmem:[%s0 + $0x8] sm:$0xff]
          %vm609 = vcmask 261120
          %610 = vst.msk [vmem:[#allocation2] sm:$0xff] %vm609, %v607
          %611 = vst.msk [vmem:[#allocation2 + $0x8] sm:$0xff] %vm609, %v608
        $region76: #{tpu_custom_call.1} parent=71 // pred_fallthru
          _
        %v612 = vld [vmem:[#allocation2] sm:$0xff]
        %v613 = vld [vmem:[#allocation2 + $0x8] sm:$0xff]
        %v614 = vpack.c.bf16 %v613, %v612
        %v615 = vld [vmem:[%s561] sm:$0xf]
        %v616 = vld [vmem:[%s561 + $0x4] sm:$0xf]
        %v617 = vld [vmem:[%s561 + $0x8] sm:$0xf]
        %v618 = vld [vmem:[%s561 + $0xc] sm:$0xf]
        %v619 = vld [vmem:[%s564] sm:$0x1]
        %v621 = vlaneseq
        %v622 = vshrl.u32 %v621, 7
        %v623 = vsub.s32 0, %v622
        %v624 = vrot.slane %v619, %v623
        %v630 = vunpack.c.l.b16 %v615
        %v631 = vunpack.c.l.b16 %v616
        %v632 = vunpack.c.l.b16 %v617
        %v633 = vunpack.c.l.b16 %v618
        %v634 = vpack.c.b16 %v631, %v630
        %v635 = vpack.c.b16 %v633, %v632
        %vm638 = vcmask 261120
        %v640 = vsel %vm638, %v614, 0
        %642 = vmatprep.subr.bf16.mxu0 0
        %643 = vmatpush1.bf16.msra.mxu0 %v634
        %644 = vmatprep.subr.bf16.mxu0 0
        %645 = vmatpush1.bf16.msra.mxu0 %v635
        %646 = vmatprep.subr.bf16.mxu0 0
        %647 = vmatpush1.bf16.msra.mxu0 0
        %648 = vmatprep.subr.bf16.mxu0 0
        %649 = vmatpush1.bf16.msra.mxu0 0
        %650 = vmatprep.subr.bf16.mxu0 0
        %651 = vmatpush1.bf16.msra.mxu0 0
        %652 = vmatprep.subr.bf16.mxu0 0
        %653 = vmatpush1.bf16.msra.mxu0 0
        %654 = vmatprep.subr.bf16.mxu0 0
        %655 = vmatpush1.bf16.msra.mxu0 0
        %656 = vmatprep.subr.bf16.mxu0 0
        %657 = vmatpush1.bf16.msra.mxu0 0
        %658 = vmatprep.subr.bf16.mxu0 0
        %659 = vmatpush1.bf16.msra.mxu0 0
        %660 = vmatprep.subr.bf16.mxu0 0
        %661 = vmatpush1.bf16.msra.mxu0 0
        %662 = vmatprep.subr.bf16.mxu0 0
        %663 = vmatpush1.bf16.msra.mxu0 0
        %664 = vmatprep.subr.bf16.mxu0 0
        %665 = vmatpush1.bf16.msra.mxu0 0
        %666 = vmatprep.subr.bf16.mxu0 0
        %667 = vmatpush1.bf16.msra.mxu0 0
        %668 = vmatprep.subr.bf16.mxu0 0
        %669 = vmatpush1.bf16.msra.mxu0 0
        %670 = vmatprep.subr.bf16.mxu0 0
        %671 = vmatpush1.bf16.msra.mxu0 0
        %672 = vmatprep.subr.bf16.mxu0 0
        %673 = vmatpush1.bf16.msra.mxu0 0
        %674 = vmatprep.mubr.bf16.mxu0 0
        %675 = vmatmul.mubr.bf16.gmra.mrb[0].mxu0 %v640
        %v676 = vpop.f32.mrb[0].mxu0
        %v677 = vadd.f32 %v624, %v676
        %v678 = vpop.f32.mrb[0].mxu0
        %v679 = vpop.f32.mrb[0].mxu0
        %v680 = vadd.f32 %v624, %v679
        %v681 = vpop.f32.mrb[0].mxu0
        %682 = vdwg.mxu0
        %v683 = vmul.f32 %v677, 0.35355338
        %v684 = vmul.f32 %v680, 0.35355338
        %v685 = vpack.c.bf16 %v683, %v683
        %v686 = vpack.c.bf16 %v684, %v684
        %v687 = vpack.c.bf16 %v677, %v677
        %v688 = vpack.c.bf16 %v680, %v680
        %690 = vrot.lane.b32.xlu0 %v687, 96
        %v691 = vpop.permute.xlu0 %690
        %vm692 = vcmask 64512
        %v694 = vsel %vm692, %v685, 0
        %v697 = vsel %vm692, %v691, 0
        %699 = vmatprep.subr.bf16.mxu0 0
        %700 = vmatpush1.bf16.xpose.msra.mxu0 %v697
        %701 = vmatprep.subr.bf16.mxu0 0
        %702 = vmatpush1.bf16.xpose.msra.mxu0 0
        %703 = vmatprep.subr.bf16.mxu0 0
        %704 = vmatpush1.bf16.xpose.msra.mxu0 0
        %705 = vmatprep.subr.bf16.mxu0 0
        %706 = vmatpush1.bf16.xpose.msra.mxu0 0
        %707 = vmatprep.subr.bf16.mxu0 0
        %708 = vmatpush1.bf16.xpose.msra.mxu0 0
        %709 = vmatprep.subr.bf16.mxu0 0
        %710 = vmatpush1.bf16.xpose.msra.mxu0 0
        %711 = vmatprep.subr.bf16.mxu0 0
        %712 = vmatpush1.bf16.xpose.msra.mxu0 0
        %713 = vmatprep.subr.bf16.mxu0 0
        %714 = vmatpush1.bf16.xpose.msra.mxu0 0
        %715 = vmatprep.subr.bf16.mxu0 0
        %716 = vmatpush1.bf16.xpose.msra.mxu0 0
        %717 = vmatprep.subr.bf16.mxu0 0
        %718 = vmatpush1.bf16.xpose.msra.mxu0 0
        %719 = vmatprep.subr.bf16.mxu0 0
        %720 = vmatpush1.bf16.xpose.msra.mxu0 0
        %721 = vmatprep.subr.bf16.mxu0 0
        %722 = vmatpush1.bf16.xpose.msra.mxu0 0
        %723 = vmatprep.subr.bf16.mxu0 0
        %724 = vmatpush1.bf16.xpose.msra.mxu0 0
        %725 = vmatprep.subr.bf16.mxu0 0
        %726 = vmatpush1.bf16.xpose.msra.mxu0 0
        %727 = vmatprep.subr.bf16.mxu0 0
        %728 = vmatpush1.bf16.xpose.msra.mxu0 0
        %729 = vmatprep.subr.bf16.mxu0 0
        %730 = vmatpush1.bf16.xpose.msra.mxu0 0
        %731 = vmatprep.mubr.bf16.mxu0 0
        %732 = vmatmul.mubr.bf16.gmra.mrb[0].mxu0 %v694
        %v733 = vpop.f32.mrb[0].mxu0
        %v734 = vadd.f32 0.0, %v733
        %v735 = vpop.f32.mrb[0].mxu0
        %v736 = vpop.f32.mrb[0].mxu0
        %v737 = vpop.f32.mrb[0].mxu0
        %738 = vdwg.mxu0
        %740 = vrot.lane.b32.xlu0 %v688, 96
        %v741 = vpop.permute.xlu0 %740
        %v743 = vsel %vm692, %v686, 0
        %v746 = vsel %vm692, %v741, 0
        %748 = vmatprep.subr.bf16.mxu0 0
        %749 = vmatpush1.bf16.xpose.msra.mxu0 %v746
        %750 = vmatprep.subr.bf16.mxu0 0
        %751 = vmatpush1.bf16.xpose.msra.mxu0 0
        %752 = vmatprep.subr.bf16.mxu0 0
        %753 = vmatpush1.bf16.xpose.msra.mxu0 0
        %754 = vmatprep.subr.bf16.mxu0 0
        %755 = vmatpush1.bf16.xpose.msra.mxu0 0
        %756 = vmatprep.subr.bf16.mxu0 0
        %757 = vmatpush1.bf16.xpose.msra.mxu0 0
        %758 = vmatprep.subr.bf16.mxu0 0
        %759 = vmatpush1.bf16.xpose.msra.mxu0 0
        %760 = vmatprep.subr.bf16.mxu0 0
        %761 = vmatpush1.bf16.xpose.msra.mxu0 0
        %762 = vmatprep.subr.bf16.mxu0 0
        %763 = vmatpush1.bf16.xpose.msra.mxu0 0
        %764 = vmatprep.subr.bf16.mxu0 0
        %765 = vmatpush1.bf16.xpose.msra.mxu0 0
        %766 = vmatprep.subr.bf16.mxu0 0
        %767 = vmatpush1.bf16.xpose.msra.mxu0 0
        %768 = vmatprep.subr.bf16.mxu0 0
        %769 = vmatpush1.bf16.xpose.msra.mxu0 0
        %770 = vmatprep.subr.bf16.mxu0 0
        %771 = vmatpush1.bf16.xpose.msra.mxu0 0
        %772 = vmatprep.subr.bf16.mxu0 0
        %773 = vmatpush1.bf16.xpose.msra.mxu0 0
        %774 = vmatprep.subr.bf16.mxu0 0
        %775 = vmatpush1.bf16.xpose.msra.mxu0 0
        %776 = vmatprep.subr.bf16.mxu0 0
        %777 = vmatpush1.bf16.xpose.msra.mxu0 0
        %778 = vmatprep.subr.bf16.mxu0 0
        %779 = vmatpush1.bf16.xpose.msra.mxu0 0
        %780 = vmatprep.mubr.bf16.mxu0 0
        %781 = vmatmul.mubr.bf16.gmra.mrb[0].mxu0 %v743
        %v782 = vpop.f32.mrb[0].mxu0
        %v783 = vadd.f32 0.0, %v782
        %v784 = vpop.f32.mrb[0].mxu0
        %v785 = vpop.f32.mrb[0].mxu0
        %v786 = vpop.f32.mrb[0].mxu0
        %787 = vdwg.mxu0
        %v788 = vsel %vm692, %v734, -inf
        %789 = vmax.xlane.f32.xlu0 %v788
        %v790 = vpop.xlane.xlu0 %789
        %v791 = vsel %vm692, %v783, -inf
        %792 = vmax.xlane.f32.xlu0 %v791
        %v793 = vpop.xlane.xlu0 %792
        %v794 = vsub.f32 %v734, %v790
        %v795 = vsub.f32 %v783, %v793
        %v796 = vmul.f32 %v794, 1.442695
        %v797 = vpow.pop %v796
        %v798 = vmul.f32 %v795, 1.442695
        %v799 = vpow.pop %v798
        %v800 = vsel %vm692, %v797, 0.0
        %801 = vadd.xlane.f32.xlu0 %v800
        %v802 = vpop.xlane.xlu0 %801
        %v803 = vsel %vm692, %v799, 0.0
        %804 = vadd.xlane.f32.xlu0 %v803
        %v805 = vpop.xlane.xlu0 %804
        %v806 = vrcp.pop %v802
        %v807 = vrcp.pop %v805
        %v808 = vmul.f32 %v797, %v806
        %v809 = vmul.f32 %v799, %v807
        %v810 = vpack.c.bf16 %v808, %v808
        %v811 = vpack.c.bf16 %v809, %v809
        %812 = vrot.lane.b32.xlu0 %v687, 64
        %v813 = vpop.permute.xlu0 %812
        %v815 = vsel %vm692, %v810, 0
        %vm817 = vcmask 1043456
        %v819 = vsel %vm817, %v813, 0
        %821 = vmatprep.subr.bf16.mxu0 0
        %822 = vmatpush1.bf16.msra.mxu0 %v819
        %823 = vmatprep.subr.bf16.mxu0 0
        %824 = vmatpush1.bf16.msra.mxu0 0
        %825 = vmatprep.subr.bf16.mxu0 0
        %826 = vmatpush1.bf16.msra.mxu0 0
        %827 = vmatprep.subr.bf16.mxu0 0
        %828 = vmatpush1.bf16.msra.mxu0 0
        %829 = vmatprep.subr.bf16.mxu0 0
        %830 = vmatpush1.bf16.msra.mxu0 0
        %831 = vmatprep.subr.bf16.mxu0 0
        %832 = vmatpush1.bf16.msra.mxu0 0
        %833 = vmatprep.subr.bf16.mxu0 0
        %834 = vmatpush1.bf16.msra.mxu0 0
        %835 = vmatprep.subr.bf16.mxu0 0
        %836 = vmatpush1.bf16.msra.mxu0 0
        %837 = vmatprep.subr.bf16.mxu0 0
        %838 = vmatpush1.bf16.msra.mxu0 0
        %839 = vmatprep.subr.bf16.mxu0 0
        %840 = vmatpush1.bf16.msra.mxu0 0
        %841 = vmatprep.subr.bf16.mxu0 0
        %842 = vmatpush1.bf16.msra.mxu0 0
        %843 = vmatprep.subr.bf16.mxu0 0
        %844 = vmatpush1.bf16.msra.mxu0 0
        %845 = vmatprep.subr.bf16.mxu0 0
        %846 = vmatpush1.bf16.msra.mxu0 0
        %847 = vmatprep.subr.bf16.mxu0 0
        %848 = vmatpush1.bf16.msra.mxu0 0
        %849 = vmatprep.subr.bf16.mxu0 0
        %850 = vmatpush1.bf16.msra.mxu0 0
        %851 = vmatprep.subr.bf16.mxu0 0
        %852 = vmatpush1.bf16.msra.mxu0 0
        %853 = vmatprep.mubr.bf16.mxu0 0
        %854 = vmatmul.mubr.bf16.gmra.mrb[0].mxu0 %v815
        %v855 = vpop.f32.mrb[0].mxu0
        %v856 = vadd.f32 0.0, %v855
        %v857 = vpop.f32.mrb[0].mxu0
        %v858 = vpop.f32.mrb[0].mxu0
        %v859 = vpop.f32.mrb[0].mxu0
        %860 = vdwg.mxu0
        %861 = vrot.lane.b32.xlu0 %v688, 64
        %v862 = vpop.permute.xlu0 %861
        %v864 = vsel %vm692, %v811, 0
        %v867 = vsel %vm817, %v862, 0
        %869 = vmatprep.subr.bf16.mxu0 0
        %870 = vmatpush1.bf16.msra.mxu0 %v867
        %871 = vmatprep.subr.bf16.mxu0 0
        %872 = vmatpush1.bf16.msra.mxu0 0
        %873 = vmatprep.subr.bf16.mxu0 0
        %874 = vmatpush1.bf16.msra.mxu0 0
        %875 = vmatprep.subr.bf16.mxu0 0
        %876 = vmatpush1.bf16.msra.mxu0 0
        %877 = vmatprep.subr.bf16.mxu0 0
        %878 = vmatpush1.bf16.msra.mxu0 0
        %879 = vmatprep.subr.bf16.mxu0 0
        %880 = vmatpush1.bf16.msra.mxu0 0
        %881 = vmatprep.subr.bf16.mxu0 0
        %882 = vmatpush1.bf16.msra.mxu0 0
        %883 = vmatprep.subr.bf16.mxu0 0
        %884 = vmatpush1.bf16.msra.mxu0 0
        %885 = vmatprep.subr.bf16.mxu0 0
        %886 = vmatpush1.bf16.msra.mxu0 0
        %887 = vmatprep.subr.bf16.mxu0 0
        %888 = vmatpush1.bf16.msra.mxu0 0
        %889 = vmatprep.subr.bf16.mxu0 0
        %890 = vmatpush1.bf16.msra.mxu0 0
        %891 = vmatprep.subr.bf16.mxu0 0
        %892 = vmatpush1.bf16.msra.mxu0 0
        %893 = vmatprep.subr.bf16.mxu0 0
        %894 = vmatpush1.bf16.msra.mxu0 0
        %895 = vmatprep.subr.bf16.mxu0 0
        %896 = vmatpush1.bf16.msra.mxu0 0
        %897 = vmatprep.subr.bf16.mxu0 0
        %898 = vmatpush1.bf16.msra.mxu0 0
        %899 = vmatprep.subr.bf16.mxu0 0
        %900 = vmatpush1.bf16.msra.mxu0 0
        %901 = vmatprep.mubr.bf16.mxu0 0
        %902 = vmatmul.mubr.bf16.gmra.mrb[0].mxu0 %v864
        %v903 = vpop.f32.mrb[0].mxu0
        %v904 = vadd.f32 0.0, %v903
        %v905 = vpop.f32.mrb[0].mxu0
        %v906 = vpop.f32.mrb[0].mxu0
        %v907 = vpop.f32.mrb[0].mxu0
        %908 = vdwg.mxu0
        %910 = vrot.lane.b32.xlu0 %v685, 120
        %v911 = vpop.permute.xlu0 %910
        %912 = vrot.lane.b32.xlu0 %v687, 88
        %v913 = vpop.permute.xlu0 %912
        %v915 = vsel %vm692, %v911, 0
        %v918 = vsel %vm692, %v913, 0
        %920 = vmatprep.subr.bf16.mxu0 0
        %921 = vmatpush1.bf16.xpose.msra.mxu0 %v918
        %922 = vmatprep.subr.bf16.mxu0 0
        %923 = vmatpush1.bf16.xpose.msra.mxu0 0
        %924 = vmatprep.subr.bf16.mxu0 0
        %925 = vmatpush1.bf16.xpose.msra.mxu0 0
        %926 = vmatprep.subr.bf16.mxu0 0
        %927 = vmatpush1.bf16.xpose.msra.mxu0 0
        %928 = vmatprep.subr.bf16.mxu0 0
        %929 = vmatpush1.bf16.xpose.msra.mxu0 0
        %930 = vmatprep.subr.bf16.mxu0 0
        %931 = vmatpush1.bf16.xpose.msra.mxu0 0
        %932 = vmatprep.subr.bf16.mxu0 0
        %933 = vmatpush1.bf16.xpose.msra.mxu0 0
        %934 = vmatprep.subr.bf16.mxu0 0
        %935 = vmatpush1.bf16.xpose.msra.mxu0 0
        %936 = vmatprep.subr.bf16.mxu0 0
        %937 = vmatpush1.bf16.xpose.msra.mxu0 0
        %938 = vmatprep.subr.bf16.mxu0 0
        %939 = vmatpush1.bf16.xpose.msra.mxu0 0
        %940 = vmatprep.subr.bf16.mxu0 0
        %941 = vmatpush1.bf16.xpose.msra.mxu0 0
        %942 = vmatprep.subr.bf16.mxu0 0
        %943 = vmatpush1.bf16.xpose.msra.mxu0 0
        %944 = vmatprep.subr.bf16.mxu0 0
        %945 = vmatpush1.bf16.xpose.msra.mxu0 0
        %946 = vmatprep.subr.bf16.mxu0 0
        %947 = vmatpush1.bf16.xpose.msra.mxu0 0
        %948 = vmatprep.subr.bf16.mxu0 0
        %949 = vmatpush1.bf16.xpose.msra.mxu0 0
        %950 = vmatprep.subr.bf16.mxu0 0
        %951 = vmatpush1.bf16.xpose.msra.mxu0 0
        %952 = vmatprep.mubr.bf16.mxu0 0
        %953 = vmatmul.mubr.bf16.gmra.mrb[0].mxu0 %v915
        %v954 = vpop.f32.mrb[0].mxu0
        %v955 = vadd.f32 0.0, %v954
        %v956 = vpop.f32.mrb[0].mxu0
        %v957 = vpop.f32.mrb[0].mxu0
        %v958 = vpop.f32.mrb[0].mxu0
        %959 = vdwg.mxu0
        %961 = vrot.lane.b32.xlu0 %v686, 120
        %v962 = vpop.permute.xlu0 %961
        %963 = vrot.lane.b32.xlu0 %v688, 88
        %v964 = vpop.permute.xlu0 %963
        %v966 = vsel %vm692, %v962, 0
        %v969 = vsel %vm692, %v964, 0
        %971 = vmatprep.subr.bf16.mxu0 0
        %972 = vmatpush1.bf16.xpose.msra.mxu0 %v969
        %973 = vmatprep.subr.bf16.mxu0 0
        %974 = vmatpush1.bf16.xpose.msra.mxu0 0
        %975 = vmatprep.subr.bf16.mxu0 0
        %976 = vmatpush1.bf16.xpose.msra.mxu0 0
        %977 = vmatprep.subr.bf16.mxu0 0
        %978 = vmatpush1.bf16.xpose.msra.mxu0 0
        %979 = vmatprep.subr.bf16.mxu0 0
        %980 = vmatpush1.bf16.xpose.msra.mxu0 0
        %981 = vmatprep.subr.bf16.mxu0 0
        %982 = vmatpush1.bf16.xpose.msra.mxu0 0
        %983 = vmatprep.subr.bf16.mxu0 0
        %984 = vmatpush1.bf16.xpose.msra.mxu0 0
        %985 = vmatprep.subr.bf16.mxu0 0
        %986 = vmatpush1.bf16.xpose.msra.mxu0 0
        %987 = vmatprep.subr.bf16.mxu0 0
        %988 = vmatpush1.bf16.xpose.msra.mxu0 0
        %989 = vmatprep.subr.bf16.mxu0 0
        %990 = vmatpush1.bf16.xpose.msra.mxu0 0
        %991 = vmatprep.subr.bf16.mxu0 0
        %992 = vmatpush1.bf16.xpose.msra.mxu0 0
        %993 = vmatprep.subr.bf16.mxu0 0
        %994 = vmatpush1.bf16.xpose.msra.mxu0 0
        %995 = vmatprep.subr.bf16.mxu0 0
        %996 = vmatpush1.bf16.xpose.msra.mxu0 0
        %997 = vmatprep.subr.bf16.mxu0 0
        %998 = vmatpush1.bf16.xpose.msra.mxu0 0
        %999 = vmatprep.subr.bf16.mxu0 0
        %1000 = vmatpush1.bf16.xpose.msra.mxu0 0
        %1001 = vmatprep.subr.bf16.mxu0 0
        %1002 = vmatpush1.bf16.xpose.msra.mxu0 0
        %1003 = vmatprep.mubr.bf16.mxu0 0
        %1004 = vmatmul.mubr.bf16.gmra.mrb[0].mxu0 %v966
        %v1005 = vpop.f32.mrb[0].mxu0
        %v1006 = vadd.f32 0.0, %v1005
        %v1007 = vpop.f32.mrb[0].mxu0
        %v1008 = vpop.f32.mrb[0].mxu0
        %v1009 = vpop.f32.mrb[0].mxu0
        %1010 = vdwg.mxu0
        %v1011 = vsel %vm692, %v955, -inf
        %1012 = vmax.xlane.f32.xlu0 %v1011
        %v1013 = vpop.xlane.xlu0 %1012
        %v1014 = vsel %vm692, %v1006, -inf
        %1015 = vmax.xlane.f32.xlu0 %v1014
        %v1016 = vpop.xlane.xlu0 %1015
        %v1017 = vsub.f32 %v955, %v1013
        %v1018 = vsub.f32 %v1006, %v1016
        %v1019 = vmul.f32 %v1017, 1.442695
        %v1020 = vpow.pop %v1019
        %v1021 = vmul.f32 %v1018, 1.442695
        %v1022 = vpow.pop %v1021
        %v1023 = vsel %vm692, %v1020, 0.0
        %1024 = vadd.xlane.f32.xlu0 %v1023
        %v1025 = vpop.xlane.xlu0 %1024
        %v1026 = vsel %vm692, %v1022, 0.0
        %1027 = vadd.xlane.f32.xlu0 %v1026
        %v1028 = vpop.xlane.xlu0 %1027
        %v1029 = vrcp.pop %v1025
        %v1030 = vrcp.pop %v1028
        %v1031 = vmul.f32 %v1020, %v1029
        %v1032 = vmul.f32 %v1022, %v1030
        %v1033 = vpack.c.bf16 %v1031, %v1031
        %v1034 = vpack.c.bf16 %v1032, %v1032
        %1035 = vrot.lane.b32.xlu0 %v687, 56
        %v1036 = vpop.permute.xlu0 %1035
        %v1038 = vsel %vm692, %v1033, 0
        %v1041 = vsel %vm817, %v1036, 0
        %1043 = vmatprep.subr.bf16.mxu0 0
        %1044 = vmatpush1.bf16.msra.mxu0 %v1041
        %1045 = vmatprep.subr.bf16.mxu0 0
        %1046 = vmatpush1.bf16.msra.mxu0 0
        %1047 = vmatprep.subr.bf16.mxu0 0
        %1048 = vmatpush1.bf16.msra.mxu0 0
        %1049 = vmatprep.subr.bf16.mxu0 0
        %1050 = vmatpush1.bf16.msra.mxu0 0
        %1051 = vmatprep.subr.bf16.mxu0 0
        %1052 = vmatpush1.bf16.msra.mxu0 0
        %1053 = vmatprep.subr.bf16.mxu0 0
        %1054 = vmatpush1.bf16.msra.mxu0 0
        %1055 = vmatprep.subr.bf16.mxu0 0
        %1056 = vmatpush1.bf16.msra.mxu0 0
        %1057 = vmatprep.subr.bf16.mxu0 0
        %1058 = vmatpush1.bf16.msra.mxu0 0
        %1059 = vmatprep.subr.bf16.mxu0 0
        %1060 = vmatpush1.bf16.msra.mxu0 0
        %1061 = vmatprep.subr.bf16.mxu0 0
        %1062 = vmatpush1.bf16.msra.mxu0 0
        %1063 = vmatprep.subr.bf16.mxu0 0
        %1064 = vmatpush1.bf16.msra.mxu0 0
        %1065 = vmatprep.subr.bf16.mxu0 0
        %1066 = vmatpush1.bf16.msra.mxu0 0
        %1067 = vmatprep.subr.bf16.mxu0 0
        %1068 = vmatpush1.bf16.msra.mxu0 0
        %1069 = vmatprep.subr.bf16.mxu0 0
        %1070 = vmatpush1.bf16.msra.mxu0 0
        %1071 = vmatprep.subr.bf16.mxu0 0
        %1072 = vmatpush1.bf16.msra.mxu0 0
        %1073 = vmatprep.subr.bf16.mxu0 0
        %1074 = vmatpush1.bf16.msra.mxu0 0
        %1075 = vmatprep.mubr.bf16.mxu0 0
        %1076 = vmatmul.mubr.bf16.gmra.mrb[0].mxu0 %v1038
        %v1077 = vpop.f32.mrb[0].mxu0
        %v1078 = vadd.f32 0.0, %v1077
        %v1079 = vpop.f32.mrb[0].mxu0
        %v1080 = vpop.f32.mrb[0].mxu0
        %v1081 = vpop.f32.mrb[0].mxu0
        %1082 = vdwg.mxu0
        %1083 = vrot.lane.b32.xlu0 %v688, 56
        %v1084 = vpop.permute.xlu0 %1083
        %v1086 = vsel %vm692, %v1034, 0
        %v1089 = vsel %vm817, %v1084, 0
        %1091 = vmatprep.subr.bf16.mxu0 0
        %1092 = vmatpush1.bf16.msra.mxu0 %v1089
        %1093 = vmatprep.subr.bf16.mxu0 0
        %1094 = vmatpush1.bf16.msra.mxu0 0
        %1095 = vmatprep.subr.bf16.mxu0 0
        %1096 = vmatpush1.bf16.msra.mxu0 0
        %1097 = vmatprep.subr.bf16.mxu0 0
        %1098 = vmatpush1.bf16.msra.mxu0 0
        %1099 = vmatprep.subr.bf16.mxu0 0
        %1100 = vmatpush1.bf16.msra.mxu0 0
        %1101 = vmatprep.subr.bf16.mxu0 0
        %1102 = vmatpush1.bf16.msra.mxu0 0
        %1103 = vmatprep.subr.bf16.mxu0 0
        %1104 = vmatpush1.bf16.msra.mxu0 0
        %1105 = vmatprep.subr.bf16.mxu0 0
        %1106 = vmatpush1.bf16.msra.mxu0 0
        %1107 = vmatprep.subr.bf16.mxu0 0
        %1108 = vmatpush1.bf16.msra.mxu0 0
        %1109 = vmatprep.subr.bf16.mxu0 0
        %1110 = vmatpush1.bf16.msra.mxu0 0
        %1111 = vmatprep.subr.bf16.mxu0 0
        %1112 = vmatpush1.bf16.msra.mxu0 0
        %1113 = vmatprep.subr.bf16.mxu0 0
        %1114 = vmatpush1.bf16.msra.mxu0 0
        %1115 = vmatprep.subr.bf16.mxu0 0
        %1116 = vmatpush1.bf16.msra.mxu0 0
        %1117 = vmatprep.subr.bf16.mxu0 0
        %1118 = vmatpush1.bf16.msra.mxu0 0
        %1119 = vmatprep.subr.bf16.mxu0 0
        %1120 = vmatpush1.bf16.msra.mxu0 0
        %1121 = vmatprep.subr.bf16.mxu0 0
        %1122 = vmatpush1.bf16.msra.mxu0 0
        %1123 = vmatprep.mubr.bf16.mxu0 0
        %1124 = vmatmul.mubr.bf16.gmra.mrb[0].mxu0 %v1086
        %v1125 = vpop.f32.mrb[0].mxu0
        %v1126 = vadd.f32 0.0, %v1125
        %v1127 = vpop.f32.mrb[0].mxu0
        %v1128 = vpop.f32.mrb[0].mxu0
        %v1129 = vpop.f32.mrb[0].mxu0
        %1130 = vdwg.mxu0
        %1131 = vrot.lane.b32.xlu0 %v685, 112
        %v1132 = vpop.permute.xlu0 %1131
        %1133 = vrot.lane.b32.xlu0 %v687, 80
        %v1134 = vpop.permute.xlu0 %1133
        %v1136 = vsel %vm692, %v1132, 0
        %v1139 = vsel %vm692, %v1134, 0
        %1141 = vmatprep.subr.bf16.mxu0 0
        %1142 = vmatpush1.bf16.xpose.msra.mxu0 %v1139
        %1143 = vmatprep.subr.bf16.mxu0 0
        %1144 = vmatpush1.bf16.xpose.msra.mxu0 0
        %1145 = vmatprep.subr.bf16.mxu0 0
        %1146 = vmatpush1.bf16.xpose.msra.mxu0 0
        %1147 = vmatprep.subr.bf16.mxu0 0
        %1148 = vmatpush1.bf16.xpose.msra.mxu0 0
        %1149 = vmatprep.subr.bf16.mxu0 0
        %1150 = vmatpush1.bf16.xpose.msra.mxu0 0
        %1151 = vmatprep.subr.bf16.mxu0 0
        %1152 = vmatpush1.bf16.xpose.msra.mxu0 0
        %1153 = vmatprep.subr.bf16.mxu0 0
        %1154 = vmatpush1.bf16.xpose.msra.mxu0 0
        %1155 = vmatprep.subr.bf16.mxu0 0
        %1156 = vmatpush1.bf16.xpose.msra.mxu0 0
        %1157 = vmatprep.subr.bf16.mxu0 0
        %1158 = vmatpush1.bf16.xpose.msra.mxu0 0
        %1159 = vmatprep.subr.bf16.mxu0 0
        %1160 = vmatpush1.bf16.xpose.msra.mxu0 0
        %1161 = vmatprep.subr.bf16.mxu0 0
        %1162 = vmatpush1.bf16.xpose.msra.mxu0 0
        %1163 = vmatprep.subr.bf16.mxu0 0
        %1164 = vmatpush1.bf16.xpose.msra.mxu0 0
        %1165 = vmatprep.subr.bf16.mxu0 0
        %1166 = vmatpush1.bf16.xpose.msra.mxu0 0
        %1167 = vmatprep.subr.bf16.mxu0 0
        %1168 = vmatpush1.bf16.xpose.msra.mxu0 0
        %1169 = vmatprep.subr.bf16.mxu0 0
        %1170 = vmatpush1.bf16.xpose.msra.mxu0 0
        %1171 = vmatprep.subr.bf16.mxu0 0
        %1172 = vmatpush1.bf16.xpose.msra.mxu0 0
        %1173 = vmatprep.mubr.bf16.mxu0 0
        %1174 = vmatmul.mubr.bf16.gmra.mrb[0].mxu0 %v1136
        %v1175 = vpop.f32.mrb[0].mxu0
        %v1176 = vadd.f32 0.0, %v1175
        %v1177 = vpop.f32.mrb[0].mxu0
        %v1178 = vpop.f32.mrb[0].mxu0
        %v1179 = vpop.f32.mrb[0].mxu0
        %1180 = vdwg.mxu0
        %1181 = vrot.lane.b32.xlu0 %v686, 112
        %v1182 = vpop.permute.xlu0 %1181
        %1183 = vrot.lane.b32.xlu0 %v688, 80
        %v1184 = vpop.permute.xlu0 %1183
        %v1186 = vsel %vm692, %v1182, 0
        %v1189 = vsel %vm692, %v1184, 0
        %1191 = vmatprep.subr.bf16.mxu0 0
        %1192 = vmatpush1.bf16.xpose.msra.mxu0 %v1189
        %1193 = vmatprep.subr.bf16.mxu0 0
        %1194 = vmatpush1.bf16.xpose.msra.mxu0 0
        %1195 = vmatprep.subr.bf16.mxu0 0
        %1196 = vmatpush1.bf16.xpose.msra.mxu0 0
        %1197 = vmatprep.subr.bf16.mxu0 0
        %1198 = vmatpush1.bf16.xpose.msra.mxu0 0
        %1199 = vmatprep.subr.bf16.mxu0 0
        %1200 = vmatpush1.bf16.xpose.msra.mxu0 0
        %1201 = vmatprep.subr.bf16.mxu0 0
        %1202 = vmatpush1.bf16.xpose.msra.mxu0 0
        %1203 = vmatprep.subr.bf16.mxu0 0
        %1204 = vmatpush1.bf16.xpose.msra.mxu0 0
        %1205 = vmatprep.subr.bf16.mxu0 0
        %1206 = vmatpush1.bf16.xpose.msra.mxu0 0
        %1207 = vmatprep.subr.bf16.mxu0 0
        %1208 = vmatpush1.bf16.xpose.msra.mxu0 0
        %1209 = vmatprep.subr.bf16.mxu0 0
        %1210 = vmatpush1.bf16.xpose.msra.mxu0 0
        %1211 = vmatprep.subr.bf16.mxu0 0
        %1212 = vmatpush1.bf16.xpose.msra.mxu0 0
        %1213 = vmatprep.subr.bf16.mxu0 0
        %1214 = vmatpush1.bf16.xpose.msra.mxu0 0
        %1215 = vmatprep.subr.bf16.mxu0 0
        %1216 = vmatpush1.bf16.xpose.msra.mxu0 0
        %1217 = vmatprep.subr.bf16.mxu0 0
        %1218 = vmatpush1.bf16.xpose.msra.mxu0 0
        %1219 = vmatprep.subr.bf16.mxu0 0
        %1220 = vmatpush1.bf16.xpose.msra.mxu0 0
        %1221 = vmatprep.subr.bf16.mxu0 0
        %1222 = vmatpush1.bf16.xpose.msra.mxu0 0
        %1223 = vmatprep.mubr.bf16.mxu0 0
        %1224 = vmatmul.mubr.bf16.gmra.mrb[0].mxu0 %v1186
        %v1225 = vpop.f32.mrb[0].mxu0
        %v1226 = vadd.f32 0.0, %v1225
        %v1227 = vpop.f32.mrb[0].mxu0
        %v1228 = vpop.f32.mrb[0].mxu0
        %v1229 = vpop.f32.mrb[0].mxu0
        %1230 = vdwg.mxu0
        %v1231 = vsel %vm692, %v1176, -inf
        %1232 = vmax.xlane.f32.xlu0 %v1231
        %v1233 = vpop.xlane.xlu0 %1232
        %v1234 = vsel %vm692, %v1226, -inf
        %1235 = vmax.xlane.f32.xlu0 %v1234
        %v1236 = vpop.xlane.xlu0 %1235
        %v1237 = vsub.f32 %v1176, %v1233
        %v1238 = vsub.f32 %v1226, %v1236
        %v1239 = vmul.f32 %v1237, 1.442695
        %v1240 = vpow.pop %v1239
        %v1241 = vmul.f32 %v1238, 1.442695
        %v1242 = vpow.pop %v1241
        %v1243 = vsel %vm692, %v1240, 0.0
        %1244 = vadd.xlane.f32.xlu0 %v1243
        %v1245 = vpop.xlane.xlu0 %1244
        %v1246 = vsel %vm692, %v1242, 0.0
        %1247 = vadd.xlane.f32.xlu0 %v1246
        %v1248 = vpop.xlane.xlu0 %1247
        %v1249 = vrcp.pop %v1245
        %v1250 = vrcp.pop %v1248
        %v1251 = vmul.f32 %v1240, %v1249
        %v1252 = vmul.f32 %v1242, %v1250
        %v1253 = vpack.c.bf16 %v1251, %v1251
        %v1254 = vpack.c.bf16 %v1252, %v1252
        %1255 = vrot.lane.b32.xlu0 %v687, 48
        %v1256 = vpop.permute.xlu0 %1255
        %v1258 = vsel %vm692, %v1253, 0
        %v1261 = vsel %vm817, %v1256, 0
        %1263 = vmatprep.subr.bf16.mxu0 0
        %1264 = vmatpush1.bf16.msra.mxu0 %v1261
        %1265 = vmatprep.subr.bf16.mxu0 0
        %1266 = vmatpush1.bf16.msra.mxu0 0
        %1267 = vmatprep.subr.bf16.mxu0 0
        %1268 = vmatpush1.bf16.msra.mxu0 0
        %1269 = vmatprep.subr.bf16.mxu0 0
        %1270 = vmatpush1.bf16.msra.mxu0 0
        %1271 = vmatprep.subr.bf16.mxu0 0
        %1272 = vmatpush1.bf16.msra.mxu0 0
        %1273 = vmatprep.subr.bf16.mxu0 0
        %1274 = vmatpush1.bf16.msra.mxu0 0
        %1275 = vmatprep.subr.bf16.mxu0 0
        %1276 = vmatpush1.bf16.msra.mxu0 0
        %1277 = vmatprep.subr.bf16.mxu0 0
        %1278 = vmatpush1.bf16.msra.mxu0 0
        %1279 = vmatprep.subr.bf16.mxu0 0
        %1280 = vmatpush1.bf16.msra.mxu0 0
        %1281 = vmatprep.subr.bf16.mxu0 0
        %1282 = vmatpush1.bf16.msra.mxu0 0
        %1283 = vmatprep.subr.bf16.mxu0 0
        %1284 = vmatpush1.bf16.msra.mxu0 0
        %1285 = vmatprep.subr.bf16.mxu0 0
        %1286 = vmatpush1.bf16.msra.mxu0 0
        %1287 = vmatprep.subr.bf16.mxu0 0
        %1288 = vmatpush1.bf16.msra.mxu0 0
        %1289 = vmatprep.subr.bf16.mxu0 0
        %1290 = vmatpush1.bf16.msra.mxu0 0
        %1291 = vmatprep.subr.bf16.mxu0 0
        %1292 = vmatpush1.bf16.msra.mxu0 0
        %1293 = vmatprep.subr.bf16.mxu0 0
        %1294 = vmatpush1.bf16.msra.mxu0 0
        %1295 = vmatprep.mubr.bf16.mxu0 0
        %1296 = vmatmul.mubr.bf16.gmra.mrb[0].mxu0 %v1258
        %v1297 = vpop.f32.mrb[0].mxu0
        %v1298 = vadd.f32 0.0, %v1297
        %v1299 = vpop.f32.mrb[0].mxu0
        %v1300 = vpop.f32.mrb[0].mxu0
        %v1301 = vpop.f32.mrb[0].mxu0
        %1302 = vdwg.mxu0
        %1303 = vrot.lane.b32.xlu0 %v688, 48
        %v1304 = vpop.permute.xlu0 %1303
        %v1306 = vsel %vm692, %v1254, 0
        %v1309 = vsel %vm817, %v1304, 0
        %1311 = vmatprep.subr.bf16.mxu0 0
        %1312 = vmatpush1.bf16.msra.mxu0 %v1309
        %1313 = vmatprep.subr.bf16.mxu0 0
        %1314 = vmatpush1.bf16.msra.mxu0 0
        %1315 = vmatprep.subr.bf16.mxu0 0
        %1316 = vmatpush1.bf16.msra.mxu0 0
        %1317 = vmatprep.subr.bf16.mxu0 0
        %1318 = vmatpush1.bf16.msra.mxu0 0
        %1319 = vmatprep.subr.bf16.mxu0 0
        %1320 = vmatpush1.bf16.msra.mxu0 0
        %1321 = vmatprep.subr.bf16.mxu0 0
        %1322 = vmatpush1.bf16.msra.mxu0 0
        %1323 = vmatprep.subr.bf16.mxu0 0
        %1324 = vmatpush1.bf16.msra.mxu0 0
        %1325 = vmatprep.subr.bf16.mxu0 0
        %1326 = vmatpush1.bf16.msra.mxu0 0
        %1327 = vmatprep.subr.bf16.mxu0 0
        %1328 = vmatpush1.bf16.msra.mxu0 0
        %1329 = vmatprep.subr.bf16.mxu0 0
        %1330 = vmatpush1.bf16.msra.mxu0 0
        %1331 = vmatprep.subr.bf16.mxu0 0
        %1332 = vmatpush1.bf16.msra.mxu0 0
        %1333 = vmatprep.subr.bf16.mxu0 0
        %1334 = vmatpush1.bf16.msra.mxu0 0
        %1335 = vmatprep.subr.bf16.mxu0 0
        %1336 = vmatpush1.bf16.msra.mxu0 0
        %1337 = vmatprep.subr.bf16.mxu0 0
        %1338 = vmatpush1.bf16.msra.mxu0 0
        %1339 = vmatprep.subr.bf16.mxu0 0
        %1340 = vmatpush1.bf16.msra.mxu0 0
        %1341 = vmatprep.subr.bf16.mxu0 0
        %1342 = vmatpush1.bf16.msra.mxu0 0
        %1343 = vmatprep.mubr.bf16.mxu0 0
        %1344 = vmatmul.mubr.bf16.gmra.mrb[0].mxu0 %v1306
        %v1345 = vpop.f32.mrb[0].mxu0
        %v1346 = vadd.f32 0.0, %v1345
        %v1347 = vpop.f32.mrb[0].mxu0
        %v1348 = vpop.f32.mrb[0].mxu0
        %v1349 = vpop.f32.mrb[0].mxu0
        %1350 = vdwg.mxu0
        %1351 = vrot.lane.b32.xlu0 %v685, 104
        %v1352 = vpop.permute.xlu0 %1351
        %1353 = vrot.lane.b32.xlu0 %v687, 72
        %v1354 = vpop.permute.xlu0 %1353
        %v1356 = vsel %vm692, %v1352, 0
        %v1359 = vsel %vm692, %v1354, 0
        %1361 = vmatprep.subr.bf16.mxu0 0
        %1362 = vmatpush1.bf16.xpose.msra.mxu0 %v1359
        %1363 = vmatprep.subr.bf16.mxu0 0
        %1364 = vmatpush1.bf16.xpose.msra.mxu0 0
        %1365 = vmatprep.subr.bf16.mxu0 0
        %1366 = vmatpush1.bf16.xpose.msra.mxu0 0
        %1367 = vmatprep.subr.bf16.mxu0 0
        %1368 = vmatpush1.bf16.xpose.msra.mxu0 0
        %1369 = vmatprep.subr.bf16.mxu0 0
        %1370 = vmatpush1.bf16.xpose.msra.mxu0 0
        %1371 = vmatprep.subr.bf16.mxu0 0
        %1372 = vmatpush1.bf16.xpose.msra.mxu0 0
        %1373 = vmatprep.subr.bf16.mxu0 0
        %1374 = vmatpush1.bf16.xpose.msra.mxu0 0
        %1375 = vmatprep.subr.bf16.mxu0 0
        %1376 = vmatpush1.bf16.xpose.msra.mxu0 0
        %1377 = vmatprep.subr.bf16.mxu0 0
        %1378 = vmatpush1.bf16.xpose.msra.mxu0 0
        %1379 = vmatprep.subr.bf16.mxu0 0
        %1380 = vmatpush1.bf16.xpose.msra.mxu0 0
        %1381 = vmatprep.subr.bf16.mxu0 0
        %1382 = vmatpush1.bf16.xpose.msra.mxu0 0
        %1383 = vmatprep.subr.bf16.mxu0 0
        %1384 = vmatpush1.bf16.xpose.msra.mxu0 0
        %1385 = vmatprep.subr.bf16.mxu0 0
        %1386 = vmatpush1.bf16.xpose.msra.mxu0 0
        %1387 = vmatprep.subr.bf16.mxu0 0
        %1388 = vmatpush1.bf16.xpose.msra.mxu0 0
        %1389 = vmatprep.subr.bf16.mxu0 0
        %1390 = vmatpush1.bf16.xpose.msra.mxu0 0
        %1391 = vmatprep.subr.bf16.mxu0 0
        %1392 = vmatpush1.bf16.xpose.msra.mxu0 0
        %1393 = vmatprep.mubr.bf16.mxu0 0
        %1394 = vmatmul.mubr.bf16.gmra.mrb[0].mxu0 %v1356
        %v1395 = vpop.f32.mrb[0].mxu0
        %v1396 = vadd.f32 0.0, %v1395
        %v1397 = vpop.f32.mrb[0].mxu0
        %v1398 = vpop.f32.mrb[0].mxu0
        %v1399 = vpop.f32.mrb[0].mxu0
        %1400 = vdwg.mxu0
        %1401 = vrot.lane.b32.xlu0 %v686, 104
        %v1402 = vpop.permute.xlu0 %1401
        %1403 = vrot.lane.b32.xlu0 %v688, 72
        %v1404 = vpop.permute.xlu0 %1403
        %v1406 = vsel %vm692, %v1402, 0
        %v1409 = vsel %vm692, %v1404, 0
        %1411 = vmatprep.subr.bf16.mxu0 0
        %1412 = vmatpush1.bf16.xpose.msra.mxu0 %v1409
        %1413 = vmatprep.subr.bf16.mxu0 0
        %1414 = vmatpush1.bf16.xpose.msra.mxu0 0
        %1415 = vmatprep.subr.bf16.mxu0 0
        %1416 = vmatpush1.bf16.xpose.msra.mxu0 0
        %1417 = vmatprep.subr.bf16.mxu0 0
        %1418 = vmatpush1.bf16.xpose.msra.mxu0 0
        %1419 = vmatprep.subr.bf16.mxu0 0
        %1420 = vmatpush1.bf16.xpose.msra.mxu0 0
        %1421 = vmatprep.subr.bf16.mxu0 0
        %1422 = vmatpush1.bf16.xpose.msra.mxu0 0
        %1423 = vmatprep.subr.bf16.mxu0 0
        %1424 = vmatpush1.bf16.xpose.msra.mxu0 0
        %1425 = vmatprep.subr.bf16.mxu0 0
        %1426 = vmatpush1.bf16.xpose.msra.mxu0 0
        %1427 = vmatprep.subr.bf16.mxu0 0
        %1428 = vmatpush1.bf16.xpose.msra.mxu0 0
        %1429 = vmatprep.subr.bf16.mxu0 0
        %1430 = vmatpush1.bf16.xpose.msra.mxu0 0
        %1431 = vmatprep.subr.bf16.mxu0 0
        %1432 = vmatpush1.bf16.xpose.msra.mxu0 0
        %1433 = vmatprep.subr.bf16.mxu0 0
        %1434 = vmatpush1.bf16.xpose.msra.mxu0 0
        %1435 = vmatprep.subr.bf16.mxu0 0
        %1436 = vmatpush1.bf16.xpose.msra.mxu0 0
        %1437 = vmatprep.subr.bf16.mxu0 0
        %1438 = vmatpush1.bf16.xpose.msra.mxu0 0
        %1439 = vmatprep.subr.bf16.mxu0 0
        %1440 = vmatpush1.bf16.xpose.msra.mxu0 0
        %1441 = vmatprep.subr.bf16.mxu0 0
        %1442 = vmatpush1.bf16.xpose.msra.mxu0 0
        %1443 = vmatprep.mubr.bf16.mxu0 0
        %1444 = vmatmul.mubr.bf16.gmra.mrb[0].mxu0 %v1406
        %v1445 = vpop.f32.mrb[0].mxu0
        %v1446 = vadd.f32 0.0, %v1445
        %v1447 = vpop.f32.mrb[0].mxu0
        %v1448 = vpop.f32.mrb[0].mxu0
        %v1449 = vpop.f32.mrb[0].mxu0
        %1450 = vdwg.mxu0
        %v1451 = vsel %vm692, %v1396, -inf
        %1452 = vmax.xlane.f32.xlu0 %v1451
        %v1453 = vpop.xlane.xlu0 %1452
        %v1454 = vsel %vm692, %v1446, -inf
        %1455 = vmax.xlane.f32.xlu0 %v1454
        %v1456 = vpop.xlane.xlu0 %1455
        %v1457 = vsub.f32 %v1396, %v1453
        %v1458 = vsub.f32 %v1446, %v1456
        %v1459 = vmul.f32 %v1457, 1.442695
        %v1460 = vpow.pop %v1459
        %v1461 = vmul.f32 %v1458, 1.442695
        %v1462 = vpow.pop %v1461
        %v1463 = vsel %vm692, %v1460, 0.0
        %1464 = vadd.xlane.f32.xlu0 %v1463
        %v1465 = vpop.xlane.xlu0 %1464
        %v1466 = vsel %vm692, %v1462, 0.0
        %1467 = vadd.xlane.f32.xlu0 %v1466
        %v1468 = vpop.xlane.xlu0 %1467
        %v1469 = vrcp.pop %v1465
        %v1470 = vrcp.pop %v1468
        %v1471 = vmul.f32 %v1460, %v1469
        %v1472 = vmul.f32 %v1462, %v1470
        %v1473 = vpack.c.bf16 %v1471, %v1471
        %v1474 = vpack.c.bf16 %v1472, %v1472
        %1475 = vrot.lane.b32.xlu0 %v687, 40
        %v1476 = vpop.permute.xlu0 %1475
        %v1478 = vsel %vm692, %v1473, 0
        %v1481 = vsel %vm817, %v1476, 0
        %1483 = vmatprep.subr.bf16.mxu0 0
        %1484 = vmatpush1.bf16.msra.mxu0 %v1481
        %1485 = vmatprep.subr.bf16.mxu0 0
        %1486 = vmatpush1.bf16.msra.mxu0 0
        %1487 = vmatprep.subr.bf16.mxu0 0
        %1488 = vmatpush1.bf16.msra.mxu0 0
        %1489 = vmatprep.subr.bf16.mxu0 0
        %1490 = vmatpush1.bf16.msra.mxu0 0
        %1491 = vmatprep.subr.bf16.mxu0 0
        %1492 = vmatpush1.bf16.msra.mxu0 0
        %1493 = vmatprep.subr.bf16.mxu0 0
        %1494 = vmatpush1.bf16.msra.mxu0 0
        %1495 = vmatprep.subr.bf16.mxu0 0
        %1496 = vmatpush1.bf16.msra.mxu0 0
        %1497 = vmatprep.subr.bf16.mxu0 0
        %1498 = vmatpush1.bf16.msra.mxu0 0
        %1499 = vmatprep.subr.bf16.mxu0 0
        %1500 = vmatpush1.bf16.msra.mxu0 0
        %1501 = vmatprep.subr.bf16.mxu0 0
        %1502 = vmatpush1.bf16.msra.mxu0 0
        %1503 = vmatprep.subr.bf16.mxu0 0
        %1504 = vmatpush1.bf16.msra.mxu0 0
        %1505 = vmatprep.subr.bf16.mxu0 0
        %1506 = vmatpush1.bf16.msra.mxu0 0
        %1507 = vmatprep.subr.bf16.mxu0 0
        %1508 = vmatpush1.bf16.msra.mxu0 0
        %1509 = vmatprep.subr.bf16.mxu0 0
        %1510 = vmatpush1.bf16.msra.mxu0 0
        %1511 = vmatprep.subr.bf16.mxu0 0
        %1512 = vmatpush1.bf16.msra.mxu0 0
        %1513 = vmatprep.subr.bf16.mxu0 0
        %1514 = vmatpush1.bf16.msra.mxu0 0
        %1515 = vmatprep.mubr.bf16.mxu0 0
        %1516 = vmatmul.mubr.bf16.gmra.mrb[0].mxu0 %v1478
        %v1517 = vpop.f32.mrb[0].mxu0
        %v1518 = vadd.f32 0.0, %v1517
        %v1519 = vpop.f32.mrb[0].mxu0
        %v1520 = vpop.f32.mrb[0].mxu0
        %v1521 = vpop.f32.mrb[0].mxu0
        %1522 = vdwg.mxu0
        %1523 = vrot.lane.b32.xlu0 %v688, 40
        %v1524 = vpop.permute.xlu0 %1523
        %v1526 = vsel %vm692, %v1474, 0
        %v1529 = vsel %vm817, %v1524, 0
        %1531 = vmatprep.subr.bf16.mxu0 0
        %1532 = vmatpush1.bf16.msra.mxu0 %v1529
        %1533 = vmatprep.subr.bf16.mxu0 0
        %1534 = vmatpush1.bf16.msra.mxu0 0
        %1535 = vmatprep.subr.bf16.mxu0 0
        %1536 = vmatpush1.bf16.msra.mxu0 0
        %1537 = vmatprep.subr.bf16.mxu0 0
        %1538 = vmatpush1.bf16.msra.mxu0 0
        %1539 = vmatprep.subr.bf16.mxu0 0
        %1540 = vmatpush1.bf16.msra.mxu0 0
        %1541 = vmatprep.subr.bf16.mxu0 0
        %1542 = vmatpush1.bf16.msra.mxu0 0
        %1543 = vmatprep.subr.bf16.mxu0 0
        %1544 = vmatpush1.bf16.msra.mxu0 0
        %1545 = vmatprep.subr.bf16.mxu0 0
        %1546 = vmatpush1.bf16.msra.mxu0 0
        %1547 = vmatprep.subr.bf16.mxu0 0
        %1548 = vmatpush1.bf16.msra.mxu0 0
        %1549 = vmatprep.subr.bf16.mxu0 0
        %1550 = vmatpush1.bf16.msra.mxu0 0
        %1551 = vmatprep.subr.bf16.mxu0 0
        %1552 = vmatpush1.bf16.msra.mxu0 0
        %1553 = vmatprep.subr.bf16.mxu0 0
        %1554 = vmatpush1.bf16.msra.mxu0 0
        %1555 = vmatprep.subr.bf16.mxu0 0
        %1556 = vmatpush1.bf16.msra.mxu0 0
        %1557 = vmatprep.subr.bf16.mxu0 0
        %1558 = vmatpush1.bf16.msra.mxu0 0
        %1559 = vmatprep.subr.bf16.mxu0 0
        %1560 = vmatpush1.bf16.msra.mxu0 0
        %1561 = vmatprep.subr.bf16.mxu0 0
        %1562 = vmatpush1.bf16.msra.mxu0 0
        %1563 = vmatprep.mubr.bf16.mxu0 0
        %1564 = vmatmul.mubr.bf16.gmra.mrb[0].mxu0 %v1526
        %v1565 = vpop.f32.mrb[0].mxu0
        %v1566 = vadd.f32 0.0, %v1565
        %v1567 = vpop.f32.mrb[0].mxu0
        %v1568 = vpop.f32.mrb[0].mxu0
        %v1569 = vpop.f32.mrb[0].mxu0
        %1570 = vdwg.mxu0
        %1573 = vrot.lane.b32.xlu0 %v1078, 8
        %v1574 = vpop.permute.xlu0 %1573
        %1575 = vrot.lane.b32.xlu0 %v1126, 8
        %v1576 = vpop.permute.xlu0 %1575
        %1581 = vrot.lane.b32.xlu0 %v1298, 16
        %v1582 = vpop.permute.xlu0 %1581
        %1583 = vrot.lane.b32.xlu0 %v1346, 16
        %v1584 = vpop.permute.xlu0 %1583
        %1589 = vrot.lane.b32.xlu0 %v1518, 24
        %v1590 = vpop.permute.xlu0 %1589
        %1591 = vrot.lane.b32.xlu0 %v1566, 24
        %v1592 = vpop.permute.xlu0 %1591
        %v1595 = vsel %vm692, %v856, %v1574
        %v1596 = vsel %vm692, %v904, %v1576
        %vm1597 = vcmask 130048
        %v1598 = vsel %vm1597, %v1595, %v1582
        %v1599 = vsel %vm1597, %v1596, %v1584
        %vm1600 = vcmask 195584
        %v1601 = vsel %vm1600, %v1598, %v1590
        %v1602 = vsel %vm1600, %v1599, %v1592
        %v1603 = vpack.c.bf16 %v1602, %v1601
        %v1604 = vld [vmem:[%s569] sm:$0xf]
        %v1605 = vld [vmem:[%s569 + $0x4] sm:$0xf]
        %v1606 = vld [vmem:[%s569 + $0x8] sm:$0xf]
        %v1607 = vld [vmem:[%s569 + $0xc] sm:$0xf]
        %v1608 = vld [vmem:[%s572] sm:$0x1]
        %v1610 = vlaneseq
        %v1611 = vshrl.u32 %v1610, 7
        %v1612 = vsub.s32 0, %v1611
        %v1613 = vrot.slane %v1608, %v1612
        %v1619 = vunpack.c.l.b16 %v1604
        %v1620 = vunpack.c.l.b16 %v1605
        %v1621 = vunpack.c.l.b16 %v1606
        %v1622 = vunpack.c.l.b16 %v1607
        %v1623 = vpack.c.b16 %v1620, %v1619
        %v1624 = vpack.c.b16 %v1622, %v1621
        %v1628 = vsel %vm638, %v1603, 0
        %1630 = vmatprep.subr.bf16.mxu0 0
        %1631 = vmatpush1.bf16.msra.mxu0 %v1623
        %1632 = vmatprep.subr.bf16.mxu0 0
        %1633 = vmatpush1.bf16.msra.mxu0 %v1624
        %1634 = vmatprep.subr.bf16.mxu0 0
        %1635 = vmatpush1.bf16.msra.mxu0 0
        %1636 = vmatprep.subr.bf16.mxu0 0
        %1637 = vmatpush1.bf16.msra.mxu0 0
        %1638 = vmatprep.subr.bf16.mxu0 0
        %1639 = vmatpush1.bf16.msra.mxu0 0
        %1640 = vmatprep.subr.bf16.mxu0 0
        %1641 = vmatpush1.bf16.msra.mxu0 0
        %1642 = vmatprep.subr.bf16.mxu0 0
        %1643 = vmatpush1.bf16.msra.mxu0 0
        %1644 = vmatprep.subr.bf16.mxu0 0
        %1645 = vmatpush1.bf16.msra.mxu0 0
        %1646 = vmatprep.subr.bf16.mxu0 0
        %1647 = vmatpush1.bf16.msra.mxu0 0
        %1648 = vmatprep.subr.bf16.mxu0 0
        %1649 = vmatpush1.bf16.msra.mxu0 0
        %1650 = vmatprep.subr.bf16.mxu0 0
        %1651 = vmatpush1.bf16.msra.mxu0 0
        %1652 = vmatprep.subr.bf16.mxu0 0
        %1653 = vmatpush1.bf16.msra.mxu0 0
        %1654 = vmatprep.subr.bf16.mxu0 0
        %1655 = vmatpush1.bf16.msra.mxu0 0
        %1656 = vmatprep.subr.bf16.mxu0 0
        %1657 = vmatpush1.bf16.msra.mxu0 0
        %1658 = vmatprep.subr.bf16.mxu0 0
        %1659 = vmatpush1.bf16.msra.mxu0 0
        %1660 = vmatprep.subr.bf16.mxu0 0
        %1661 = vmatpush1.bf16.msra.mxu0 0
        %1662 = vmatprep.mubr.bf16.mxu0 0
        %1663 = vmatmul.mubr.bf16.gmra.mrb[0].mxu0 %v1628
        %v1664 = vpop.f32.mrb[0].mxu0
        %v1665 = vadd.f32 %v1613, %v1664
        %v1666 = vpop.f32.mrb[0].mxu0
        %v1667 = vpop.f32.mrb[0].mxu0
        %v1668 = vadd.f32 %v1613, %v1667
        %v1669 = vpop.f32.mrb[0].mxu0
        %1670 = vdwg.mxu0
        %v1671 = vadd.f32 %v612, %v1665
        %v1672 = vadd.f32 %v613, %v1668
        %v1673 = vld [vmem:[%s575] sm:$0x1]
        %v1674 = vld [vmem:[%s578] sm:$0x1]
        %v1675 = vsel %vm638, %v1671, 0.0
        %1676 = vadd.xlane.f32.xlu0 %v1675
        %v1677 = vpop.xlane.xlu0 %1676
        %v1678 = vsel %vm638, %v1672, 0.0
        %1679 = vadd.xlane.f32.xlu0 %v1678
        %v1680 = vpop.xlane.xlu0 %1679
        %v1681 = vrcp.pop 32.0
        %v1682 = vmul.f32 %v1677, %v1681
        %v1683 = vmul.f32 %v1680, %v1681
        %v1684 = vsub.f32 %v1671, %v1682
        %v1685 = vsub.f32 %v1672, %v1683
        %v1686 = vmul.f32 %v1684, %v1684
        %v1687 = vmul.f32 %v1685, %v1685
        %v1688 = vsel %vm638, %v1686, 0.0
        %1689 = vadd.xlane.f32.xlu0 %v1688
        %v1690 = vpop.xlane.xlu0 %1689
        %v1691 = vsel %vm638, %v1687, 0.0
        %1692 = vadd.xlane.f32.xlu0 %v1691
        %v1693 = vpop.xlane.xlu0 %1692
        %v1694 = vmul.f32 %v1690, %v1681
        %v1695 = vmul.f32 %v1693, %v1681
        %v1696 = vadd.f32 %v1694, 1e-05
        %v1697 = vadd.f32 %v1695, 1e-05
        %v1698 = vrsqrt.pop %v1696
        %v1699 = vrsqrt.pop %v1697
        %v1700 = vmul.f32 %v1684, %v1698
        %v1701 = vmul.f32 %v1685, %v1699
        %v1703 = vlaneseq
        %v1704 = vshrl.u32 %v1703, 7
        %v1705 = vsub.s32 0, %v1704
        %v1706 = vrot.slane %v1673, %v1705
        %v1708 = vmul.f32 %v1700, %v1706
        %v1709 = vmul.f32 %v1701, %v1706
        %v1711 = vlaneseq
        %v1712 = vshrl.u32 %v1711, 7
        %v1713 = vsub.s32 0, %v1712
        %v1714 = vrot.slane %v1674, %v1713
        %v1716 = vadd.f32 %v1708, %v1714
        %v1717 = vadd.f32 %v1709, %v1714
        %v1718 = vpack.c.bf16 %v1717, %v1716
        %v1719 = vld [vmem:[%s583] sm:$0xff]
        %v1720 = vld [vmem:[%s583 + $0x8] sm:$0xff]
        %v1721 = vld [vmem:[%s583 + $0x10] sm:$0xff]
        %v1722 = vld [vmem:[%s583 + $0x18] sm:$0xff]
        %v1723 = vld [vmem:[%s583 + $0x20] sm:$0xff]
        %v1724 = vld [vmem:[%s583 + $0x28] sm:$0xff]
        %v1725 = vld [vmem:[%s583 + $0x30] sm:$0xff]
        %v1726 = vld [vmem:[%s583 + $0x38] sm:$0xff]
        %v1727 = vld [vmem:[%s583 + $0x40] sm:$0xff]
        %v1728 = vld [vmem:[%s583 + $0x48] sm:$0xff]
        %v1729 = vld [vmem:[%s583 + $0x50] sm:$0xff]
        %v1730 = vld [vmem:[%s583 + $0x58] sm:$0xff]
        %v1731 = vld [vmem:[%s583 + $0x60] sm:$0xff]
        %v1732 = vld [vmem:[%s583 + $0x68] sm:$0xff]
        %v1733 = vld [vmem:[%s583 + $0x70] sm:$0xff]
        %v1734 = vld [vmem:[%s583 + $0x78] sm:$0xff]
        %v1735 = vld [vmem:[%s583 + $0x80] sm:$0xff]
        %v1736 = vld [vmem:[%s583 + $0x88] sm:$0xff]
        %v1737 = vld [vmem:[%s583 + $0x90] sm:$0xff]
        %v1738 = vld [vmem:[%s583 + $0x98] sm:$0xff]
        %v1739 = vld [vmem:[%s583 + $0xa0] sm:$0xff]
        %v1740 = vld [vmem:[%s583 + $0xa8] sm:$0xff]
        %v1741 = vld [vmem:[%s583 + $0xb0] sm:$0xff]
        %v1742 = vld [vmem:[%s583 + $0xb8] sm:$0xff]
        %v1743 = vld [vmem:[%s583 + $0xc0] sm:$0xff]
        %v1744 = vld [vmem:[%s583 + $0xc8] sm:$0xff]
        %v1745 = vld [vmem:[%s583 + $0xd0] sm:$0xff]
        %v1746 = vld [vmem:[%s583 + $0xd8] sm:$0xff]
        %v1747 = vld [vmem:[%s583 + $0xe0] sm:$0xff]
        %v1748 = vld [vmem:[%s583 + $0xe8] sm:$0xff]
        %v1749 = vld [vmem:[%s583 + $0xf0] sm:$0xff]
        %v1750 = vld [vmem:[%s583 + $0xf8] sm:$0xff]
        %v1751 = vld [vmem:[%s587] sm:$0xff]
        %v1752 = vld [vmem:[%s587 + $0x8] sm:$0xff]
        %v1755 = vlaneseq
        %v1756 = vshrl.u32 %v1755, 7
        %v1757 = vsub.s32 0, %v1756
        %v1758 = vrot.slane %v1751, %v1757
        %v1759 = vlaneseq
        %v1760 = vshrl.u32 %v1759, 7
        %v1761 = vsub.s32 1, %v1760
        %v1762 = vrot.slane %v1751, %v1761
        %v1763 = vlaneseq
        %v1764 = vshrl.u32 %v1763, 7
        %v1765 = vsub.s32 2, %v1764
        %v1766 = vrot.slane %v1751, %v1765
        %v1767 = vlaneseq
        %v1768 = vshrl.u32 %v1767, 7
        %v1769 = vsub.s32 3, %v1768
        %v1770 = vrot.slane %v1751, %v1769
        %v1771 = vlaneseq
        %v1772 = vshrl.u32 %v1771, 7
        %v1773 = vsub.s32 4, %v1772
        %v1774 = vrot.slane %v1751, %v1773
        %v1775 = vlaneseq
        %v1776 = vshrl.u32 %v1775, 7
        %v1777 = vsub.s32 5, %v1776
        %v1778 = vrot.slane %v1751, %v1777
        %v1779 = vlaneseq
        %v1780 = vshrl.u32 %v1779, 7
        %v1781 = vsub.s32 6, %v1780
        %v1782 = vrot.slane %v1751, %v1781
        %v1783 = vlaneseq
        %v1784 = vshrl.u32 %v1783, 7
        %v1785 = vsub.s32 7, %v1784
        %v1786 = vrot.slane %v1751, %v1785
        %v1787 = vlaneseq
        %v1788 = vshrl.u32 %v1787, 7
        %v1789 = vsub.s32 0, %v1788
        %v1790 = vrot.slane %v1752, %v1789
        %v1791 = vlaneseq
        %v1792 = vshrl.u32 %v1791, 7
        %v1793 = vsub.s32 1, %v1792
        %v1794 = vrot.slane %v1752, %v1793
        %v1795 = vlaneseq
        %v1796 = vshrl.u32 %v1795, 7
        %v1797 = vsub.s32 2, %v1796
        %v1798 = vrot.slane %v1752, %v1797
        %v1799 = vlaneseq
        %v1800 = vshrl.u32 %v1799, 7
        %v1801 = vsub.s32 3, %v1800
        %v1802 = vrot.slane %v1752, %v1801
        %v1803 = vlaneseq
        %v1804 = vshrl.u32 %v1803, 7
        %v1805 = vsub.s32 4, %v1804
        %v1806 = vrot.slane %v1752, %v1805
        %v1807 = vlaneseq
        %v1808 = vshrl.u32 %v1807, 7
        %v1809 = vsub.s32 5, %v1808
        %v1810 = vrot.slane %v1752, %v1809
        %v1811 = vlaneseq
        %v1812 = vshrl.u32 %v1811, 7
        %v1813 = vsub.s32 6, %v1812
        %v1814 = vrot.slane %v1752, %v1813
        %v1815 = vlaneseq
        %v1816 = vshrl.u32 %v1815, 7
        %v1817 = vsub.s32 7, %v1816
        %v1818 = vrot.slane %v1752, %v1817
        %v1867 = vunpack.c.l.b16 %v1719
        %v1868 = vunpack.c.h.b16 %v1719
        %v1869 = vunpack.c.l.b16 %v1720
        %v1870 = vunpack.c.h.b16 %v1720
        %v1871 = vunpack.c.l.b16 %v1721
        %v1872 = vunpack.c.h.b16 %v1721
        %v1873 = vunpack.c.l.b16 %v1722
        %v1874 = vunpack.c.h.b16 %v1722
        %v1875 = vunpack.c.l.b16 %v1723
        %v1876 = vunpack.c.h.b16 %v1723
        %v1877 = vunpack.c.l.b16 %v1724
        %v1878 = vunpack.c.h.b16 %v1724
        %v1879 = vunpack.c.l.b16 %v1725
        %v1880 = vunpack.c.h.b16 %v1725
        %v1881 = vunpack.c.l.b16 %v1726
        %v1882 = vunpack.c.h.b16 %v1726
        %v1883 = vunpack.c.l.b16 %v1727
        %v1884 = vunpack.c.h.b16 %v1727
        %v1885 = vunpack.c.l.b16 %v1728
        %v1886 = vunpack.c.h.b16 %v1728
        %v1887 = vunpack.c.l.b16 %v1729
        %v1888 = vunpack.c.h.b16 %v1729
        %v1889 = vunpack.c.l.b16 %v1730
        %v1890 = vunpack.c.h.b16 %v1730
        %v1891 = vunpack.c.l.b16 %v1731
        %v1892 = vunpack.c.h.b16 %v1731
        %v1893 = vunpack.c.l.b16 %v1732
        %v1894 = vunpack.c.h.b16 %v1732
        %v1895 = vunpack.c.l.b16 %v1733
        %v1896 = vunpack.c.h.b16 %v1733
        %v1897 = vunpack.c.l.b16 %v1734
        %v1898 = vunpack.c.h.b16 %v1734
        %v1899 = vunpack.c.l.b16 %v1735
        %v1900 = vunpack.c.h.b16 %v1735
        %v1901 = vunpack.c.l.b16 %v1736
        %v1902 = vunpack.c.h.b16 %v1736
        %v1903 = vunpack.c.l.b16 %v1737
        %v1904 = vunpack.c.h.b16 %v1737
        %v1905 = vunpack.c.l.b16 %v1738
        %v1906 = vunpack.c.h.b16 %v1738
        %v1907 = vunpack.c.l.b16 %v1739
        %v1908 = vunpack.c.h.b16 %v1739
        %v1909 = vunpack.c.l.b16 %v1740
        %v1910 = vunpack.c.h.b16 %v1740
        %v1911 = vunpack.c.l.b16 %v1741
        %v1912 = vunpack.c.h.b16 %v1741
        %v1913 = vunpack.c.l.b16 %v1742
        %v1914 = vunpack.c.h.b16 %v1742
        %v1915 = vunpack.c.l.b16 %v1743
        %v1916 = vunpack.c.h.b16 %v1743
        %v1917 = vunpack.c.l.b16 %v1744
        %v1918 = vunpack.c.h.b16 %v1744
        %v1919 = vunpack.c.l.b16 %v1745
        %v1920 = vunpack.c.h.b16 %v1745
        %v1921 = vunpack.c.l.b16 %v1746
        %v1922 = vunpack.c.h.b16 %v1746
        %v1923 = vunpack.c.l.b16 %v1747
        %v1924 = vunpack.c.h.b16 %v1747
        %v1925 = vunpack.c.l.b16 %v1748
        %v1926 = vunpack.c.h.b16 %v1748
        %v1927 = vunpack.c.l.b16 %v1749
        %v1928 = vunpack.c.h.b16 %v1749
        %v1929 = vunpack.c.l.b16 %v1750
        %v1930 = vunpack.c.h.b16 %v1750
        %v1931 = vpack.c.b16 %v1883, %v1867
        %v1932 = vpack.c.b16 %v1884, %v1868
        %v1933 = vpack.c.b16 %v1885, %v1869
        %v1934 = vpack.c.b16 %v1886, %v1870
        %v1935 = vpack.c.b16 %v1887, %v1871
        %v1936 = vpack.c.b16 %v1888, %v1872
        %v1937 = vpack.c.b16 %v1889, %v1873
        %v1938 = vpack.c.b16 %v1890, %v1874
        %v1939 = vpack.c.b16 %v1891, %v1875
        %v1940 = vpack.c.b16 %v1892, %v1876
        %v1941 = vpack.c.b16 %v1893, %v1877
        %v1942 = vpack.c.b16 %v1894, %v1878
        %v1943 = vpack.c.b16 %v1895, %v1879
        %v1944 = vpack.c.b16 %v1896, %v1880
        %v1945 = vpack.c.b16 %v1897, %v1881
        %v1946 = vpack.c.b16 %v1898, %v1882
        %v1947 = vpack.c.b16 %v1915, %v1899
        %v1948 = vpack.c.b16 %v1916, %v1900
        %v1949 = vpack.c.b16 %v1917, %v1901
        %v1950 = vpack.c.b16 %v1918, %v1902
        %v1951 = vpack.c.b16 %v1919, %v1903
        %v1952 = vpack.c.b16 %v1920, %v1904
        %v1953 = vpack.c.b16 %v1921, %v1905
        %v1954 = vpack.c.b16 %v1922, %v1906
        %v1955 = vpack.c.b16 %v1923, %v1907
        %v1956 = vpack.c.b16 %v1924, %v1908
        %v1957 = vpack.c.b16 %v1925, %v1909
        %v1958 = vpack.c.b16 %v1926, %v1910
        %v1959 = vpack.c.b16 %v1927, %v1911
        %v1960 = vpack.c.b16 %v1928, %v1912
        %v1961 = vpack.c.b16 %v1929, %v1913
        %v1962 = vpack.c.b16 %v1930, %v1914
        %v1996 = vsel %vm638, %v1718, 0
        %1998 = vmatprep.subr.bf16.mxu0 %v1932
        %1999 = vmatpush1.bf16.msra.mxu0 %v1931
        %2000 = vmatprep.subr.bf16.mxu0 %v1948
        %2001 = vmatpush1.bf16.msra.mxu0 %v1947
        %2002 = vmatprep.subr.bf16.mxu0 0
        %2003 = vmatpush1.bf16.msra.mxu0 0
        %2004 = vmatprep.subr.bf16.mxu0 0
        %2005 = vmatpush1.bf16.msra.mxu0 0
        %2006 = vmatprep.subr.bf16.mxu0 0
        %2007 = vmatpush1.bf16.msra.mxu0 0
        %2008 = vmatprep.subr.bf16.mxu0 0
        %2009 = vmatpush1.bf16.msra.mxu0 0
        %2010 = vmatprep.subr.bf16.mxu0 0
        %2011 = vmatpush1.bf16.msra.mxu0 0
        %2012 = vmatprep.subr.bf16.mxu0 0
        %2013 = vmatpush1.bf16.msra.mxu0 0
        %2014 = vmatprep.subr.bf16.mxu0 0
        %2015 = vmatpush1.bf16.msra.mxu0 0
        %2016 = vmatprep.subr.bf16.mxu0 0
        %2017 = vmatpush1.bf16.msra.mxu0 0
        %2018 = vmatprep.subr.bf16.mxu0 0
        %2019 = vmatpush1.bf16.msra.mxu0 0
        %2020 = vmatprep.subr.bf16.mxu0 0
        %2021 = vmatpush1.bf16.msra.mxu0 0
        %2022 = vmatprep.subr.bf16.mxu0 0
        %2023 = vmatpush1.bf16.msra.mxu0 0
        %2024 = vmatprep.subr.bf16.mxu0 0
        %2025 = vmatpush1.bf16.msra.mxu0 0
        %2026 = vmatprep.subr.bf16.mxu0 0
        %2027 = vmatpush1.bf16.msra.mxu0 0
        %2028 = vmatprep.subr.bf16.mxu0 0
        %2029 = vmatpush1.bf16.msra.mxu0 0
        %2030 = vmatprep.mubr.bf16.mxu0 0
        %2031 = vmatmul.mubr.bf16.gmra.mrb[0].mxu0 %v1996
        %v2032 = vpop.f32.mrb[0].mxu0
        %v2033 = vadd.f32 %v1758, %v2032
        %v2034 = vpop.f32.mrb[0].mxu0
        %v2035 = vadd.f32 %v1762, %v2034
        %v2036 = vpop.f32.mrb[0].mxu0
        %v2037 = vadd.f32 %v1758, %v2036
        %v2038 = vpop.f32.mrb[0].mxu0
        %v2039 = vadd.f32 %v1762, %v2038
        %2040 = vdwg.mxu0
        %2041 = vmatprep.subr.bf16.mxu0 %v1934
        %2042 = vmatpush1.bf16.msra.mxu0 %v1933
        %2043 = vmatprep.subr.bf16.mxu0 %v1950
        %2044 = vmatpush1.bf16.msra.mxu0 %v1949
        %2045 = vmatprep.subr.bf16.mxu0 0
        %2046 = vmatpush1.bf16.msra.mxu0 0
        %2047 = vmatprep.subr.bf16.mxu0 0
        %2048 = vmatpush1.bf16.msra.mxu0 0
        %2049 = vmatprep.subr.bf16.mxu0 0
        %2050 = vmatpush1.bf16.msra.mxu0 0
        %2051 = vmatprep.subr.bf16.mxu0 0
        %2052 = vmatpush1.bf16.msra.mxu0 0
        %2053 = vmatprep.subr.bf16.mxu0 0
        %2054 = vmatpush1.bf16.msra.mxu0 0
        %2055 = vmatprep.subr.bf16.mxu0 0
        %2056 = vmatpush1.bf16.msra.mxu0 0
        %2057 = vmatprep.subr.bf16.mxu0 0
        %2058 = vmatpush1.bf16.msra.mxu0 0
        %2059 = vmatprep.subr.bf16.mxu0 0
        %2060 = vmatpush1.bf16.msra.mxu0 0
        %2061 = vmatprep.subr.bf16.mxu0 0
        %2062 = vmatpush1.bf16.msra.mxu0 0
        %2063 = vmatprep.subr.bf16.mxu0 0
        %2064 = vmatpush1.bf16.msra.mxu0 0
        %2065 = vmatprep.subr.bf16.mxu0 0
        %2066 = vmatpush1.bf16.msra.mxu0 0
        %2067 = vmatprep.subr.bf16.mxu0 0
        %2068 = vmatpush1.bf16.msra.mxu0 0
        %2069 = vmatprep.subr.bf16.mxu0 0
        %2070 = vmatpush1.bf16.msra.mxu0 0
        %2071 = vmatprep.subr.bf16.mxu0 0
        %2072 = vmatpush1.bf16.msra.mxu0 0
        %2073 = vmatprep.mubr.bf16.mxu0 0
        %2074 = vmatmul.mubr.bf16.gmra.mrb[0].mxu0 %v1996
        %v2075 = vpop.f32.mrb[0].mxu0
        %v2076 = vadd.f32 %v1766, %v2075
        %v2077 = vpop.f32.mrb[0].mxu0
        %v2078 = vadd.f32 %v1770, %v2077
        %v2079 = vpop.f32.mrb[0].mxu0
        %v2080 = vadd.f32 %v1766, %v2079
        %v2081 = vpop.f32.mrb[0].mxu0
        %v2082 = vadd.f32 %v1770, %v2081
        %2083 = vdwg.mxu0
        %2084 = vmatprep.subr.bf16.mxu0 %v1936
        %2085 = vmatpush1.bf16.msra.mxu0 %v1935
        %2086 = vmatprep.subr.bf16.mxu0 %v1952
        %2087 = vmatpush1.bf16.msra.mxu0 %v1951
        %2088 = vmatprep.subr.bf16.mxu0 0
        %2089 = vmatpush1.bf16.msra.mxu0 0
        %2090 = vmatprep.subr.bf16.mxu0 0
        %2091 = vmatpush1.bf16.msra.mxu0 0
        %2092 = vmatprep.subr.bf16.mxu0 0
        %2093 = vmatpush1.bf16.msra.mxu0 0
        %2094 = vmatprep.subr.bf16.mxu0 0
        %2095 = vmatpush1.bf16.msra.mxu0 0
        %2096 = vmatprep.subr.bf16.mxu0 0
        %2097 = vmatpush1.bf16.msra.mxu0 0
        %2098 = vmatprep.subr.bf16.mxu0 0
        %2099 = vmatpush1.bf16.msra.mxu0 0
        %2100 = vmatprep.subr.bf16.mxu0 0
        %2101 = vmatpush1.bf16.msra.mxu0 0
        %2102 = vmatprep.subr.bf16.mxu0 0
        %2103 = vmatpush1.bf16.msra.mxu0 0
        %2104 = vmatprep.subr.bf16.mxu0 0
        %2105 = vmatpush1.bf16.msra.mxu0 0
        %2106 = vmatprep.subr.bf16.mxu0 0
        %2107 = vmatpush1.bf16.msra.mxu0 0
        %2108 = vmatprep.subr.bf16.mxu0 0
        %2109 = vmatpush1.bf16.msra.mxu0 0
        %2110 = vmatprep.subr.bf16.mxu0 0
        %2111 = vmatpush1.bf16.msra.mxu0 0
        %2112 = vmatprep.subr.bf16.mxu0 0
        %2113 = vmatpush1.bf16.msra.mxu0 0
        %2114 = vmatprep.subr.bf16.mxu0 0
        %2115 = vmatpush1.bf16.msra.mxu0 0
        %2116 = vmatprep.mubr.bf16.mxu0 0
        %2117 = vmatmul.mubr.bf16.gmra.mrb[0].mxu0 %v1996
        %v2118 = vpop.f32.mrb[0].mxu0
        %v2119 = vadd.f32 %v1774, %v2118
        %v2120 = vpop.f32.mrb[0].mxu0
        %v2121 = vadd.f32 %v1778, %v2120
        %v2122 = vpop.f32.mrb[0].mxu0
        %v2123 = vadd.f32 %v1774, %v2122
        %v2124 = vpop.f32.mrb[0].mxu0
        %v2125 = vadd.f32 %v1778, %v2124
        %2126 = vdwg.mxu0
        %2127 = vmatprep.subr.bf16.mxu0 %v1938
        %2128 = vmatpush1.bf16.msra.mxu0 %v1937
        %2129 = vmatprep.subr.bf16.mxu0 %v1954
        %2130 = vmatpush1.bf16.msra.mxu0 %v1953
        %2131 = vmatprep.subr.bf16.mxu0 0
        %2132 = vmatpush1.bf16.msra.mxu0 0
        %2133 = vmatprep.subr.bf16.mxu0 0
        %2134 = vmatpush1.bf16.msra.mxu0 0
        %2135 = vmatprep.subr.bf16.mxu0 0
        %2136 = vmatpush1.bf16.msra.mxu0 0
        %2137 = vmatprep.subr.bf16.mxu0 0
        %2138 = vmatpush1.bf16.msra.mxu0 0
        %2139 = vmatprep.subr.bf16.mxu0 0
        %2140 = vmatpush1.bf16.msra.mxu0 0
        %2141 = vmatprep.subr.bf16.mxu0 0
        %2142 = vmatpush1.bf16.msra.mxu0 0
        %2143 = vmatprep.subr.bf16.mxu0 0
        %2144 = vmatpush1.bf16.msra.mxu0 0
        %2145 = vmatprep.subr.bf16.mxu0 0
        %2146 = vmatpush1.bf16.msra.mxu0 0
        %2147 = vmatprep.subr.bf16.mxu0 0
        %2148 = vmatpush1.bf16.msra.mxu0 0
        %2149 = vmatprep.subr.bf16.mxu0 0
        %2150 = vmatpush1.bf16.msra.mxu0 0
        %2151 = vmatprep.subr.bf16.mxu0 0
        %2152 = vmatpush1.bf16.msra.mxu0 0
        %2153 = vmatprep.subr.bf16.mxu0 0
        %2154 = vmatpush1.bf16.msra.mxu0 0
        %2155 = vmatprep.subr.bf16.mxu0 0
        %2156 = vmatpush1.bf16.msra.mxu0 0
        %2157 = vmatprep.subr.bf16.mxu0 0
        %2158 = vmatpush1.bf16.msra.mxu0 0
        %2159 = vmatprep.mubr.bf16.mxu0 0
        %2160 = vmatmul.mubr.bf16.gmra.mrb[0].mxu0 %v1996
        %v2161 = vpop.f32.mrb[0].mxu0
        %v2162 = vadd.f32 %v1782, %v2161
        %v2163 = vpop.f32.mrb[0].mxu0
        %v2164 = vadd.f32 %v1786, %v2163
        %v2165 = vpop.f32.mrb[0].mxu0
        %v2166 = vadd.f32 %v1782, %v2165
        %v2167 = vpop.f32.mrb[0].mxu0
        %v2168 = vadd.f32 %v1786, %v2167
        %2169 = vdwg.mxu0
        %2170 = vmatprep.subr.bf16.mxu0 %v1940
        %2171 = vmatpush1.bf16.msra.mxu0 %v1939
        %2172 = vmatprep.subr.bf16.mxu0 %v1956
        %2173 = vmatpush1.bf16.msra.mxu0 %v1955
        %2174 = vmatprep.subr.bf16.mxu0 0
        %2175 = vmatpush1.bf16.msra.mxu0 0
        %2176 = vmatprep.subr.bf16.mxu0 0
        %2177 = vmatpush1.bf16.msra.mxu0 0
        %2178 = vmatprep.subr.bf16.mxu0 0
        %2179 = vmatpush1.bf16.msra.mxu0 0
        %2180 = vmatprep.subr.bf16.mxu0 0
        %2181 = vmatpush1.bf16.msra.mxu0 0
        %2182 = vmatprep.subr.bf16.mxu0 0
        %2183 = vmatpush1.bf16.msra.mxu0 0
        %2184 = vmatprep.subr.bf16.mxu0 0
        %2185 = vmatpush1.bf16.msra.mxu0 0
        %2186 = vmatprep.subr.bf16.mxu0 0
        %2187 = vmatpush1.bf16.msra.mxu0 0
        %2188 = vmatprep.subr.bf16.mxu0 0
        %2189 = vmatpush1.bf16.msra.mxu0 0
        %2190 = vmatprep.subr.bf16.mxu0 0
        %2191 = vmatpush1.bf16.msra.mxu0 0
        %2192 = vmatprep.subr.bf16.mxu0 0
        %2193 = vmatpush1.bf16.msra.mxu0 0
        %2194 = vmatprep.subr.bf16.mxu0 0
        %2195 = vmatpush1.bf16.msra.mxu0 0
        %2196 = vmatprep.subr.bf16.mxu0 0
        %2197 = vmatpush1.bf16.msra.mxu0 0
        %2198 = vmatprep.subr.bf16.mxu0 0
        %2199 = vmatpush1.bf16.msra.mxu0 0
        %2200 = vmatprep.subr.bf16.mxu0 0
        %2201 = vmatpush1.bf16.msra.mxu0 0
        %2202 = vmatprep.mubr.bf16.mxu0 0
        %2203 = vmatmul.mubr.bf16.gmra.mrb[0].mxu0 %v1996
        %v2204 = vpop.f32.mrb[0].mxu0
        %v2205 = vadd.f32 %v1790, %v2204
        %v2206 = vpop.f32.mrb[0].mxu0
        %v2207 = vadd.f32 %v1794, %v2206
        %v2208 = vpop.f32.mrb[0].mxu0
        %v2209 = vadd.f32 %v1790, %v2208
        %v2210 = vpop.f32.mrb[0].mxu0
        %v2211 = vadd.f32 %v1794, %v2210
        %2212 = vdwg.mxu0
        %2213 = vmatprep.subr.bf16.mxu0 %v1942
        %2214 = vmatpush1.bf16.msra.mxu0 %v1941
        %2215 = vmatprep.subr.bf16.mxu0 %v1958
        %2216 = vmatpush1.bf16.msra.mxu0 %v1957
        %2217 = vmatprep.subr.bf16.mxu0 0
        %2218 = vmatpush1.bf16.msra.mxu0 0
        %2219 = vmatprep.subr.bf16.mxu0 0
        %2220 = vmatpush1.bf16.msra.mxu0 0
        %2221 = vmatprep.subr.bf16.mxu0 0
        %2222 = vmatpush1.bf16.msra.mxu0 0
        %2223 = vmatprep.subr.bf16.mxu0 0
        %2224 = vmatpush1.bf16.msra.mxu0 0
        %2225 = vmatprep.subr.bf16.mxu0 0
        %2226 = vmatpush1.bf16.msra.mxu0 0
        %2227 = vmatprep.subr.bf16.mxu0 0
        %2228 = vmatpush1.bf16.msra.mxu0 0
        %2229 = vmatprep.subr.bf16.mxu0 0
        %2230 = vmatpush1.bf16.msra.mxu0 0
        %2231 = vmatprep.subr.bf16.mxu0 0
        %2232 = vmatpush1.bf16.msra.mxu0 0
        %2233 = vmatprep.subr.bf16.mxu0 0
        %2234 = vmatpush1.bf16.msra.mxu0 0
        %2235 = vmatprep.subr.bf16.mxu0 0
        %2236 = vmatpush1.bf16.msra.mxu0 0
        %2237 = vmatprep.subr.bf16.mxu0 0
        %2238 = vmatpush1.bf16.msra.mxu0 0
        %2239 = vmatprep.subr.bf16.mxu0 0
        %2240 = vmatpush1.bf16.msra.mxu0 0
        %2241 = vmatprep.subr.bf16.mxu0 0
        %2242 = vmatpush1.bf16.msra.mxu0 0
        %2243 = vmatprep.subr.bf16.mxu0 0
        %2244 = vmatpush1.bf16.msra.mxu0 0
        %2245 = vmatprep.mubr.bf16.mxu0 0
        %2246 = vmatmul.mubr.bf16.gmra.mrb[0].mxu0 %v1996
        %v2247 = vpop.f32.mrb[0].mxu0
        %v2248 = vadd.f32 %v1798, %v2247
        %v2249 = vpop.f32.mrb[0].mxu0
        %v2250 = vadd.f32 %v1802, %v2249
        %v2251 = vpop.f32.mrb[0].mxu0
        %v2252 = vadd.f32 %v1798, %v2251
        %v2253 = vpop.f32.mrb[0].mxu0
        %v2254 = vadd.f32 %v1802, %v2253
        %2255 = vdwg.mxu0
        %2256 = vmatprep.subr.bf16.mxu0 %v1944
        %2257 = vmatpush1.bf16.msra.mxu0 %v1943
        %2258 = vmatprep.subr.bf16.mxu0 %v1960
        %2259 = vmatpush1.bf16.msra.mxu0 %v1959
        %2260 = vmatprep.subr.bf16.mxu0 0
        %2261 = vmatpush1.bf16.msra.mxu0 0
        %2262 = vmatprep.subr.bf16.mxu0 0
        %2263 = vmatpush1.bf16.msra.mxu0 0
        %2264 = vmatprep.subr.bf16.mxu0 0
        %2265 = vmatpush1.bf16.msra.mxu0 0
        %2266 = vmatprep.subr.bf16.mxu0 0
        %2267 = vmatpush1.bf16.msra.mxu0 0
        %2268 = vmatprep.subr.bf16.mxu0 0
        %2269 = vmatpush1.bf16.msra.mxu0 0
        %2270 = vmatprep.subr.bf16.mxu0 0
        %2271 = vmatpush1.bf16.msra.mxu0 0
        %2272 = vmatprep.subr.bf16.mxu0 0
        %2273 = vmatpush1.bf16.msra.mxu0 0
        %2274 = vmatprep.subr.bf16.mxu0 0
        %2275 = vmatpush1.bf16.msra.mxu0 0
        %2276 = vmatprep.subr.bf16.mxu0 0
        %2277 = vmatpush1.bf16.msra.mxu0 0
        %2278 = vmatprep.subr.bf16.mxu0 0
        %2279 = vmatpush1.bf16.msra.mxu0 0
        %2280 = vmatprep.subr.bf16.mxu0 0
        %2281 = vmatpush1.bf16.msra.mxu0 0
        %2282 = vmatprep.subr.bf16.mxu0 0
        %2283 = vmatpush1.bf16.msra.mxu0 0
        %2284 = vmatprep.subr.bf16.mxu0 0
        %2285 = vmatpush1.bf16.msra.mxu0 0
        %2286 = vmatprep.subr.bf16.mxu0 0
        %2287 = vmatpush1.bf16.msra.mxu0 0
        %2288 = vmatprep.mubr.bf16.mxu0 0
        %2289 = vmatmul.mubr.bf16.gmra.mrb[0].mxu0 %v1996
        %v2290 = vpop.f32.mrb[0].mxu0
        %v2291 = vadd.f32 %v1806, %v2290
        %v2292 = vpop.f32.mrb[0].mxu0
        %v2293 = vadd.f32 %v1810, %v2292
        %v2294 = vpop.f32.mrb[0].mxu0
        %v2295 = vadd.f32 %v1806, %v2294
        %v2296 = vpop.f32.mrb[0].mxu0
        %v2297 = vadd.f32 %v1810, %v2296
        %2298 = vdwg.mxu0
        %2299 = vmatprep.subr.bf16.mxu0 %v1946
        %2300 = vmatpush1.bf16.msra.mxu0 %v1945
        %2301 = vmatprep.subr.bf16.mxu0 %v1962
        %2302 = vmatpush1.bf16.msra.mxu0 %v1961
        %2303 = vmatprep.subr.bf16.mxu0 0
        %2304 = vmatpush1.bf16.msra.mxu0 0
        %2305 = vmatprep.subr.bf16.mxu0 0
        %2306 = vmatpush1.bf16.msra.mxu0 0
        %2307 = vmatprep.subr.bf16.mxu0 0
        %2308 = vmatpush1.bf16.msra.mxu0 0
        %2309 = vmatprep.subr.bf16.mxu0 0
        %2310 = vmatpush1.bf16.msra.mxu0 0
        %2311 = vmatprep.subr.bf16.mxu0 0
        %2312 = vmatpush1.bf16.msra.mxu0 0
        %2313 = vmatprep.subr.bf16.mxu0 0
        %2314 = vmatpush1.bf16.msra.mxu0 0
        %2315 = vmatprep.subr.bf16.mxu0 0
        %2316 = vmatpush1.bf16.msra.mxu0 0
        %2317 = vmatprep.subr.bf16.mxu0 0
        %2318 = vmatpush1.bf16.msra.mxu0 0
        %2319 = vmatprep.subr.bf16.mxu0 0
        %2320 = vmatpush1.bf16.msra.mxu0 0
        %2321 = vmatprep.subr.bf16.mxu0 0
        %2322 = vmatpush1.bf16.msra.mxu0 0
        %2323 = vmatprep.subr.bf16.mxu0 0
        %2324 = vmatpush1.bf16.msra.mxu0 0
        %2325 = vmatprep.subr.bf16.mxu0 0
        %2326 = vmatpush1.bf16.msra.mxu0 0
        %2327 = vmatprep.subr.bf16.mxu0 0
        %2328 = vmatpush1.bf16.msra.mxu0 0
        %2329 = vmatprep.subr.bf16.mxu0 0
        %2330 = vmatpush1.bf16.msra.mxu0 0
        %2331 = vmatprep.mubr.bf16.mxu0 0
        %2332 = vmatmul.mubr.bf16.gmra.mrb[0].mxu0 %v1996
        %v2333 = vpop.f32.mrb[0].mxu0
        %v2334 = vadd.f32 %v1814, %v2333
        %v2335 = vpop.f32.mrb[0].mxu0
        %v2336 = vadd.f32 %v1818, %v2335
        %v2337 = vpop.f32.mrb[0].mxu0
        %v2338 = vadd.f32 %v1814, %v2337
        %v2339 = vpop.f32.mrb[0].mxu0
        %v2340 = vadd.f32 %v1818, %v2339
        %2341 = vdwg.mxu0
        %v2342 = vmax.f32 %v2033, 0.0
        %v2343 = vmax.f32 %v2035, 0.0
        %v2344 = vmax.f32 %v2076, 0.0
        %v2345 = vmax.f32 %v2078, 0.0
        %v2346 = vmax.f32 %v2119, 0.0
        %v2347 = vmax.f32 %v2121, 0.0
        %v2348 = vmax.f32 %v2162, 0.0
        %v2349 = vmax.f32 %v2164, 0.0
        %v2350 = vmax.f32 %v2205, 0.0
        %v2351 = vmax.f32 %v2207, 0.0
        %v2352 = vmax.f32 %v2248, 0.0
        %v2353 = vmax.f32 %v2250, 0.0
        %v2354 = vmax.f32 %v2291, 0.0
        %v2355 = vmax.f32 %v2293, 0.0
        %v2356 = vmax.f32 %v2334, 0.0
        %v2357 = vmax.f32 %v2336, 0.0
        %v2358 = vmax.f32 %v2037, 0.0
        %v2359 = vmax.f32 %v2039, 0.0
        %v2360 = vmax.f32 %v2080, 0.0
        %v2361 = vmax.f32 %v2082, 0.0
        %v2362 = vmax.f32 %v2123, 0.0
        %v2363 = vmax.f32 %v2125, 0.0
        %v2364 = vmax.f32 %v2166, 0.0
        %v2365 = vmax.f32 %v2168, 0.0
        %v2366 = vmax.f32 %v2209, 0.0
        %v2367 = vmax.f32 %v2211, 0.0
        %v2368 = vmax.f32 %v2252, 0.0
        %v2369 = vmax.f32 %v2254, 0.0
        %v2370 = vmax.f32 %v2295, 0.0
        %v2371 = vmax.f32 %v2297, 0.0
        %v2372 = vmax.f32 %v2338, 0.0
        %v2373 = vmax.f32 %v2340, 0.0
        %v2374 = vpack.c.bf16 %v2358, %v2342
        %v2375 = vpack.c.bf16 %v2359, %v2343
        %v2376 = vpack.c.bf16 %v2360, %v2344
        %v2377 = vpack.c.bf16 %v2361, %v2345
        %v2378 = vpack.c.bf16 %v2362, %v2346
        %v2379 = vpack.c.bf16 %v2363, %v2347
        %v2380 = vpack.c.bf16 %v2364, %v2348
        %v2381 = vpack.c.bf16 %v2365, %v2349
        %v2382 = vpack.c.bf16 %v2366, %v2350
        %v2383 = vpack.c.bf16 %v2367, %v2351
        %v2384 = vpack.c.bf16 %v2368, %v2352
        %v2385 = vpack.c.bf16 %v2369, %v2353
        %v2386 = vpack.c.bf16 %v2370, %v2354
        %v2387 = vpack.c.bf16 %v2371, %v2355
        %v2388 = vpack.c.bf16 %v2372, %v2356
        %v2389 = vpack.c.bf16 %v2373, %v2357
        %v2390 = vld [vmem:[%s592] sm:$0xf]
        %v2391 = vld [vmem:[%s592 + $0x4] sm:$0xf]
        %v2392 = vld [vmem:[%s592 + $0x8] sm:$0xf]
        %v2393 = vld [vmem:[%s592 + $0xc] sm:$0xf]
        %v2394 = vld [vmem:[%s592 + $0x10] sm:$0xf]
        %v2395 = vld [vmem:[%s592 + $0x14] sm:$0xf]
        %v2396 = vld [vmem:[%s592 + $0x18] sm:$0xf]
        %v2397 = vld [vmem:[%s592 + $0x1c] sm:$0xf]
        %v2398 = vld [vmem:[%s592 + $0x20] sm:$0xf]
        %v2399 = vld [vmem:[%s592 + $0x24] sm:$0xf]
        %v2400 = vld [vmem:[%s592 + $0x28] sm:$0xf]
        %v2401 = vld [vmem:[%s592 + $0x2c] sm:$0xf]
        %v2402 = vld [vmem:[%s592 + $0x30] sm:$0xf]
        %v2403 = vld [vmem:[%s592 + $0x34] sm:$0xf]
        %v2404 = vld [vmem:[%s592 + $0x38] sm:$0xf]
        %v2405 = vld [vmem:[%s592 + $0x3c] sm:$0xf]
        %v2406 = vld [vmem:[%s592 + $0x40] sm:$0xf]
        %v2407 = vld [vmem:[%s592 + $0x44] sm:$0xf]
        %v2408 = vld [vmem:[%s592 + $0x48] sm:$0xf]
        %v2409 = vld [vmem:[%s592 + $0x4c] sm:$0xf]
        %v2410 = vld [vmem:[%s592 + $0x50] sm:$0xf]
        %v2411 = vld [vmem:[%s592 + $0x54] sm:$0xf]
        %v2412 = vld [vmem:[%s592 + $0x58] sm:$0xf]
        %v2413 = vld [vmem:[%s592 + $0x5c] sm:$0xf]
        %v2414 = vld [vmem:[%s592 + $0x60] sm:$0xf]
        %v2415 = vld [vmem:[%s592 + $0x64] sm:$0xf]
        %v2416 = vld [vmem:[%s592 + $0x68] sm:$0xf]
        %v2417 = vld [vmem:[%s592 + $0x6c] sm:$0xf]
        %v2418 = vld [vmem:[%s592 + $0x70] sm:$0xf]
        %v2419 = vld [vmem:[%s592 + $0x74] sm:$0xf]
        %v2420 = vld [vmem:[%s592 + $0x78] sm:$0xf]
        %v2421 = vld [vmem:[%s592 + $0x7c] sm:$0xf]
        %v2422 = vld [vmem:[%s592 + $0x80] sm:$0xf]
        %v2423 = vld [vmem:[%s592 + $0x84] sm:$0xf]
        %v2424 = vld [vmem:[%s592 + $0x88] sm:$0xf]
        %v2425 = vld [vmem:[%s592 + $0x8c] sm:$0xf]
        %v2426 = vld [vmem:[%s592 + $0x90] sm:$0xf]
        %v2427 = vld [vmem:[%s592 + $0x94] sm:$0xf]
        %v2428 = vld [vmem:[%s592 + $0x98] sm:$0xf]
        %v2429 = vld [vmem:[%s592 + $0x9c] sm:$0xf]
        %v2430 = vld [vmem:[%s592 + $0xa0] sm:$0xf]
        %v2431 = vld [vmem:[%s592 + $0xa4] sm:$0xf]
        %v2432 = vld [vmem:[%s592 + $0xa8] sm:$0xf]
        %v2433 = vld [vmem:[%s592 + $0xac] sm:$0xf]
        %v2434 = vld [vmem:[%s592 + $0xb0] sm:$0xf]
        %v2435 = vld [vmem:[%s592 + $0xb4] sm:$0xf]
        %v2436 = vld [vmem:[%s592 + $0xb8] sm:$0xf]
        %v2437 = vld [vmem:[%s592 + $0xbc] sm:$0xf]
        %v2438 = vld [vmem:[%s592 + $0xc0] sm:$0xf]
        %v2439 = vld [vmem:[%s592 + $0xc4] sm:$0xf]
        %v2440 = vld [vmem:[%s592 + $0xc8] sm:$0xf]
        %v2441 = vld [vmem:[%s592 + $0xcc] sm:$0xf]
        %v2442 = vld [vmem:[%s592 + $0xd0] sm:$0xf]
        %v2443 = vld [vmem:[%s592 + $0xd4] sm:$0xf]
        %v2444 = vld [vmem:[%s592 + $0xd8] sm:$0xf]
        %v2445 = vld [vmem:[%s592 + $0xdc] sm:$0xf]
        %v2446 = vld [vmem:[%s592 + $0xe0] sm:$0xf]
        %v2447 = vld [vmem:[%s592 + $0xe4] sm:$0xf]
        %v2448 = vld [vmem:[%s592 + $0xe8] sm:$0xf]
        %v2449 = vld [vmem:[%s592 + $0xec] sm:$0xf]
        %v2450 = vld [vmem:[%s592 + $0xf0] sm:$0xf]
        %v2451 = vld [vmem:[%s592 + $0xf4] sm:$0xf]
        %v2452 = vld [vmem:[%s592 + $0xf8] sm:$0xf]
        %v2453 = vld [vmem:[%s592 + $0xfc] sm:$0xf]
        %v2454 = vld [vmem:[%s592 + $0x100] sm:$0xf]
        %v2455 = vld [vmem:[%s592 + $0x104] sm:$0xf]
        %v2456 = vld [vmem:[%s592 + $0x108] sm:$0xf]
        %v2457 = vld [vmem:[%s592 + $0x10c] sm:$0xf]
        %v2458 = vld [vmem:[%s592 + $0x110] sm:$0xf]
        %v2459 = vld [vmem:[%s592 + $0x114] sm:$0xf]
        %v2460 = vld [vmem:[%s592 + $0x118] sm:$0xf]
        %v2461 = vld [vmem:[%s592 + $0x11c] sm:$0xf]
        %v2462 = vld [vmem:[%s592 + $0x120] sm:$0xf]
        %v2463 = vld [vmem:[%s592 + $0x124] sm:$0xf]
        %v2464 = vld [vmem:[%s592 + $0x128] sm:$0xf]
        %v2465 = vld [vmem:[%s592 + $0x12c] sm:$0xf]
        %v2466 = vld [vmem:[%s592 + $0x130] sm:$0xf]
        %v2467 = vld [vmem:[%s592 + $0x134] sm:$0xf]
        %v2468 = vld [vmem:[%s592 + $0x138] sm:$0xf]
        %v2469 = vld [vmem:[%s592 + $0x13c] sm:$0xf]
        %v2470 = vld [vmem:[%s592 + $0x140] sm:$0xf]
        %v2471 = vld [vmem:[%s592 + $0x144] sm:$0xf]
        %v2472 = vld [vmem:[%s592 + $0x148] sm:$0xf]
        %v2473 = vld [vmem:[%s592 + $0x14c] sm:$0xf]
        %v2474 = vld [vmem:[%s592 + $0x150] sm:$0xf]
        %v2475 = vld [vmem:[%s592 + $0x154] sm:$0xf]
        %v2476 = vld [vmem:[%s592 + $0x158] sm:$0xf]
        %v2477 = vld [vmem:[%s592 + $0x15c] sm:$0xf]
        %v2478 = vld [vmem:[%s592 + $0x160] sm:$0xf]
        %v2479 = vld [vmem:[%s592 + $0x164] sm:$0xf]
        %v2480 = vld [vmem:[%s592 + $0x168] sm:$0xf]
        %v2481 = vld [vmem:[%s592 + $0x16c] sm:$0xf]
        %v2482 = vld [vmem:[%s592 + $0x170] sm:$0xf]
        %v2483 = vld [vmem:[%s592 + $0x174] sm:$0xf]
        %v2484 = vld [vmem:[%s592 + $0x178] sm:$0xf]
        %v2485 = vld [vmem:[%s592 + $0x17c] sm:$0xf]
        %v2486 = vld [vmem:[%s592 + $0x180] sm:$0xf]
        %v2487 = vld [vmem:[%s592 + $0x184] sm:$0xf]
        %v2488 = vld [vmem:[%s592 + $0x188] sm:$0xf]
        %v2489 = vld [vmem:[%s592 + $0x18c] sm:$0xf]
        %v2490 = vld [vmem:[%s592 + $0x190] sm:$0xf]
        %v2491 = vld [vmem:[%s592 + $0x194] sm:$0xf]
        %v2492 = vld [vmem:[%s592 + $0x198] sm:$0xf]
        %v2493 = vld [vmem:[%s592 + $0x19c] sm:$0xf]
        %v2494 = vld [vmem:[%s592 + $0x1a0] sm:$0xf]
        %v2495 = vld [vmem:[%s592 + $0x1a4] sm:$0xf]
        %v2496 = vld [vmem:[%s592 + $0x1a8] sm:$0xf]
        %v2497 = vld [vmem:[%s592 + $0x1ac] sm:$0xf]
        %v2498 = vld [vmem:[%s592 + $0x1b0] sm:$0xf]
        %v2499 = vld [vmem:[%s592 + $0x1b4] sm:$0xf]
        %v2500 = vld [vmem:[%s592 + $0x1b8] sm:$0xf]
        %v2501 = vld [vmem:[%s592 + $0x1bc] sm:$0xf]
        %v2502 = vld [vmem:[%s592 + $0x1c0] sm:$0xf]
        %v2503 = vld [vmem:[%s592 + $0x1c4] sm:$0xf]
        %v2504 = vld [vmem:[%s592 + $0x1c8] sm:$0xf]
        %v2505 = vld [vmem:[%s592 + $0x1cc] sm:$0xf]
        %v2506 = vld [vmem:[%s592 + $0x1d0] sm:$0xf]
        %v2507 = vld [vmem:[%s592 + $0x1d4] sm:$0xf]
        %v2508 = vld [vmem:[%s592 + $0x1d8] sm:$0xf]
        %v2509 = vld [vmem:[%s592 + $0x1dc] sm:$0xf]
        %v2510 = vld [vmem:[%s592 + $0x1e0] sm:$0xf]
        %v2511 = vld [vmem:[%s592 + $0x1e4] sm:$0xf]
        %v2512 = vld [vmem:[%s592 + $0x1e8] sm:$0xf]
        %v2513 = vld [vmem:[%s592 + $0x1ec] sm:$0xf]
        %v2514 = vld [vmem:[%s592 + $0x1f0] sm:$0xf]
        %v2515 = vld [vmem:[%s592 + $0x1f4] sm:$0xf]
        %v2516 = vld [vmem:[%s592 + $0x1f8] sm:$0xf]
        %v2517 = vld [vmem:[%s592 + $0x1fc] sm:$0xf]
        %v2518 = vld [vmem:[%s592 + $0x200] sm:$0xf]
        %v2519 = vld [vmem:[%s592 + $0x204] sm:$0xf]
        %v2520 = vld [vmem:[%s592 + $0x208] sm:$0xf]
        %v2521 = vld [vmem:[%s592 + $0x20c] sm:$0xf]
        %v2522 = vld [vmem:[%s592 + $0x210] sm:$0xf]
        %v2523 = vld [vmem:[%s592 + $0x214] sm:$0xf]
        %v2524 = vld [vmem:[%s592 + $0x218] sm:$0xf]
        %v2525 = vld [vmem:[%s592 + $0x21c] sm:$0xf]
        %v2526 = vld [vmem:[%s592 + $0x220] sm:$0xf]
        %v2527 = vld [vmem:[%s592 + $0x224] sm:$0xf]
        %v2528 = vld [vmem:[%s592 + $0x228] sm:$0xf]
        %v2529 = vld [vmem:[%s592 + $0x22c] sm:$0xf]
        %v2530 = vld [vmem:[%s592 + $0x230] sm:$0xf]
        %v2531 = vld [vmem:[%s592 + $0x234] sm:$0xf]
        %v2532 = vld [vmem:[%s592 + $0x238] sm:$0xf]
        %v2533 = vld [vmem:[%s592 + $0x23c] sm:$0xf]
        %v2534 = vld [vmem:[%s592 + $0x240] sm:$0xf]
        %v2535 = vld [vmem:[%s592 + $0x244] sm:$0xf]
        %v2536 = vld [vmem:[%s592 + $0x248] sm:$0xf]
        %v2537 = vld [vmem:[%s592 + $0x24c] sm:$0xf]
        %v2538 = vld [vmem:[%s592 + $0x250] sm:$0xf]
        %v2539 = vld [vmem:[%s592 + $0x254] sm:$0xf]
        %v2540 = vld [vmem:[%s592 + $0x258] sm:$0xf]
        %v2541 = vld [vmem:[%s592 + $0x25c] sm:$0xf]
        %v2542 = vld [vmem:[%s592 + $0x260] sm:$0xf]
        %v2543 = vld [vmem:[%s592 + $0x264] sm:$0xf]
        %v2544 = vld [vmem:[%s592 + $0x268] sm:$0xf]
        %v2545 = vld [vmem:[%s592 + $0x26c] sm:$0xf]
        %v2546 = vld [vmem:[%s592 + $0x270] sm:$0xf]
        %v2547 = vld [vmem:[%s592 + $0x274] sm:$0xf]
        %v2548 = vld [vmem:[%s592 + $0x278] sm:$0xf]
        %v2549 = vld [vmem:[%s592 + $0x27c] sm:$0xf]
        %v2550 = vld [vmem:[%s592 + $0x280] sm:$0xf]
        %v2551 = vld [vmem:[%s592 + $0x284] sm:$0xf]
        %v2552 = vld [vmem:[%s592 + $0x288] sm:$0xf]
        %v2553 = vld [vmem:[%s592 + $0x28c] sm:$0xf]
        %v2554 = vld [vmem:[%s592 + $0x290] sm:$0xf]
        %v2555 = vld [vmem:[%s592 + $0x294] sm:$0xf]
        %v2556 = vld [vmem:[%s592 + $0x298] sm:$0xf]
        %v2557 = vld [vmem:[%s592 + $0x29c] sm:$0xf]
        %v2558 = vld [vmem:[%s592 + $0x2a0] sm:$0xf]
        %v2559 = vld [vmem:[%s592 + $0x2a4] sm:$0xf]
        %v2560 = vld [vmem:[%s592 + $0x2a8] sm:$0xf]
        %v2561 = vld [vmem:[%s592 + $0x2ac] sm:$0xf]
        %v2562 = vld [vmem:[%s592 + $0x2b0] sm:$0xf]
        %v2563 = vld [vmem:[%s592 + $0x2b4] sm:$0xf]
        %v2564 = vld [vmem:[%s592 + $0x2b8] sm:$0xf]
        %v2565 = vld [vmem:[%s592 + $0x2bc] sm:$0xf]
        %v2566 = vld [vmem:[%s592 + $0x2c0] sm:$0xf]
        %v2567 = vld [vmem:[%s592 + $0x2c4] sm:$0xf]
        %v2568 = vld [vmem:[%s592 + $0x2c8] sm:$0xf]
        %v2569 = vld [vmem:[%s592 + $0x2cc] sm:$0xf]
        %v2570 = vld [vmem:[%s592 + $0x2d0] sm:$0xf]
        %v2571 = vld [vmem:[%s592 + $0x2d4] sm:$0xf]
        %v2572 = vld [vmem:[%s592 + $0x2d8] sm:$0xf]
        %v2573 = vld [vmem:[%s592 + $0x2dc] sm:$0xf]
        %v2574 = vld [vmem:[%s592 + $0x2e0] sm:$0xf]
        %v2575 = vld [vmem:[%s592 + $0x2e4] sm:$0xf]
        %v2576 = vld [vmem:[%s592 + $0x2e8] sm:$0xf]
        %v2577 = vld [vmem:[%s592 + $0x2ec] sm:$0xf]
        %v2578 = vld [vmem:[%s592 + $0x2f0] sm:$0xf]
        %v2579 = vld [vmem:[%s592 + $0x2f4] sm:$0xf]
        %v2580 = vld [vmem:[%s592 + $0x2f8] sm:$0xf]
        %v2581 = vld [vmem:[%s592 + $0x2fc] sm:$0xf]
        %v2582 = vld [vmem:[%s592 + $0x300] sm:$0xf]
        %v2583 = vld [vmem:[%s592 + $0x304] sm:$0xf]
        %v2584 = vld [vmem:[%s592 + $0x308] sm:$0xf]
        %v2585 = vld [vmem:[%s592 + $0x30c] sm:$0xf]
        %v2586 = vld [vmem:[%s592 + $0x310] sm:$0xf]
        %v2587 = vld [vmem:[%s592 + $0x314] sm:$0xf]
        %v2588 = vld [vmem:[%s592 + $0x318] sm:$0xf]
        %v2589 = vld [vmem:[%s592 + $0x31c] sm:$0xf]
        %v2590 = vld [vmem:[%s592 + $0x320] sm:$0xf]
        %v2591 = vld [vmem:[%s592 + $0x324] sm:$0xf]
        %v2592 = vld [vmem:[%s592 + $0x328] sm:$0xf]
        %v2593 = vld [vmem:[%s592 + $0x32c] sm:$0xf]
        %v2594 = vld [vmem:[%s592 + $0x330] sm:$0xf]
        %v2595 = vld [vmem:[%s592 + $0x334] sm:$0xf]
        %v2596 = vld [vmem:[%s592 + $0x338] sm:$0xf]
        %v2597 = vld [vmem:[%s592 + $0x33c] sm:$0xf]
        %v2598 = vld [vmem:[%s592 + $0x340] sm:$0xf]
        %v2599 = vld [vmem:[%s592 + $0x344] sm:$0xf]
        %v2600 = vld [vmem:[%s592 + $0x348] sm:$0xf]
        %v2601 = vld [vmem:[%s592 + $0x34c] sm:$0xf]
        %v2602 = vld [vmem:[%s592 + $0x350] sm:$0xf]
        %v2603 = vld [vmem:[%s592 + $0x354] sm:$0xf]
        %v2604 = vld [vmem:[%s592 + $0x358] sm:$0xf]
        %v2605 = vld [vmem:[%s592 + $0x35c] sm:$0xf]
        %v2606 = vld [vmem:[%s592 + $0x360] sm:$0xf]
        %v2607 = vld [vmem:[%s592 + $0x364] sm:$0xf]
        %v2608 = vld [vmem:[%s592 + $0x368] sm:$0xf]
        %v2609 = vld [vmem:[%s592 + $0x36c] sm:$0xf]
        %v2610 = vld [vmem:[%s592 + $0x370] sm:$0xf]
        %v2611 = vld [vmem:[%s592 + $0x374] sm:$0xf]
        %v2612 = vld [vmem:[%s592 + $0x378] sm:$0xf]
        %v2613 = vld [vmem:[%s592 + $0x37c] sm:$0xf]
        %v2614 = vld [vmem:[%s592 + $0x380] sm:$0xf]
        %v2615 = vld [vmem:[%s592 + $0x384] sm:$0xf]
        %v2616 = vld [vmem:[%s592 + $0x388] sm:$0xf]
        %v2617 = vld [vmem:[%s592 + $0x38c] sm:$0xf]
        %v2618 = vld [vmem:[%s592 + $0x390] sm:$0xf]
        %v2619 = vld [vmem:[%s592 + $0x394] sm:$0xf]
        %v2620 = vld [vmem:[%s592 + $0x398] sm:$0xf]
        %v2621 = vld [vmem:[%s592 + $0x39c] sm:$0xf]
        %v2622 = vld [vmem:[%s592 + $0x3a0] sm:$0xf]
        %v2623 = vld [vmem:[%s592 + $0x3a4] sm:$0xf]
        %v2624 = vld [vmem:[%s592 + $0x3a8] sm:$0xf]
        %v2625 = vld [vmem:[%s592 + $0x3ac] sm:$0xf]
        %v2626 = vld [vmem:[%s592 + $0x3b0] sm:$0xf]
        %v2627 = vld [vmem:[%s592 + $0x3b4] sm:$0xf]
        %v2628 = vld [vmem:[%s592 + $0x3b8] sm:$0xf]
        %v2629 = vld [vmem:[%s592 + $0x3bc] sm:$0xf]
        %v2630 = vld [vmem:[%s592 + $0x3c0] sm:$0xf]
        %v2631 = vld [vmem:[%s592 + $0x3c4] sm:$0xf]
        %v2632 = vld [vmem:[%s592 + $0x3c8] sm:$0xf]
        %v2633 = vld [vmem:[%s592 + $0x3cc] sm:$0xf]
        %v2634 = vld [vmem:[%s592 + $0x3d0] sm:$0xf]
        %v2635 = vld [vmem:[%s592 + $0x3d4] sm:$0xf]
        %v2636 = vld [vmem:[%s592 + $0x3d8] sm:$0xf]
        %v2637 = vld [vmem:[%s592 + $0x3dc] sm:$0xf]
        %v2638 = vld [vmem:[%s592 + $0x3e0] sm:$0xf]
        %v2639 = vld [vmem:[%s592 + $0x3e4] sm:$0xf]
        %v2640 = vld [vmem:[%s592 + $0x3e8] sm:$0xf]
        %v2641 = vld [vmem:[%s592 + $0x3ec] sm:$0xf]
        %v2642 = vld [vmem:[%s592 + $0x3f0] sm:$0xf]
        %v2643 = vld [vmem:[%s592 + $0x3f4] sm:$0xf]
        %v2644 = vld [vmem:[%s592 + $0x3f8] sm:$0xf]
        %v2645 = vld [vmem:[%s592 + $0x3fc] sm:$0xf]
        %v2646 = vld [vmem:[%s595] sm:$0x1]
        %v2648 = vlaneseq
        %v2649 = vshrl.u32 %v2648, 7
        %v2650 = vsub.s32 0, %v2649
        %v2651 = vrot.slane %v2646, %v2650
        %v2909 = vunpack.c.l.b16 %v2390
        %v2910 = vunpack.c.l.b16 %v2391
        %v2911 = vunpack.c.l.b16 %v2392
        %v2912 = vunpack.c.l.b16 %v2393
        %v2913 = vunpack.c.l.b16 %v2394
        %v2914 = vunpack.c.l.b16 %v2395
        %v2915 = vunpack.c.l.b16 %v2396
        %v2916 = vunpack.c.l.b16 %v2397
        %v2917 = vunpack.c.l.b16 %v2398
        %v2918 = vunpack.c.l.b16 %v2399
        %v2919 = vunpack.c.l.b16 %v2400
        %v2920 = vunpack.c.l.b16 %v2401
        %v2921 = vunpack.c.l.b16 %v2402
        %v2922 = vunpack.c.l.b16 %v2403
        %v2923 = vunpack.c.l.b16 %v2404
        %v2924 = vunpack.c.l.b16 %v2405
        %v2925 = vunpack.c.l.b16 %v2406
        %v2926 = vunpack.c.l.b16 %v2407
        %v2927 = vunpack.c.l.b16 %v2408
        %v2928 = vunpack.c.l.b16 %v2409
        %v2929 = vunpack.c.l.b16 %v2410
        %v2930 = vunpack.c.l.b16 %v2411
        %v2931 = vunpack.c.l.b16 %v2412
        %v2932 = vunpack.c.l.b16 %v2413
        %v2933 = vunpack.c.l.b16 %v2414
        %v2934 = vunpack.c.l.b16 %v2415
        %v2935 = vunpack.c.l.b16 %v2416
        %v2936 = vunpack.c.l.b16 %v2417
        %v2937 = vunpack.c.l.b16 %v2418
        %v2938 = vunpack.c.l.b16 %v2419
        %v2939 = vunpack.c.l.b16 %v2420
        %v2940 = vunpack.c.l.b16 %v2421
        %v2941 = vunpack.c.l.b16 %v2422
        %v2942 = vunpack.c.l.b16 %v2423
        %v2943 = vunpack.c.l.b16 %v2424
        %v2944 = vunpack.c.l.b16 %v2425
        %v2945 = vunpack.c.l.b16 %v2426
        %v2946 = vunpack.c.l.b16 %v2427
        %v2947 = vunpack.c.l.b16 %v2428
        %v2948 = vunpack.c.l.b16 %v2429
        %v2949 = vunpack.c.l.b16 %v2430
        %v2950 = vunpack.c.l.b16 %v2431
        %v2951 = vunpack.c.l.b16 %v2432
        %v2952 = vunpack.c.l.b16 %v2433
        %v2953 = vunpack.c.l.b16 %v2434
        %v2954 = vunpack.c.l.b16 %v2435
        %v2955 = vunpack.c.l.b16 %v2436
        %v2956 = vunpack.c.l.b16 %v2437
        %v2957 = vunpack.c.l.b16 %v2438
        %v2958 = vunpack.c.l.b16 %v2439
        %v2959 = vunpack.c.l.b16 %v2440
        %v2960 = vunpack.c.l.b16 %v2441
        %v2961 = vunpack.c.l.b16 %v2442
        %v2962 = vunpack.c.l.b16 %v2443
        %v2963 = vunpack.c.l.b16 %v2444
        %v2964 = vunpack.c.l.b16 %v2445
        %v2965 = vunpack.c.l.b16 %v2446
        %v2966 = vunpack.c.l.b16 %v2447
        %v2967 = vunpack.c.l.b16 %v2448
        %v2968 = vunpack.c.l.b16 %v2449
        %v2969 = vunpack.c.l.b16 %v2450
        %v2970 = vunpack.c.l.b16 %v2451
        %v2971 = vunpack.c.l.b16 %v2452
        %v2972 = vunpack.c.l.b16 %v2453
        %v2973 = vunpack.c.l.b16 %v2454
        %v2974 = vunpack.c.l.b16 %v2455
        %v2975 = vunpack.c.l.b16 %v2456
        %v2976 = vunpack.c.l.b16 %v2457
        %v2977 = vunpack.c.l.b16 %v2458
        %v2978 = vunpack.c.l.b16 %v2459
        %v2979 = vunpack.c.l.b16 %v2460
        %v2980 = vunpack.c.l.b16 %v2461
        %v2981 = vunpack.c.l.b16 %v2462
        %v2982 = vunpack.c.l.b16 %v2463
        %v2983 = vunpack.c.l.b16 %v2464
        %v2984 = vunpack.c.l.b16 %v2465
        %v2985 = vunpack.c.l.b16 %v2466
        %v2986 = vunpack.c.l.b16 %v2467
        %v2987 = vunpack.c.l.b16 %v2468
        %v2988 = vunpack.c.l.b16 %v2469
        %v2989 = vunpack.c.l.b16 %v2470
        %v2990 = vunpack.c.l.b16 %v2471
        %v2991 = vunpack.c.l.b16 %v2472
        %v2992 = vunpack.c.l.b16 %v2473
        %v2993 = vunpack.c.l.b16 %v2474
        %v2994 = vunpack.c.l.b16 %v2475
        %v2995 = vunpack.c.l.b16 %v2476
        %v2996 = vunpack.c.l.b16 %v2477
        %v2997 = vunpack.c.l.b16 %v2478
        %v2998 = vunpack.c.l.b16 %v2479
        %v2999 = vunpack.c.l.b16 %v2480
        %v3000 = vunpack.c.l.b16 %v2481
        %v3001 = vunpack.c.l.b16 %v2482
        %v3002 = vunpack.c.l.b16 %v2483
        %v3003 = vunpack.c.l.b16 %v2484
        %v3004 = vunpack.c.l.b16 %v2485
        %v3005 = vunpack.c.l.b16 %v2486
        %v3006 = vunpack.c.l.b16 %v2487
        %v3007 = vunpack.c.l.b16 %v2488
        %v3008 = vunpack.c.l.b16 %v2489
        %v3009 = vunpack.c.l.b16 %v2490
        %v3010 = vunpack.c.l.b16 %v2491
        %v3011 = vunpack.c.l.b16 %v2492
        %v3012 = vunpack.c.l.b16 %v2493
        %v3013 = vunpack.c.l.b16 %v2494
        %v3014 = vunpack.c.l.b16 %v2495
        %v3015 = vunpack.c.l.b16 %v2496
        %v3016 = vunpack.c.l.b16 %v2497
        %v3017 = vunpack.c.l.b16 %v2498
        %v3018 = vunpack.c.l.b16 %v2499
        %v3019 = vunpack.c.l.b16 %v2500
        %v3020 = vunpack.c.l.b16 %v2501
        %v3021 = vunpack.c.l.b16 %v2502
        %v3022 = vunpack.c.l.b16 %v2503
        %v3023 = vunpack.c.l.b16 %v2504
        %v3024 = vunpack.c.l.b16 %v2505
        %v3025 = vunpack.c.l.b16 %v2506
        %v3026 = vunpack.c.l.b16 %v2507
        %v3027 = vunpack.c.l.b16 %v2508
        %v3028 = vunpack.c.l.b16 %v2509
        %v3029 = vunpack.c.l.b16 %v2510
        %v3030 = vunpack.c.l.b16 %v2511
        %v3031 = vunpack.c.l.b16 %v2512
        %v3032 = vunpack.c.l.b16 %v2513
        %v3033 = vunpack.c.l.b16 %v2514
        %v3034 = vunpack.c.l.b16 %v2515
        %v3035 = vunpack.c.l.b16 %v2516
        %v3036 = vunpack.c.l.b16 %v2517
        %v3037 = vunpack.c.l.b16 %v2518
        %v3038 = vunpack.c.l.b16 %v2519
        %v3039 = vunpack.c.l.b16 %v2520
        %v3040 = vunpack.c.l.b16 %v2521
        %v3041 = vunpack.c.l.b16 %v2522
        %v3042 = vunpack.c.l.b16 %v2523
        %v3043 = vunpack.c.l.b16 %v2524
        %v3044 = vunpack.c.l.b16 %v2525
        %v3045 = vunpack.c.l.b16 %v2526
        %v3046 = vunpack.c.l.b16 %v2527
        %v3047 = vunpack.c.l.b16 %v2528
        %v3048 = vunpack.c.l.b16 %v2529
        %v3049 = vunpack.c.l.b16 %v2530
        %v3050 = vunpack.c.l.b16 %v2531
        %v3051 = vunpack.c.l.b16 %v2532
        %v3052 = vunpack.c.l.b16 %v2533
        %v3053 = vunpack.c.l.b16 %v2534
        %v3054 = vunpack.c.l.b16 %v2535
        %v3055 = vunpack.c.l.b16 %v2536
        %v3056 = vunpack.c.l.b16 %v2537
        %v3057 = vunpack.c.l.b16 %v2538
        %v3058 = vunpack.c.l.b16 %v2539
        %v3059 = vunpack.c.l.b16 %v2540
        %v3060 = vunpack.c.l.b16 %v2541
        %v3061 = vunpack.c.l.b16 %v2542
        %v3062 = vunpack.c.l.b16 %v2543
        %v3063 = vunpack.c.l.b16 %v2544
        %v3064 = vunpack.c.l.b16 %v2545
        %v3065 = vunpack.c.l.b16 %v2546
        %v3066 = vunpack.c.l.b16 %v2547
        %v3067 = vunpack.c.l.b16 %v2548
        %v3068 = vunpack.c.l.b16 %v2549
        %v3069 = vunpack.c.l.b16 %v2550
        %v3070 = vunpack.c.l.b16 %v2551
        %v3071 = vunpack.c.l.b16 %v2552
        %v3072 = vunpack.c.l.b16 %v2553
        %v3073 = vunpack.c.l.b16 %v2554
        %v3074 = vunpack.c.l.b16 %v2555
        %v3075 = vunpack.c.l.b16 %v2556
        %v3076 = vunpack.c.l.b16 %v2557
        %v3077 = vunpack.c.l.b16 %v2558
        %v3078 = vunpack.c.l.b16 %v2559
        %v3079 = vunpack.c.l.b16 %v2560
        %v3080 = vunpack.c.l.b16 %v2561
        %v3081 = vunpack.c.l.b16 %v2562
        %v3082 = vunpack.c.l.b16 %v2563
        %v3083 = vunpack.c.l.b16 %v2564
        %v3084 = vunpack.c.l.b16 %v2565
        %v3085 = vunpack.c.l.b16 %v2566
        %v3086 = vunpack.c.l.b16 %v2567
        %v3087 = vunpack.c.l.b16 %v2568
        %v3088 = vunpack.c.l.b16 %v2569
        %v3089 = vunpack.c.l.b16 %v2570
        %v3090 = vunpack.c.l.b16 %v2571
        %v3091 = vunpack.c.l.b16 %v2572
        %v3092 = vunpack.c.l.b16 %v2573
        %v3093 = vunpack.c.l.b16 %v2574
        %v3094 = vunpack.c.l.b16 %v2575
        %v3095 = vunpack.c.l.b16 %v2576
        %v3096 = vunpack.c.l.b16 %v2577
        %v3097 = vunpack.c.l.b16 %v2578
        %v3098 = vunpack.c.l.b16 %v2579
        %v3099 = vunpack.c.l.b16 %v2580
        %v3100 = vunpack.c.l.b16 %v2581
        %v3101 = vunpack.c.l.b16 %v2582
        %v3102 = vunpack.c.l.b16 %v2583
        %v3103 = vunpack.c.l.b16 %v2584
        %v3104 = vunpack.c.l.b16 %v2585
        %v3105 = vunpack.c.l.b16 %v2586
        %v3106 = vunpack.c.l.b16 %v2587
        %v3107 = vunpack.c.l.b16 %v2588
        %v3108 = vunpack.c.l.b16 %v2589
        %v3109 = vunpack.c.l.b16 %v2590
        %v3110 = vunpack.c.l.b16 %v2591
        %v3111 = vunpack.c.l.b16 %v2592
        %v3112 = vunpack.c.l.b16 %v2593
        %v3113 = vunpack.c.l.b16 %v2594
        %v3114 = vunpack.c.l.b16 %v2595
        %v3115 = vunpack.c.l.b16 %v2596
        %v3116 = vunpack.c.l.b16 %v2597
        %v3117 = vunpack.c.l.b16 %v2598
        %v3118 = vunpack.c.l.b16 %v2599
        %v3119 = vunpack.c.l.b16 %v2600
        %v3120 = vunpack.c.l.b16 %v2601
        %v3121 = vunpack.c.l.b16 %v2602
        %v3122 = vunpack.c.l.b16 %v2603
        %v3123 = vunpack.c.l.b16 %v2604
        %v3124 = vunpack.c.l.b16 %v2605
        %v3125 = vunpack.c.l.b16 %v2606
        %v3126 = vunpack.c.l.b16 %v2607
        %v3127 = vunpack.c.l.b16 %v2608
        %v3128 = vunpack.c.l.b16 %v2609
        %v3129 = vunpack.c.l.b16 %v2610
        %v3130 = vunpack.c.l.b16 %v2611
        %v3131 = vunpack.c.l.b16 %v2612
        %v3132 = vunpack.c.l.b16 %v2613
        %v3133 = vunpack.c.l.b16 %v2614
        %v3134 = vunpack.c.l.b16 %v2615
        %v3135 = vunpack.c.l.b16 %v2616
        %v3136 = vunpack.c.l.b16 %v2617
        %v3137 = vunpack.c.l.b16 %v2618
        %v3138 = vunpack.c.l.b16 %v2619
        %v3139 = vunpack.c.l.b16 %v2620
        %v3140 = vunpack.c.l.b16 %v2621
        %v3141 = vunpack.c.l.b16 %v2622
        %v3142 = vunpack.c.l.b16 %v2623
        %v3143 = vunpack.c.l.b16 %v2624
        %v3144 = vunpack.c.l.b16 %v2625
        %v3145 = vunpack.c.l.b16 %v2626
        %v3146 = vunpack.c.l.b16 %v2627
        %v3147 = vunpack.c.l.b16 %v2628
        %v3148 = vunpack.c.l.b16 %v2629
        %v3149 = vunpack.c.l.b16 %v2630
        %v3150 = vunpack.c.l.b16 %v2631
        %v3151 = vunpack.c.l.b16 %v2632
        %v3152 = vunpack.c.l.b16 %v2633
        %v3153 = vunpack.c.l.b16 %v2634
        %v3154 = vunpack.c.l.b16 %v2635
        %v3155 = vunpack.c.l.b16 %v2636
        %v3156 = vunpack.c.l.b16 %v2637
        %v3157 = vunpack.c.l.b16 %v2638
        %v3158 = vunpack.c.l.b16 %v2639
        %v3159 = vunpack.c.l.b16 %v2640
        %v3160 = vunpack.c.l.b16 %v2641
        %v3161 = vunpack.c.l.b16 %v2642
        %v3162 = vunpack.c.l.b16 %v2643
        %v3163 = vunpack.c.l.b16 %v2644
        %v3164 = vunpack.c.l.b16 %v2645
        %v3165 = vpack.c.b16 %v2910, %v2909
        %v3166 = vpack.c.b16 %v2912, %v2911
        %v3167 = vpack.c.b16 %v2914, %v2913
        %v3168 = vpack.c.b16 %v2916, %v2915
        %v3169 = vpack.c.b16 %v2918, %v2917
        %v3170 = vpack.c.b16 %v2920, %v2919
        %v3171 = vpack.c.b16 %v2922, %v2921
        %v3172 = vpack.c.b16 %v2924, %v2923
        %v3173 = vpack.c.b16 %v2926, %v2925
        %v3174 = vpack.c.b16 %v2928, %v2927
        %v3175 = vpack.c.b16 %v2930, %v2929
        %v3176 = vpack.c.b16 %v2932, %v2931
        %v3177 = vpack.c.b16 %v2934, %v2933
        %v3178 = vpack.c.b16 %v2936, %v2935
        %v3179 = vpack.c.b16 %v2938, %v2937
        %v3180 = vpack.c.b16 %v2940, %v2939
        %v3181 = vpack.c.b16 %v2942, %v2941
        %v3182 = vpack.c.b16 %v2944, %v2943
        %v3183 = vpack.c.b16 %v2946, %v2945
        %v3184 = vpack.c.b16 %v2948, %v2947
        %v3185 = vpack.c.b16 %v2950, %v2949
        %v3186 = vpack.c.b16 %v2952, %v2951
        %v3187 = vpack.c.b16 %v2954, %v2953
        %v3188 = vpack.c.b16 %v2956, %v2955
        %v3189 = vpack.c.b16 %v2958, %v2957
        %v3190 = vpack.c.b16 %v2960, %v2959
        %v3191 = vpack.c.b16 %v2962, %v2961
        %v3192 = vpack.c.b16 %v2964, %v2963
        %v3193 = vpack.c.b16 %v2966, %v2965
        %v3194 = vpack.c.b16 %v2968, %v2967
        %v3195 = vpack.c.b16 %v2970, %v2969
        %v3196 = vpack.c.b16 %v2972, %v2971
        %v3197 = vpack.c.b16 %v2974, %v2973
        %v3198 = vpack.c.b16 %v2976, %v2975
        %v3199 = vpack.c.b16 %v2978, %v2977
        %v3200 = vpack.c.b16 %v2980, %v2979
        %v3201 = vpack.c.b16 %v2982, %v2981
        %v3202 = vpack.c.b16 %v2984, %v2983
        %v3203 = vpack.c.b16 %v2986, %v2985
        %v3204 = vpack.c.b16 %v2988, %v2987
        %v3205 = vpack.c.b16 %v2990, %v2989
        %v3206 = vpack.c.b16 %v2992, %v2991
        %v3207 = vpack.c.b16 %v2994, %v2993
        %v3208 = vpack.c.b16 %v2996, %v2995
        %v3209 = vpack.c.b16 %v2998, %v2997
        %v3210 = vpack.c.b16 %v3000, %v2999
        %v3211 = vpack.c.b16 %v3002, %v3001
        %v3212 = vpack.c.b16 %v3004, %v3003
        %v3213 = vpack.c.b16 %v3006, %v3005
        %v3214 = vpack.c.b16 %v3008, %v3007
        %v3215 = vpack.c.b16 %v3010, %v3009
        %v3216 = vpack.c.b16 %v3012, %v3011
        %v3217 = vpack.c.b16 %v3014, %v3013
        %v3218 = vpack.c.b16 %v3016, %v3015
        %v3219 = vpack.c.b16 %v3018, %v3017
        %v3220 = vpack.c.b16 %v3020, %v3019
        %v3221 = vpack.c.b16 %v3022, %v3021
        %v3222 = vpack.c.b16 %v3024, %v3023
        %v3223 = vpack.c.b16 %v3026, %v3025
        %v3224 = vpack.c.b16 %v3028, %v3027
        %v3225 = vpack.c.b16 %v3030, %v3029
        %v3226 = vpack.c.b16 %v3032, %v3031
        %v3227 = vpack.c.b16 %v3034, %v3033
        %v3228 = vpack.c.b16 %v3036, %v3035
        %v3229 = vpack.c.b16 %v3038, %v3037
        %v3230 = vpack.c.b16 %v3040, %v3039
        %v3231 = vpack.c.b16 %v3042, %v3041
        %v3232 = vpack.c.b16 %v3044, %v3043
        %v3233 = vpack.c.b16 %v3046, %v3045
        %v3234 = vpack.c.b16 %v3048, %v3047
        %v3235 = vpack.c.b16 %v3050, %v3049
        %v3236 = vpack.c.b16 %v3052, %v3051
        %v3237 = vpack.c.b16 %v3054, %v3053
        %v3238 = vpack.c.b16 %v3056, %v3055
        %v3239 = vpack.c.b16 %v3058, %v3057
        %v3240 = vpack.c.b16 %v3060, %v3059
        %v3241 = vpack.c.b16 %v3062, %v3061
        %v3242 = vpack.c.b16 %v3064, %v3063
        %v3243 = vpack.c.b16 %v3066, %v3065
        %v3244 = vpack.c.b16 %v3068, %v3067
        %v3245 = vpack.c.b16 %v3070, %v3069
        %v3246 = vpack.c.b16 %v3072, %v3071
        %v3247 = vpack.c.b16 %v3074, %v3073
        %v3248 = vpack.c.b16 %v3076, %v3075
        %v3249 = vpack.c.b16 %v3078, %v3077
        %v3250 = vpack.c.b16 %v3080, %v3079
        %v3251 = vpack.c.b16 %v3082, %v3081
        %v3252 = vpack.c.b16 %v3084, %v3083
        %v3253 = vpack.c.b16 %v3086, %v3085
        %v3254 = vpack.c.b16 %v3088, %v3087
        %v3255 = vpack.c.b16 %v3090, %v3089
        %v3256 = vpack.c.b16 %v3092, %v3091
        %v3257 = vpack.c.b16 %v3094, %v3093
        %v3258 = vpack.c.b16 %v3096, %v3095
        %v3259 = vpack.c.b16 %v3098, %v3097
        %v3260 = vpack.c.b16 %v3100, %v3099
        %v3261 = vpack.c.b16 %v3102, %v3101
        %v3262 = vpack.c.b16 %v3104, %v3103
        %v3263 = vpack.c.b16 %v3106, %v3105
        %v3264 = vpack.c.b16 %v3108, %v3107
        %v3265 = vpack.c.b16 %v3110, %v3109
        %v3266 = vpack.c.b16 %v3112, %v3111
        %v3267 = vpack.c.b16 %v3114, %v3113
        %v3268 = vpack.c.b16 %v3116, %v3115
        %v3269 = vpack.c.b16 %v3118, %v3117
        %v3270 = vpack.c.b16 %v3120, %v3119
        %v3271 = vpack.c.b16 %v3122, %v3121
        %v3272 = vpack.c.b16 %v3124, %v3123
        %v3273 = vpack.c.b16 %v3126, %v3125
        %v3274 = vpack.c.b16 %v3128, %v3127
        %v3275 = vpack.c.b16 %v3130, %v3129
        %v3276 = vpack.c.b16 %v3132, %v3131
        %v3277 = vpack.c.b16 %v3134, %v3133
        %v3278 = vpack.c.b16 %v3136, %v3135
        %v3279 = vpack.c.b16 %v3138, %v3137
        %v3280 = vpack.c.b16 %v3140, %v3139
        %v3281 = vpack.c.b16 %v3142, %v3141
        %v3282 = vpack.c.b16 %v3144, %v3143
        %v3283 = vpack.c.b16 %v3146, %v3145
        %v3284 = vpack.c.b16 %v3148, %v3147
        %v3285 = vpack.c.b16 %v3150, %v3149
        %v3286 = vpack.c.b16 %v3152, %v3151
        %v3287 = vpack.c.b16 %v3154, %v3153
        %v3288 = vpack.c.b16 %v3156, %v3155
        %v3289 = vpack.c.b16 %v3158, %v3157
        %v3290 = vpack.c.b16 %v3160, %v3159
        %v3291 = vpack.c.b16 %v3162, %v3161
        %v3292 = vpack.c.b16 %v3164, %v3163
        %3421 = vmatprep.subr.bf16.mxu0 0
        %3422 = vmatpush1.bf16.msra.mxu0 %v3165
        %3423 = vmatprep.subr.bf16.mxu0 0
        %3424 = vmatpush1.bf16.msra.mxu0 %v3166
        %3425 = vmatprep.subr.bf16.mxu0 0
        %3426 = vmatpush1.bf16.msra.mxu0 %v3167
        %3427 = vmatprep.subr.bf16.mxu0 0
        %3428 = vmatpush1.bf16.msra.mxu0 %v3168
        %3429 = vmatprep.subr.bf16.mxu0 0
        %3430 = vmatpush1.bf16.msra.mxu0 %v3169
        %3431 = vmatprep.subr.bf16.mxu0 0
        %3432 = vmatpush1.bf16.msra.mxu0 %v3170
        %3433 = vmatprep.subr.bf16.mxu0 0
        %3434 = vmatpush1.bf16.msra.mxu0 %v3171
        %3435 = vmatprep.subr.bf16.mxu0 0
        %3436 = vmatpush1.bf16.msra.mxu0 %v3172
        %3437 = vmatprep.subr.bf16.mxu0 0
        %3438 = vmatpush1.bf16.msra.mxu0 %v3173
        %3439 = vmatprep.subr.bf16.mxu0 0
        %3440 = vmatpush1.bf16.msra.mxu0 %v3174
        %3441 = vmatprep.subr.bf16.mxu0 0
        %3442 = vmatpush1.bf16.msra.mxu0 %v3175
        %3443 = vmatprep.subr.bf16.mxu0 0
        %3444 = vmatpush1.bf16.msra.mxu0 %v3176
        %3445 = vmatprep.subr.bf16.mxu0 0
        %3446 = vmatpush1.bf16.msra.mxu0 %v3177
        %3447 = vmatprep.subr.bf16.mxu0 0
        %3448 = vmatpush1.bf16.msra.mxu0 %v3178
        %3449 = vmatprep.subr.bf16.mxu0 0
        %3450 = vmatpush1.bf16.msra.mxu0 %v3179
        %3451 = vmatprep.subr.bf16.mxu0 0
        %3452 = vmatpush1.bf16.msra.mxu0 %v3180
        %3453 = vmatprep.mubr.bf16.mxu0 %v2375
        %3454 = vmatmul.mubr.bf16.gmra.mrb[0].mxu0 %v2374
        %v3455 = vpop.f32.mrb[0].mxu0
        %v3456 = vadd.f32 %v2651, %v3455
        %v3457 = vpop.f32.mrb[0].mxu0
        %v3458 = vpop.f32.mrb[0].mxu0
        %v3459 = vadd.f32 %v2651, %v3458
        %v3460 = vpop.f32.mrb[0].mxu0
        %3461 = vdwg.mxu0
        %3462 = vmatprep.subr.bf16.mxu0 0
        %3463 = vmatpush1.bf16.msra.mxu0 %v3181
        %3464 = vmatprep.subr.bf16.mxu0 0
        %3465 = vmatpush1.bf16.msra.mxu0 %v3182
        %3466 = vmatprep.subr.bf16.mxu0 0
        %3467 = vmatpush1.bf16.msra.mxu0 %v3183
        %3468 = vmatprep.subr.bf16.mxu0 0
        %3469 = vmatpush1.bf16.msra.mxu0 %v3184
        %3470 = vmatprep.subr.bf16.mxu0 0
        %3471 = vmatpush1.bf16.msra.mxu0 %v3185
        %3472 = vmatprep.subr.bf16.mxu0 0
        %3473 = vmatpush1.bf16.msra.mxu0 %v3186
        %3474 = vmatprep.subr.bf16.mxu0 0
        %3475 = vmatpush1.bf16.msra.mxu0 %v3187
        %3476 = vmatprep.subr.bf16.mxu0 0
        %3477 = vmatpush1.bf16.msra.mxu0 %v3188
        %3478 = vmatprep.subr.bf16.mxu0 0
        %3479 = vmatpush1.bf16.msra.mxu0 %v3189
        %3480 = vmatprep.subr.bf16.mxu0 0
        %3481 = vmatpush1.bf16.msra.mxu0 %v3190
        %3482 = vmatprep.subr.bf16.mxu0 0
        %3483 = vmatpush1.bf16.msra.mxu0 %v3191
        %3484 = vmatprep.subr.bf16.mxu0 0
        %3485 = vmatpush1.bf16.msra.mxu0 %v3192
        %3486 = vmatprep.subr.bf16.mxu0 0
        %3487 = vmatpush1.bf16.msra.mxu0 %v3193
        %3488 = vmatprep.subr.bf16.mxu0 0
        %3489 = vmatpush1.bf16.msra.mxu0 %v3194
        %3490 = vmatprep.subr.bf16.mxu0 0
        %3491 = vmatpush1.bf16.msra.mxu0 %v3195
        %3492 = vmatprep.subr.bf16.mxu0 0
        %3493 = vmatpush1.bf16.msra.mxu0 %v3196
        %3494 = vmatprep.mubr.bf16.mxu0 %v2377
        %3495 = vmatmul.mubr.bf16.gmra.mrb[0].mxu0 %v2376
        %v3496 = vpop.f32.mrb[0].mxu0
        %v3497 = vadd.f32 %v3456, %v3496
        %v3498 = vpop.f32.mrb[0].mxu0
        %v3499 = vpop.f32.mrb[0].mxu0
        %v3500 = vadd.f32 %v3459, %v3499
        %v3501 = vpop.f32.mrb[0].mxu0
        %3502 = vdwg.mxu0
        %3503 = vmatprep.subr.bf16.mxu0 0
        %3504 = vmatpush1.bf16.msra.mxu0 %v3197
        %3505 = vmatprep.subr.bf16.mxu0 0
        %3506 = vmatpush1.bf16.msra.mxu0 %v3198
        %3507 = vmatprep.subr.bf16.mxu0 0
        %3508 = vmatpush1.bf16.msra.mxu0 %v3199
        %3509 = vmatprep.subr.bf16.mxu0 0
        %3510 = vmatpush1.bf16.msra.mxu0 %v3200
        %3511 = vmatprep.subr.bf16.mxu0 0
        %3512 = vmatpush1.bf16.msra.mxu0 %v3201
        %3513 = vmatprep.subr.bf16.mxu0 0
        %3514 = vmatpush1.bf16.msra.mxu0 %v3202
        %3515 = vmatprep.subr.bf16.mxu0 0
        %3516 = vmatpush1.bf16.msra.mxu0 %v3203
        %3517 = vmatprep.subr.bf16.mxu0 0
        %3518 = vmatpush1.bf16.msra.mxu0 %v3204
        %3519 = vmatprep.subr.bf16.mxu0 0
        %3520 = vmatpush1.bf16.msra.mxu0 %v3205
        %3521 = vmatprep.subr.bf16.mxu0 0
        %3522 = vmatpush1.bf16.msra.mxu0 %v3206
        %3523 = vmatprep.subr.bf16.mxu0 0
        %3524 = vmatpush1.bf16.msra.mxu0 %v3207
        %3525 = vmatprep.subr.bf16.mxu0 0
        %3526 = vmatpush1.bf16.msra.mxu0 %v3208
        %3527 = vmatprep.subr.bf16.mxu0 0
        %3528 = vmatpush1.bf16.msra.mxu0 %v3209
        %3529 = vmatprep.subr.bf16.mxu0 0
        %3530 = vmatpush1.bf16.msra.mxu0 %v3210
        %3531 = vmatprep.subr.bf16.mxu0 0
        %3532 = vmatpush1.bf16.msra.mxu0 %v3211
        %3533 = vmatprep.subr.bf16.mxu0 0
        %3534 = vmatpush1.bf16.msra.mxu0 %v3212
        %3535 = vmatprep.mubr.bf16.mxu0 %v2379
        %3536 = vmatmul.mubr.bf16.gmra.mrb[0].mxu0 %v2378
        %v3537 = vpop.f32.mrb[0].mxu0
        %v3538 = vadd.f32 %v3497, %v3537
        %v3539 = vpop.f32.mrb[0].mxu0
        %v3540 = vpop.f32.mrb[0].mxu0
        %v3541 = vadd.f32 %v3500, %v3540
        %v3542 = vpop.f32.mrb[0].mxu0
        %3543 = vdwg.mxu0
        %3544 = vmatprep.subr.bf16.mxu0 0
        %3545 = vmatpush1.bf16.msra.mxu0 %v3213
        %3546 = vmatprep.subr.bf16.mxu0 0
        %3547 = vmatpush1.bf16.msra.mxu0 %v3214
        %3548 = vmatprep.subr.bf16.mxu0 0
        %3549 = vmatpush1.bf16.msra.mxu0 %v3215
        %3550 = vmatprep.subr.bf16.mxu0 0
        %3551 = vmatpush1.bf16.msra.mxu0 %v3216
        %3552 = vmatprep.subr.bf16.mxu0 0
        %3553 = vmatpush1.bf16.msra.mxu0 %v3217
        %3554 = vmatprep.subr.bf16.mxu0 0
        %3555 = vmatpush1.bf16.msra.mxu0 %v3218
        %3556 = vmatprep.subr.bf16.mxu0 0
        %3557 = vmatpush1.bf16.msra.mxu0 %v3219
        %3558 = vmatprep.subr.bf16.mxu0 0
        %3559 = vmatpush1.bf16.msra.mxu0 %v3220
        %3560 = vmatprep.subr.bf16.mxu0 0
        %3561 = vmatpush1.bf16.msra.mxu0 %v3221
        %3562 = vmatprep.subr.bf16.mxu0 0
        %3563 = vmatpush1.bf16.msra.mxu0 %v3222
        %3564 = vmatprep.subr.bf16.mxu0 0
        %3565 = vmatpush1.bf16.msra.mxu0 %v3223
        %3566 = vmatprep.subr.bf16.mxu0 0
        %3567 = vmatpush1.bf16.msra.mxu0 %v3224
        %3568 = vmatprep.subr.bf16.mxu0 0
        %3569 = vmatpush1.bf16.msra.mxu0 %v3225
        %3570 = vmatprep.subr.bf16.mxu0 0
        %3571 = vmatpush1.bf16.msra.mxu0 %v3226
        %3572 = vmatprep.subr.bf16.mxu0 0
        %3573 = vmatpush1.bf16.msra.mxu0 %v3227
        %3574 = vmatprep.subr.bf16.mxu0 0
        %3575 = vmatpush1.bf16.msra.mxu0 %v3228
        %3576 = vmatprep.mubr.bf16.mxu0 %v2381
        %3577 = vmatmul.mubr.bf16.gmra.mrb[0].mxu0 %v2380
        %v3578 = vpop.f32.mrb[0].mxu0
        %v3579 = vadd.f32 %v3538, %v3578
        %v3580 = vpop.f32.mrb[0].mxu0
        %v3581 = vpop.f32.mrb[0].mxu0
        %v3582 = vadd.f32 %v3541, %v3581
        %v3583 = vpop.f32.mrb[0].mxu0
        %3584 = vdwg.mxu0
        %3585 = vmatprep.subr.bf16.mxu0 0
        %3586 = vmatpush1.bf16.msra.mxu0 %v3229
        %3587 = vmatprep.subr.bf16.mxu0 0
        %3588 = vmatpush1.bf16.msra.mxu0 %v3230
        %3589 = vmatprep.subr.bf16.mxu0 0
        %3590 = vmatpush1.bf16.msra.mxu0 %v3231
        %3591 = vmatprep.subr.bf16.mxu0 0
        %3592 = vmatpush1.bf16.msra.mxu0 %v3232
        %3593 = vmatprep.subr.bf16.mxu0 0
        %3594 = vmatpush1.bf16.msra.mxu0 %v3233
        %3595 = vmatprep.subr.bf16.mxu0 0
        %3596 = vmatpush1.bf16.msra.mxu0 %v3234
        %3597 = vmatprep.subr.bf16.mxu0 0
        %3598 = vmatpush1.bf16.msra.mxu0 %v3235
        %3599 = vmatprep.subr.bf16.mxu0 0
        %3600 = vmatpush1.bf16.msra.mxu0 %v3236
        %3601 = vmatprep.subr.bf16.mxu0 0
        %3602 = vmatpush1.bf16.msra.mxu0 %v3237
        %3603 = vmatprep.subr.bf16.mxu0 0
        %3604 = vmatpush1.bf16.msra.mxu0 %v3238
        %3605 = vmatprep.subr.bf16.mxu0 0
        %3606 = vmatpush1.bf16.msra.mxu0 %v3239
        %3607 = vmatprep.subr.bf16.mxu0 0
        %3608 = vmatpush1.bf16.msra.mxu0 %v3240
        %3609 = vmatprep.subr.bf16.mxu0 0
        %3610 = vmatpush1.bf16.msra.mxu0 %v3241
        %3611 = vmatprep.subr.bf16.mxu0 0
        %3612 = vmatpush1.bf16.msra.mxu0 %v3242
        %3613 = vmatprep.subr.bf16.mxu0 0
        %3614 = vmatpush1.bf16.msra.mxu0 %v3243
        %3615 = vmatprep.subr.bf16.mxu0 0
        %3616 = vmatpush1.bf16.msra.mxu0 %v3244
        %3617 = vmatprep.mubr.bf16.mxu0 %v2383
        %3618 = vmatmul.mubr.bf16.gmra.mrb[0].mxu0 %v2382
        %v3619 = vpop.f32.mrb[0].mxu0
        %v3620 = vadd.f32 %v3579, %v3619
        %v3621 = vpop.f32.mrb[0].mxu0
        %v3622 = vpop.f32.mrb[0].mxu0
        %v3623 = vadd.f32 %v3582, %v3622
        %v3624 = vpop.f32.mrb[0].mxu0
        %3625 = vdwg.mxu0
        %3626 = vmatprep.subr.bf16.mxu0 0
        %3627 = vmatpush1.bf16.msra.mxu0 %v3245
        %3628 = vmatprep.subr.bf16.mxu0 0
        %3629 = vmatpush1.bf16.msra.mxu0 %v3246
        %3630 = vmatprep.subr.bf16.mxu0 0
        %3631 = vmatpush1.bf16.msra.mxu0 %v3247
        %3632 = vmatprep.subr.bf16.mxu0 0
        %3633 = vmatpush1.bf16.msra.mxu0 %v3248
        %3634 = vmatprep.subr.bf16.mxu0 0
        %3635 = vmatpush1.bf16.msra.mxu0 %v3249
        %3636 = vmatprep.subr.bf16.mxu0 0
        %3637 = vmatpush1.bf16.msra.mxu0 %v3250
        %3638 = vmatprep.subr.bf16.mxu0 0
        %3639 = vmatpush1.bf16.msra.mxu0 %v3251
        %3640 = vmatprep.subr.bf16.mxu0 0
        %3641 = vmatpush1.bf16.msra.mxu0 %v3252
        %3642 = vmatprep.subr.bf16.mxu0 0
        %3643 = vmatpush1.bf16.msra.mxu0 %v3253
        %3644 = vmatprep.subr.bf16.mxu0 0
        %3645 = vmatpush1.bf16.msra.mxu0 %v3254
        %3646 = vmatprep.subr.bf16.mxu0 0
        %3647 = vmatpush1.bf16.msra.mxu0 %v3255
        %3648 = vmatprep.subr.bf16.mxu0 0
        %3649 = vmatpush1.bf16.msra.mxu0 %v3256
        %3650 = vmatprep.subr.bf16.mxu0 0
        %3651 = vmatpush1.bf16.msra.mxu0 %v3257
        %3652 = vmatprep.subr.bf16.mxu0 0
        %3653 = vmatpush1.bf16.msra.mxu0 %v3258
        %3654 = vmatprep.subr.bf16.mxu0 0
        %3655 = vmatpush1.bf16.msra.mxu0 %v3259
        %3656 = vmatprep.subr.bf16.mxu0 0
        %3657 = vmatpush1.bf16.msra.mxu0 %v3260
        %3658 = vmatprep.mubr.bf16.mxu0 %v2385
        %3659 = vmatmul.mubr.bf16.gmra.mrb[0].mxu0 %v2384
        %v3660 = vpop.f32.mrb[0].mxu0
        %v3661 = vadd.f32 %v3620, %v3660
        %v3662 = vpop.f32.mrb[0].mxu0
        %v3663 = vpop.f32.mrb[0].mxu0
        %v3664 = vadd.f32 %v3623, %v3663
        %v3665 = vpop.f32.mrb[0].mxu0
        %3666 = vdwg.mxu0
        %3667 = vmatprep.subr.bf16.mxu0 0
        %3668 = vmatpush1.bf16.msra.mxu0 %v3261
        %3669 = vmatprep.subr.bf16.mxu0 0
        %3670 = vmatpush1.bf16.msra.mxu0 %v3262
        %3671 = vmatprep.subr.bf16.mxu0 0
        %3672 = vmatpush1.bf16.msra.mxu0 %v3263
        %3673 = vmatprep.subr.bf16.mxu0 0
        %3674 = vmatpush1.bf16.msra.mxu0 %v3264
        %3675 = vmatprep.subr.bf16.mxu0 0
        %3676 = vmatpush1.bf16.msra.mxu0 %v3265
        %3677 = vmatprep.subr.bf16.mxu0 0
        %3678 = vmatpush1.bf16.msra.mxu0 %v3266
        %3679 = vmatprep.subr.bf16.mxu0 0
        %3680 = vmatpush1.bf16.msra.mxu0 %v3267
        %3681 = vmatprep.subr.bf16.mxu0 0
        %3682 = vmatpush1.bf16.msra.mxu0 %v3268
        %3683 = vmatprep.subr.bf16.mxu0 0
        %3684 = vmatpush1.bf16.msra.mxu0 %v3269
        %3685 = vmatprep.subr.bf16.mxu0 0
        %3686 = vmatpush1.bf16.msra.mxu0 %v3270
        %3687 = vmatprep.subr.bf16.mxu0 0
        %3688 = vmatpush1.bf16.msra.mxu0 %v3271
        %3689 = vmatprep.subr.bf16.mxu0 0
        %3690 = vmatpush1.bf16.msra.mxu0 %v3272
        %3691 = vmatprep.subr.bf16.mxu0 0
        %3692 = vmatpush1.bf16.msra.mxu0 %v3273
        %3693 = vmatprep.subr.bf16.mxu0 0
        %3694 = vmatpush1.bf16.msra.mxu0 %v3274
        %3695 = vmatprep.subr.bf16.mxu0 0
        %3696 = vmatpush1.bf16.msra.mxu0 %v3275
        %3697 = vmatprep.subr.bf16.mxu0 0
        %3698 = vmatpush1.bf16.msra.mxu0 %v3276
        %3699 = vmatprep.mubr.bf16.mxu0 %v2387
        %3700 = vmatmul.mubr.bf16.gmra.mrb[0].mxu0 %v2386
        %v3701 = vpop.f32.mrb[0].mxu0
        %v3702 = vadd.f32 %v3661, %v3701
        %v3703 = vpop.f32.mrb[0].mxu0
        %v3704 = vpop.f32.mrb[0].mxu0
        %v3705 = vadd.f32 %v3664, %v3704
        %v3706 = vpop.f32.mrb[0].mxu0
        %3707 = vdwg.mxu0
        %3708 = vmatprep.subr.bf16.mxu0 0
        %3709 = vmatpush1.bf16.msra.mxu0 %v3277
        %3710 = vmatprep.subr.bf16.mxu0 0
        %3711 = vmatpush1.bf16.msra.mxu0 %v3278
        %3712 = vmatprep.subr.bf16.mxu0 0
        %3713 = vmatpush1.bf16.msra.mxu0 %v3279
        %3714 = vmatprep.subr.bf16.mxu0 0
        %3715 = vmatpush1.bf16.msra.mxu0 %v3280
        %3716 = vmatprep.subr.bf16.mxu0 0
        %3717 = vmatpush1.bf16.msra.mxu0 %v3281
        %3718 = vmatprep.subr.bf16.mxu0 0
        %3719 = vmatpush1.bf16.msra.mxu0 %v3282
        %3720 = vmatprep.subr.bf16.mxu0 0
        %3721 = vmatpush1.bf16.msra.mxu0 %v3283
        %3722 = vmatprep.subr.bf16.mxu0 0
        %3723 = vmatpush1.bf16.msra.mxu0 %v3284
        %3724 = vmatprep.subr.bf16.mxu0 0
        %3725 = vmatpush1.bf16.msra.mxu0 %v3285
        %3726 = vmatprep.subr.bf16.mxu0 0
        %3727 = vmatpush1.bf16.msra.mxu0 %v3286
        %3728 = vmatprep.subr.bf16.mxu0 0
        %3729 = vmatpush1.bf16.msra.mxu0 %v3287
        %3730 = vmatprep.subr.bf16.mxu0 0
        %3731 = vmatpush1.bf16.msra.mxu0 %v3288
        %3732 = vmatprep.subr.bf16.mxu0 0
        %3733 = vmatpush1.bf16.msra.mxu0 %v3289
        %3734 = vmatprep.subr.bf16.mxu0 0
        %3735 = vmatpush1.bf16.msra.mxu0 %v3290
        %3736 = vmatprep.subr.bf16.mxu0 0
        %3737 = vmatpush1.bf16.msra.mxu0 %v3291
        %3738 = vmatprep.subr.bf16.mxu0 0
        %3739 = vmatpush1.bf16.msra.mxu0 %v3292
        %3740 = vmatprep.mubr.bf16.mxu0 %v2389
        %3741 = vmatmul.mubr.bf16.gmra.mrb[0].mxu0 %v2388
        %v3742 = vpop.f32.mrb[0].mxu0
        %v3743 = vadd.f32 %v3702, %v3742
        %v3744 = vpop.f32.mrb[0].mxu0
        %v3745 = vpop.f32.mrb[0].mxu0
        %v3746 = vadd.f32 %v3705, %v3745
        %v3747 = vpop.f32.mrb[0].mxu0
        %3748 = vdwg.mxu0
        %v3749 = vadd.f32 %v1716, %v3743
        %v3750 = vadd.f32 %v1717, %v3746
        %v3751 = vld [vmem:[%s598] sm:$0x1]
        %v3752 = vld [vmem:[%s601] sm:$0x1]
        %v3753 = vsel %vm638, %v3749, 0.0
        %3754 = vadd.xlane.f32.xlu0 %v3753
        %v3755 = vpop.xlane.xlu0 %3754
        %v3756 = vsel %vm638, %v3750, 0.0
        %3757 = vadd.xlane.f32.xlu0 %v3756
        %v3758 = vpop.xlane.xlu0 %3757
        %v3759 = vmul.f32 %v3755, %v1681
        %v3760 = vmul.f32 %v3758, %v1681
        %v3761 = vsub.f32 %v3749, %v3759
        %v3762 = vsub.f32 %v3750, %v3760
        %v3763 = vmul.f32 %v3761, %v3761
        %v3764 = vmul.f32 %v3762, %v3762
        %v3765 = vsel %vm638, %v3763, 0.0
        %3766 = vadd.xlane.f32.xlu0 %v3765
        %v3767 = vpop.xlane.xlu0 %3766
        %v3768 = vsel %vm638, %v3764, 0.0
        %3769 = vadd.xlane.f32.xlu0 %v3768
        %v3770 = vpop.xlane.xlu0 %3769
        %v3771 = vmul.f32 %v3767, %v1681
        %v3772 = vmul.f32 %v3770, %v1681
        %v3773 = vadd.f32 %v3771, 1e-05
        %v3774 = vadd.f32 %v3772, 1e-05
        %v3775 = vrsqrt.pop %v3773
        %v3776 = vrsqrt.pop %v3774
        %v3777 = vmul.f32 %v3761, %v3775
        %v3778 = vmul.f32 %v3762, %v3776
        %v3780 = vlaneseq
        %v3781 = vshrl.u32 %v3780, 7
        %v3782 = vsub.s32 0, %v3781
        %v3783 = vrot.slane %v3751, %v3782
        %v3785 = vmul.f32 %v3777, %v3783
        %v3786 = vmul.f32 %v3778, %v3783
        %v3788 = vlaneseq
        %v3789 = vshrl.u32 %v3788, 7
        %v3790 = vsub.s32 0, %v3789
        %v3791 = vrot.slane %v3752, %v3790
        %v3793 = vadd.f32 %v3785, %v3791
        %v3794 = vadd.f32 %v3786, %v3791
        %3795 = vst.msk [vmem:[#allocation2] sm:$0xff] %vm638, %v3793
        %3796 = vst.msk [vmem:[#allocation2 + $0x8] sm:$0xff] %vm638, %v3794
        // Predicated region
        $region77: #{tpu_custom_call.1} parent=71 // pred_check
          %p3797 = pneg %p371
        $region78: #{tpu_custom_call.1} parent=71 // pred_check_branch
          %3799 = sbr.rel (%p3797) target = $region80
        $region79: #{tpu_custom_call.1} parent=71 // pred_region
          %s3801 = ssub.s32 256, 256
          %3802 = vsyncadd [#allocation3], %s3801
          %s3803 = sshll.u32 [#allocation2], 4
          %s3804 = int_to_ptr.vmem [resolvable:$true] %s3803
          %3809 = dma.vmem_to_hbm [thread:$0]  %s3804, 256, %s13, [#allocation3], 128, 128, 8
        $region80: #{tpu_custom_call.1} parent=71 // pred_fallthru
          _
        // Predicated region
        $region81: #{tpu_custom_call.1} parent=71 // pred_check
          %p3810 = pneg %p371
        $region82: #{tpu_custom_call.1} parent=71 // pred_check_branch
          %3812 = sbr.rel (%p3810) target = $region84
        $region83: #{tpu_custom_call.1} parent=71 // pred_region
          %3813 = dma.done [#allocation3], 256
        $region84: #{tpu_custom_call.1} parent=71 // pred_fallthru
          _
      $region72: #{tpu_custom_call.1} parent=5 // pred_fallthru
        _
      %p3814 = scmp.le.s32.totalorder 2, %s20
      // Predicated region
      $region85: #{tpu_custom_call.1} parent=5 // pred_check
        %p3815 = pneg %p3814
      $region86: #{tpu_custom_call.1} parent=5 // pred_check_branch
        %3817 = sbr.rel (%p3815) target = $region88
      $region87: #{tpu_custom_call.1} parent=5 // pred_region
        %s3818 = ssub.s32 %s20, 2
      $region88: #{tpu_custom_call.1} parent=5 // pred_fallthru
        _
    $region6: #{tpu_custom_call.1} parent=1 // loop_footer
      %s24 = sadd.s32 1, %s20
    $region7: #{tpu_custom_call.1} parent=1 // loop_footer_branch
      %19 = sbr.rel target = $region3
    $region8: #{tpu_custom_call.1} parent=1 // loop_exit
      _
    %3819 = vsyncpa [#allocation3], 1
    %s3820 = scalar_lea.sflag [#allocation3], 1
    %3821 = vsyncpa %s3820, 1

</llo_original>
